<compile_context>
chip_gen: v7x
topology: tpu7x:2x2x1
jax: 0.10.0
libtpu: 0.0.40
codegen_flags: <defaults>
</compile_context>

<pallas_src>
import functools

import jax
import jax.numpy as jnp
from jax.experimental import pallas as pl
from jax.experimental.pallas import tpu as pltpu

_VMEM_LIMIT = 64 * 1024 * 1024


# ----------------------------------------------------------------------------
# Kernel A: fused conv1 (1x1) + BN1 + ReLU  ->  conv2 (3x3, stride) + BN2 + ReLU
# ----------------------------------------------------------------------------
def _c1c2_kernel(x_ref, w1_ref, s1_ref, b1_ref, w2_ref, s2_ref, b2_ref,
                 o_ref, pad_ref, *, stride, cdt):
    """One batch image per grid step.

    x_ref:  (1, H, W, Cin)    w1_ref: (Cin, P)    w2_ref: (9*P, P)
    s*/b*:  (1, P)            o_ref:  (1, H2, W2, P)
    pad_ref: (Hp, Wp, P) VMEM scratch holding the zero-padded conv1 output.
    """
    H, W, Cin = x_ref.shape[1], x_ref.shape[2], x_ref.shape[3]
    H2, W2, P = o_ref.shape[1], o_ref.shape[2], o_ref.shape[3]
    Hp, Wp = pad_ref.shape[0], pad_ref.shape[1]

    # conv1 as a channel matmul over the flattened spatial axis.
    x2 = x_ref[0].reshape(H * W, Cin).astype(cdt)
    h = jnp.dot(x2, w1_ref[...], preferred_element_type=jnp.float32)
    h = jnp.maximum(h * s1_ref[...] + b1_ref[...], 0.0)

    # Zero-pad spatially inside VMEM (kills the HBM round trip of out1 and of a
    # wrapper-side jnp.pad).
    h = h.astype(cdt).reshape(H, W, P)
    zt = jnp.zeros((1, W, P), h.dtype)
    zb = jnp.zeros((Hp - H - 1, W, P), h.dtype)
    hp = jnp.concatenate([zt, h, zb], axis=0)          # (Hp, W, P)
    zl = jnp.zeros((Hp, 1, P), h.dtype)
    zr = jnp.zeros((Hp, Wp - W - 1, P), h.dtype)
    hp = jnp.concatenate([zl, hp, zr], axis=1)         # (Hp, Wp, P)
    pad_ref[...] = hp

    # conv2: im2col over only the strided output positions, one MXU matmul.
    cols = []
    for dy in range(3):
        for dx in range(3):
            if stride == 1:
                patch = pad_ref[dy:dy + H2, dx:dx + W2, :]
            else:
                patch = pad_ref[pl.ds(dy, H2, stride=stride),
                                pl.ds(dx, W2, stride=stride), :]
            cols.append(patch.reshape(H2 * W2, P))
    pm = jnp.concatenate(cols, axis=-1)                # (H2*W2, 9*P)
    y = jnp.dot(pm, w2_ref[...], preferred_element_type=jnp.float32)
    y = jnp.maximum(y * s2_ref[...] + b2_ref[...], 0.0)
    o_ref[...] = y.reshape(1, H2, W2, P).astype(o_ref.dtype)


def _fused_conv1_conv2(x, w1, s1, b1, w2r, s2, b2, *, stride, cdt):
    N, H, W, Cin = x.shape
    P = w1.shape[1]
    H2 = (H - 1) // stride + 1
    W2 = (W - 1) // stride + 1
    Hp = H + 2 + (stride - 1)
    Wp = W + 2 + (stride - 1)
    kern = functools.partial(_c1c2_kernel, stride=stride, cdt=cdt)
    return pl.pallas_call(
        kern,
        out_shape=jax.ShapeDtypeStruct((N, H2, W2, P), x.dtype),
        grid=(N,),
        in_specs=[
            pl.BlockSpec((1, H, W, Cin), lambda n: (n, 0, 0, 0)),
            pl.BlockSpec((Cin, P), lambda n: (0, 0)),
            pl.BlockSpec((1, P), lambda n: (0, 0)),
            pl.BlockSpec((1, P), lambda n: (0, 0)),
            pl.BlockSpec((9 * P, P), lambda n: (0, 0)),
            pl.BlockSpec((1, P), lambda n: (0, 0)),
            pl.BlockSpec((1, P), lambda n: (0, 0)),
        ],
        out_specs=pl.BlockSpec((1, H2, W2, P), lambda n: (n, 0, 0, 0)),
        scratch_shapes=[pltpu.VMEM((Hp, Wp, P), cdt)],
        compiler_params=pltpu.CompilerParams(
            dimension_semantics=("parallel",),
            vmem_limit_bytes=_VMEM_LIMIT),
    )(x, w1.astype(cdt), s1, b1, w2r.astype(cdt), s2, b2)


# ----------------------------------------------------------------------------
# Kernel B: conv3 (1x1) + BN3 + residual (identity or fused downsample) + ReLU
# ----------------------------------------------------------------------------
def _c3_res_kernel(y_ref, w3_ref, s3_ref, b3_ref, res_ref, o_ref, *, cdt):
    y = jnp.dot(y_ref[...].astype(cdt), w3_ref[...],
                preferred_element_type=jnp.float32)
    y = y * s3_ref[...] + b3_ref[...]
    y = y + res_ref[...].astype(jnp.float32)
    o_ref[...] = jnp.maximum(y, 0.0).astype(o_ref.dtype)


def _c3_down_kernel(y_ref, w3_ref, s3_ref, b3_ref, xr_ref, wd_ref, sd_ref,
                    bd_ref, o_ref, *, cdt):
    y = jnp.dot(y_ref[...].astype(cdt), w3_ref[...],
                preferred_element_type=jnp.float32)
    y = y * s3_ref[...] + b3_ref[...]
    r = jnp.dot(xr_ref[...].astype(cdt), wd_ref[...],
                preferred_element_type=jnp.float32)
    r = r * sd_ref[...] + bd_ref[...]
    o_ref[...] = jnp.maximum(y + r, 0.0).astype(o_ref.dtype)


def _conv3_bn_residual(y2d, w3, s3, b3, *, res2d=None, xs2d=None, wd=None,
                       sd=None, bd=None, tm=256, cdt=jnp.float32,
                       out_dtype=jnp.float32):
    M, P = y2d.shape
    Cout = w3.shape[1]
    grid_m = pl.cdiv(M, tm)
    Mp = grid_m * tm
    if Mp != M:
        rows = ((0, Mp - M), (0, 0))
        y2d = jnp.pad(y2d, rows)
        if res2d is not None:
            res2d = jnp.pad(res2d, rows)
        if xs2d is not None:
            xs2d = jnp.pad(xs2d, rows)

    cparams = pltpu.CompilerParams(dimension_semantics=("parallel",),
                                   vmem_limit_bytes=_VMEM_LIMIT)

    def row(c):
        return pl.BlockSpec((tm, c), lambda i: (i, 0))

    def full(r, c):
        return pl.BlockSpec((r, c), lambda i: (0, 0))

    if xs2d is not None:
        Cin = xs2d.shape[1]
        out = pl.pallas_call(
            functools.partial(_c3_down_kernel, cdt=cdt),
            out_shape=jax.ShapeDtypeStruct((Mp, Cout), out_dtype),
            grid=(grid_m,),
            in_specs=[row(P), full(P, Cout), full(1, Cout), full(1, Cout),
                      row(Cin), full(Cin, Cout), full(1, Cout), full(1, Cout)],
            out_specs=row(Cout),
            compiler_params=cparams,
        )(y2d, w3.astype(cdt), s3, b3, xs2d, wd.astype(cdt), sd, bd)
    else:
        out = pl.pallas_call(
            functools.partial(_c3_res_kernel, cdt=cdt),
            out_shape=jax.ShapeDtypeStruct((Mp, Cout), out_dtype),
            grid=(grid_m,),
            in_specs=[row(P), full(P, Cout), full(1, Cout), full(1, Cout),
                      row(Cout)],
            out_specs=row(Cout),
            compiler_params=cparams,
        )(y2d, w3.astype(cdt), s3, b3, res2d)
    return out[:M] if Mp != M else out


# ----------------------------------------------------------------------------
# Bottleneck forward
# ----------------------------------------------------------------------------
def _fold_bn(gamma, beta, mean, var, eps=1e-5):
    scale = gamma / jnp.sqrt(var + eps)
    bias = beta - mean * scale
    return scale[None, :], bias[None, :]


@functools.partial(jax.jit,
                   static_argnames=("stride", "downsampling", "tm",
                                    "compute_dtype"))
def bottleneck_forward(x_nchw, params, *, stride=1, downsampling=False,
                       tm=256, compute_dtype=jnp.float32):
    cdt = compute_dtype
    x = jnp.transpose(x_nchw, (0, 2, 3, 1))   # NCHW -> NHWC (block boundary only)
    N, H, W, Cin = x.shape
    P = params["w1"].shape[1]
    Cout = params["w3"].shape[1]

    s1, b1 = _fold_bn(*params["bn1"])
    s2, b2 = _fold_bn(*params["bn2"])
    s3, b3 = _fold_bn(*params["bn3"])

    # (3,3,P,P) HWIO -> (9*P, P), column order (dy, dx, cin) matching the kernel.
    w2r = params["w2"].reshape(9 * P, P)

    # Stage 1: fused conv1 + conv2 (out1 never leaves VMEM; stride in-kernel).
    out2 = _fused_conv1_conv2(x, params["w1"], s1, b1, w2r, s2, b2,
                              stride=stride, cdt=cdt)
    _, H2, W2, _ = out2.shape
    M2 = N * H2 * W2
    y2d = out2.reshape(M2, P)

    # Stage 2: conv3 + BN3 + residual + ReLU, tiled over rows (parallel grid).
    if downsampling:
        xs = x[:, ::stride, ::stride, :] if stride > 1 else x
        sd, bd = _fold_bn(*params["bnd"])
        out = _conv3_bn_residual(y2d, params["w3"], s3, b3,
                                 xs2d=xs.reshape(M2, Cin), wd=params["wd"],
                                 sd=sd, bd=bd, tm=tm, cdt=cdt,
                                 out_dtype=x.dtype)
    else:
        # Identity residual (standard ResNet: requires Cin == Cout, stride == 1).
        out = _conv3_bn_residual(y2d, params["w3"], s3, b3,
                                 res2d=x.reshape(M2, Cin), tm=tm, cdt=cdt,
                                 out_dtype=x.dtype)

    out = out.reshape(N, H2, W2, Cout)
    return jnp.transpose(out, (0, 3, 1, 2))   # NHWC -> NCHW


# ----------------------------------------------------------------------------
# Pure-JAX reference (lax conv) for verification
# ----------------------------------------------------------------------------
def _ref_forward(x_nchw, params, *, stride, downsampling):
    x = jnp.transpose(x_nchw, (0, 2, 3, 1))

    def conv(x, w_hwio, s, pad):
        return jax.lax.conv_general_dilated(
            x, w_hwio, (s, s), ((pad, pad), (pad, pad)),
            dimension_numbers=("NHWC", "HWIO", "NHWC"))

    def bn(y, stats):
        gamma, beta, mean, var = stats
        return (y - mean) / jnp.sqrt(var + 1e-5) * gamma + beta

    w1 = params["w1"][None, None]
    w3 = params["w3"][None, None]
    out = jax.nn.relu(bn(conv(x, w1, 1, 0), params["bn1"]))
    out = jax.nn.relu(bn(conv(out, params["w2"], stride, 1), params["bn2"]))
    out = bn(conv(out, w3, 1, 0), params["bn3"])
    if downsampling:
        wd = params["wd"][None, None]
        res = bn(conv(x, wd, stride, 0), params["bnd"])
    else:
        res = x
    out = jax.nn.relu(out + res)
    return jnp.transpose(out, (0, 3, 1, 2))


# ----------------------------------------------------------------------------
# Main
# ----------------------------------------------------------------------------
if __name__ == "__main__":
    key = jax.random.PRNGKey(0)
    ks = jax.random.split(key, 24)

    def bn_stats(k, c):
        k1, k2, k3, k4 = jax.random.split(k, 4)
        gamma = 0.5 + jax.random.uniform(k1, (c,), jnp.float32)
        beta = 0.1 * jax.random.normal(k2, (c,), jnp.float32)
        mean = 0.1 * jax.random.normal(k3, (c,), jnp.float32)
        var = 0.5 + jax.random.uniform(k4, (c,), jnp.float32)
        return (gamma, beta, mean, var)

    N, H, W = 2, 16, 16
    expansion = 4

    # --- Test 1: Bottleneck(in_places=16, places=8, stride=1, downsampling=True)
    in_places, places, stride = 16, 8, 1
    cout = places * expansion
    params = {
        "w1": 0.1 * jax.random.normal(ks[0], (in_places, places), jnp.float32),
        "bn1": bn_stats(ks[1], places),
        "w2": 0.1 * jax.random.normal(ks[2], (3, 3, places, places), jnp.float32),
        "bn2": bn_stats(ks[3], places),
        "w3": 0.1 * jax.random.normal(ks[4], (places, cout), jnp.float32),
        "bn3": bn_stats(ks[5], cout),
        "wd": 0.1 * jax.random.normal(ks[6], (in_places, cout), jnp.float32),
        "bnd": bn_stats(ks[7], cout),
    }
    x = jax.random.normal(ks[8], (N, in_places, H, W), jnp.float32)  # NCHW

    out = bottleneck_forward(x, params, stride=stride, downsampling=True)
    out = jax.block_until_ready(out)
    ref = _ref_forward(x, params, stride=stride, downsampling=True)
    assert out.shape == (N, cout, H // stride, W // stride)
    err = float(jnp.max(jnp.abs(out - ref)))
    assert jnp.allclose(out, ref, atol=2e-4, rtol=2e-4), err

    # --- Test 2: identity-residual Bottleneck(in_places=32, places=8, stride=1)
    in_places2, places2 = 32, 8
    cout2 = places2 * expansion      # == in_places2, identity shortcut
    params2 = {
        "w1": 0.1 * jax.random.normal(ks[9], (in_places2, places2), jnp.float32),
        "bn1": bn_stats(ks[10], places2),
        "w2": 0.1 * jax.random.normal(ks[11], (3, 3, places2, places2), jnp.float32),
        "bn2": bn_stats(ks[12], places2),
        "w3": 0.1 * jax.random.normal(ks[13], (places2, cout2), jnp.float32),
        "bn3": bn_stats(ks[14], cout2),
    }
    x2 = jax.random.normal(ks[15], (N, in_places2, H, W), jnp.float32)

    out2 = bottleneck_forward(x2, params2, stride=1, downsampling=False)
    out2 = jax.block_until_ready(out2)
    ref2 = _ref_forward(x2, params2, stride=1, downsampling=False)
    assert out2.shape == (N, cout2, H, W)
    err2 = float(jnp.max(jnp.abs(out2 - ref2)))
    assert jnp.allclose(out2, ref2, atol=2e-4, rtol=2e-4), err2

    print("KERNEL_OK")
</pallas_src>

<mosaic_0001>
module attributes {stable_mosaic.version = 11 : i64} {
  func.func @_c3_down_kernel(%arg0: i32, %arg1: memref<256x8xf32, #tpu.memory_space<vmem>>, %arg2: memref<8x32xf32, #tpu.memory_space<vmem>>, %arg3: memref<1x32xf32, #tpu.memory_space<vmem>>, %arg4: memref<1x32xf32, #tpu.memory_space<vmem>>, %arg5: memref<256x16xf32, #tpu.memory_space<vmem>>, %arg6: memref<16x32xf32, #tpu.memory_space<vmem>>, %arg7: memref<1x32xf32, #tpu.memory_space<vmem>>, %arg8: memref<1x32xf32, #tpu.memory_space<vmem>>, %arg9: memref<256x32xf32, #tpu.memory_space<vmem>>) attributes {dimension_semantics = [#tpu.dimension_semantics<parallel>], iteration_bounds = array<i64: 2>, scalar_prefetch = 0 : i64, scratch_operands = 0 : i64, tpu.core_type = #tpu.core_type<tc>, window_params = [{transform_indices = @transform_0, window_bounds = array<i64: 256, 8>}, {pipeline_mode = #tpu.pipeline_mode<synchronous>, transform_indices = @transform_1, window_bounds = array<i64: 8, 32>}, {pipeline_mode = #tpu.pipeline_mode<synchronous>, transform_indices = @transform_2, window_bounds = array<i64: 1, 32>}, {pipeline_mode = #tpu.pipeline_mode<synchronous>, transform_indices = @transform_3, window_bounds = array<i64: 1, 32>}, {transform_indices = @transform_4, window_bounds = array<i64: 256, 16>}, {pipeline_mode = #tpu.pipeline_mode<synchronous>, transform_indices = @transform_5, window_bounds = array<i64: 16, 32>}, {pipeline_mode = #tpu.pipeline_mode<synchronous>, transform_indices = @transform_6, window_bounds = array<i64: 1, 32>}, {pipeline_mode = #tpu.pipeline_mode<synchronous>, transform_indices = @transform_7, window_bounds = array<i64: 1, 32>}, {transform_indices = @transform_8, window_bounds = array<i64: 256, 32>}]} {
    %c0 = arith.constant 0 : index
    %c0_0 = arith.constant 0 : index
    %0 = vector.load %arg1[%c0, %c0_0] : memref<256x8xf32, #tpu.memory_space<vmem>>, vector<256x8xf32>
    %c0_1 = arith.constant 0 : index
    %c0_2 = arith.constant 0 : index
    %1 = vector.load %arg2[%c0_1, %c0_2] : memref<8x32xf32, #tpu.memory_space<vmem>>, vector<8x32xf32>
    %cst = arith.constant dense<0.000000e+00> : vector<256x32xf32>
    %2 = tpu.matmul %0, %1, %cst {dimension_numbers = #tpu.dot_dimension_numbers<[1], [0], [0], [1], [0, 0, 1, 1], [], []>} : vector<256x8xf32>, vector<8x32xf32>, vector<256x32xf32> -> vector<256x32xf32>
    %c0_3 = arith.constant 0 : index
    %c0_4 = arith.constant 0 : index
    %3 = vector.load %arg3[%c0_3, %c0_4] : memref<1x32xf32, #tpu.memory_space<vmem>>, vector<1x32xf32>
    %4 = vector.broadcast %3 : vector<1x32xf32> to vector<256x32xf32>
    %5 = arith.mulf %2, %4 : vector<256x32xf32>
    %c0_5 = arith.constant 0 : index
    %c0_6 = arith.constant 0 : index
    %6 = vector.load %arg4[%c0_5, %c0_6] : memref<1x32xf32, #tpu.memory_space<vmem>>, vector<1x32xf32>
    %7 = vector.broadcast %6 : vector<1x32xf32> to vector<256x32xf32>
    %8 = arith.addf %5, %7 : vector<256x32xf32>
    %c0_7 = arith.constant 0 : index
    %c0_8 = arith.constant 0 : index
    %9 = vector.load %arg5[%c0_7, %c0_8] : memref<256x16xf32, #tpu.memory_space<vmem>>, vector<256x16xf32>
    %c0_9 = arith.constant 0 : index
    %c0_10 = arith.constant 0 : index
    %10 = vector.load %arg6[%c0_9, %c0_10] : memref<16x32xf32, #tpu.memory_space<vmem>>, vector<16x32xf32>
    %cst_11 = arith.constant dense<0.000000e+00> : vector<256x32xf32>
    %11 = tpu.matmul %9, %10, %cst_11 {dimension_numbers = #tpu.dot_dimension_numbers<[1], [0], [0], [1], [0, 0, 1, 1], [], []>} : vector<256x16xf32>, vector<16x32xf32>, vector<256x32xf32> -> vector<256x32xf32>
    %c0_12 = arith.constant 0 : index
    %c0_13 = arith.constant 0 : index
    %12 = vector.load %arg7[%c0_12, %c0_13] : memref<1x32xf32, #tpu.memory_space<vmem>>, vector<1x32xf32>
    %13 = vector.broadcast %12 : vector<1x32xf32> to vector<256x32xf32>
    %14 = arith.mulf %11, %13 : vector<256x32xf32>
    %c0_14 = arith.constant 0 : index
    %c0_15 = arith.constant 0 : index
    %15 = vector.load %arg8[%c0_14, %c0_15] : memref<1x32xf32, #tpu.memory_space<vmem>>, vector<1x32xf32>
    %16 = vector.broadcast %15 : vector<1x32xf32> to vector<256x32xf32>
    %17 = arith.addf %14, %16 : vector<256x32xf32>
    %18 = arith.addf %8, %17 : vector<256x32xf32>
    %cst_16 = arith.constant 0.000000e+00 : f32
    %19 = vector.broadcast %cst_16 : f32 to vector<256x32xf32>
    %20 = arith.maximumf %18, %19 : vector<256x32xf32>
    %c0_17 = arith.constant 0 : index
    %c0_18 = arith.constant 0 : index
    %21 = vector.load %arg9[%c0_17, %c0_18] : memref<256x32xf32, #tpu.memory_space<vmem>>, vector<256x32xf32>
    tpu.vector_store %arg9[%c0_17, %c0_18], %20 {strides = array<i32>} : memref<256x32xf32, #tpu.memory_space<vmem>>, vector<256x32xf32>,
    return
  }
  func.func @transform_0(%arg0: i32) -> (i32, i32) {
    %c0_i32 = arith.constant 0 : i32
    %c0_i32_0 = arith.constant 0 : i32
    return %arg0, %c0_i32 : i32, i32
  }
  func.func @transform_1(%arg0: i32) -> (i32, i32) {
    %c0_i32 = arith.constant 0 : i32
    %c0_i32_0 = arith.constant 0 : i32
    %c0_i32_1 = arith.constant 0 : i32
    return %c0_i32, %c0_i32_0 : i32, i32
  }
  func.func @transform_2(%arg0: i32) -> (i32, i32) {
    %c0_i32 = arith.constant 0 : i32
    %c0_i32_0 = arith.constant 0 : i32
    %c0_i32_1 = arith.constant 0 : i32
    return %c0_i32, %c0_i32_0 : i32, i32
  }
  func.func @transform_3(%arg0: i32) -> (i32, i32) {
    %c0_i32 = arith.constant 0 : i32
    %c0_i32_0 = arith.constant 0 : i32
    %c0_i32_1 = arith.constant 0 : i32
    return %c0_i32, %c0_i32_0 : i32, i32
  }
  func.func @transform_4(%arg0: i32) -> (i32, i32) {
    %c0_i32 = arith.constant 0 : i32
    %c0_i32_0 = arith.constant 0 : i32
    return %arg0, %c0_i32 : i32, i32
  }
  func.func @transform_5(%arg0: i32) -> (i32, i32) {
    %c0_i32 = arith.constant 0 : i32
    %c0_i32_0 = arith.constant 0 : i32
    %c0_i32_1 = arith.constant 0 : i32
    return %c0_i32, %c0_i32_0 : i32, i32
  }
  func.func @transform_6(%arg0: i32) -> (i32, i32) {
    %c0_i32 = arith.constant 0 : i32
    %c0_i32_0 = arith.constant 0 : i32
    %c0_i32_1 = arith.constant 0 : i32
    return %c0_i32, %c0_i32_0 : i32, i32
  }
  func.func @transform_7(%arg0: i32) -> (i32, i32) {
    %c0_i32 = arith.constant 0 : i32
    %c0_i32_0 = arith.constant 0 : i32
    %c0_i32_1 = arith.constant 0 : i32
    return %c0_i32, %c0_i32_0 : i32, i32
  }
  func.func @transform_8(%arg0: i32) -> (i32, i32) {
    %c0_i32 = arith.constant 0 : i32
    %c0_i32_0 = arith.constant 0 : i32
    return %arg0, %c0_i32 : i32, i32
  }
}

module attributes {stable_mosaic.version = 11 : i64} {
  func.func @_c1c2_kernel(%arg0: i32, %arg1: memref<1x16x16x16xf32, #tpu.memory_space<vmem>>, %arg2: memref<16x8xf32, #tpu.memory_space<vmem>>, %arg3: memref<1x8xf32, #tpu.memory_space<vmem>>, %arg4: memref<1x8xf32, #tpu.memory_space<vmem>>, %arg5: memref<72x8xf32, #tpu.memory_space<vmem>>, %arg6: memref<1x8xf32, #tpu.memory_space<vmem>>, %arg7: memref<1x8xf32, #tpu.memory_space<vmem>>, %arg8: memref<1x16x16x8xf32, #tpu.memory_space<vmem>>, %arg9: memref<18x18x8xf32, #tpu.memory_space<vmem>>) attributes {dimension_semantics = [#tpu.dimension_semantics<parallel>], iteration_bounds = array<i64: 2>, scalar_prefetch = 0 : i64, scratch_operands = 1 : i64, tpu.core_type = #tpu.core_type<tc>, window_params = [{transform_indices = @transform_0, window_bounds = array<i64: 1, 16, 16, 16>}, {pipeline_mode = #tpu.pipeline_mode<synchronous>, transform_indices = @transform_1, window_bounds = array<i64: 16, 8>}, {pipeline_mode = #tpu.pipeline_mode<synchronous>, transform_indices = @transform_2, window_bounds = array<i64: 1, 8>}, {pipeline_mode = #tpu.pipeline_mode<synchronous>, transform_indices = @transform_3, window_bounds = array<i64: 1, 8>}, {pipeline_mode = #tpu.pipeline_mode<synchronous>, transform_indices = @transform_4, window_bounds = array<i64: 72, 8>}, {pipeline_mode = #tpu.pipeline_mode<synchronous>, transform_indices = @transform_5, window_bounds = array<i64: 1, 8>}, {pipeline_mode = #tpu.pipeline_mode<synchronous>, transform_indices = @transform_6, window_bounds = array<i64: 1, 8>}, {transform_indices = @transform_7, window_bounds = array<i64: 1, 16, 16, 8>}]} {
    %c0 = arith.constant 0 : index
    %c0_0 = arith.constant 0 : index
    %c0_1 = arith.constant 0 : index
    %c0_2 = arith.constant 0 : index
    %0 = vector.load %arg1[%c0, %c0_0, %c0_1, %c0_2] : memref<1x16x16x16xf32, #tpu.memory_space<vmem>>, vector<1x16x16x16xf32>
    %1 = vector.shape_cast %0 : vector<1x16x16x16xf32> to vector<16x16x16xf32>
    %2 = vector.shape_cast %1 : vector<16x16x16xf32> to vector<256x16xf32>
    %c0_3 = arith.constant 0 : index
    %c0_4 = arith.constant 0 : index
    %3 = vector.load %arg2[%c0_3, %c0_4] : memref<16x8xf32, #tpu.memory_space<vmem>>, vector<16x8xf32>
    %cst = arith.constant dense<0.000000e+00> : vector<256x8xf32>
    %4 = tpu.matmul %2, %3, %cst {dimension_numbers = #tpu.dot_dimension_numbers<[1], [0], [0], [1], [0, 0, 1, 1], [], []>} : vector<256x16xf32>, vector<16x8xf32>, vector<256x8xf32> -> vector<256x8xf32>
    %c0_5 = arith.constant 0 : index
    %c0_6 = arith.constant 0 : index
    %5 = vector.load %arg3[%c0_5, %c0_6] : memref<1x8xf32, #tpu.memory_space<vmem>>, vector<1x8xf32>
    %6 = vector.broadcast %5 : vector<1x8xf32> to vector<256x8xf32>
    %7 = arith.mulf %4, %6 : vector<256x8xf32>
    %c0_7 = arith.constant 0 : index
    %c0_8 = arith.constant 0 : index
    %8 = vector.load %arg4[%c0_7, %c0_8] : memref<1x8xf32, #tpu.memory_space<vmem>>, vector<1x8xf32>
    %9 = vector.broadcast %8 : vector<1x8xf32> to vector<256x8xf32>
    %10 = arith.addf %7, %9 : vector<256x8xf32>
    %cst_9 = arith.constant 0.000000e+00 : f32
    %11 = vector.broadcast %cst_9 : f32 to vector<256x8xf32>
    %12 = arith.maximumf %10, %11 : vector<256x8xf32>
    %13 = vector.shape_cast %12 : vector<256x8xf32> to vector<16x16x8xf32>
    %cst_10 = arith.constant 0.000000e+00 : f32
    %14 = vector.broadcast %cst_10 : f32 to vector<1x16x8xf32>
    %cst_11 = arith.constant 0.000000e+00 : f32
    %15 = vector.broadcast %cst_11 : f32 to vector<1x16x8xf32>
    %16 = tpu.concatenate %14, %13, %15 in 0 : vector<1x16x8xf32>, vector<16x16x8xf32>, vector<1x16x8xf32> -> vector<18x16x8xf32>
    %cst_12 = arith.constant 0.000000e+00 : f32
    %17 = vector.broadcast %cst_12 : f32 to vector<18x1x8xf32>
    %cst_13 = arith.constant 0.000000e+00 : f32
    %18 = vector.broadcast %cst_13 : f32 to vector<18x1x8xf32>
    %19 = tpu.concatenate %17, %16, %18 in 1 : vector<18x1x8xf32>, vector<18x16x8xf32>, vector<18x1x8xf32> -> vector<18x18x8xf32>
    %c0_14 = arith.constant 0 : index
    %c0_15 = arith.constant 0 : index
    %c0_16 = arith.constant 0 : index
    %20 = vector.load %arg9[%c0_14, %c0_15, %c0_16] : memref<18x18x8xf32, #tpu.memory_space<vmem>>, vector<18x18x8xf32>
    tpu.vector_store %arg9[%c0_14, %c0_15, %c0_16], %19 {strides = array<i32>} : memref<18x18x8xf32, #tpu.memory_space<vmem>>, vector<18x18x8xf32>,
    %c0_17 = arith.constant 0 : index
    %c0_18 = arith.constant 0 : index
    %c0_19 = arith.constant 0 : index
    %21 = vector.load %arg9[%c0_17, %c0_18, %c0_19] : memref<18x18x8xf32, #tpu.memory_space<vmem>>, vector<16x16x8xf32>
    %22 = vector.shape_cast %21 : vector<16x16x8xf32> to vector<256x8xf32>
    %c0_20 = arith.constant 0 : index
    %c1 = arith.constant 1 : index
    %c0_21 = arith.constant 0 : index
    %23 = vector.load %arg9[%c0_20, %c1, %c0_21] : memref<18x18x8xf32, #tpu.memory_space<vmem>>, vector<16x16x8xf32>
    %24 = vector.shape_cast %23 : vector<16x16x8xf32> to vector<256x8xf32>
    %c0_22 = arith.constant 0 : index
    %c2 = arith.constant 2 : index
    %c0_23 = arith.constant 0 : index
    %25 = vector.load %arg9[%c0_22, %c2, %c0_23] : memref<18x18x8xf32, #tpu.memory_space<vmem>>, vector<16x16x8xf32>
    %26 = vector.shape_cast %25 : vector<16x16x8xf32> to vector<256x8xf32>
    %c1_24 = arith.constant 1 : index
    %c0_25 = arith.constant 0 : index
    %c0_26 = arith.constant 0 : index
    %27 = vector.load %arg9[%c1_24, %c0_25, %c0_26] : memref<18x18x8xf32, #tpu.memory_space<vmem>>, vector<16x16x8xf32>
    %28 = vector.shape_cast %27 : vector<16x16x8xf32> to vector<256x8xf32>
    %c1_27 = arith.constant 1 : index
    %c1_28 = arith.constant 1 : index
    %c0_29 = arith.constant 0 : index
    %29 = vector.load %arg9[%c1_27, %c1_28, %c0_29] : memref<18x18x8xf32, #tpu.memory_space<vmem>>, vector<16x16x8xf32>
    %30 = vector.shape_cast %29 : vector<16x16x8xf32> to vector<256x8xf32>
    %c1_30 = arith.constant 1 : index
    %c2_31 = arith.constant 2 : index
    %c0_32 = arith.constant 0 : index
    %31 = vector.load %arg9[%c1_30, %c2_31, %c0_32] : memref<18x18x8xf32, #tpu.memory_space<vmem>>, vector<16x16x8xf32>
    %32 = vector.shape_cast %31 : vector<16x16x8xf32> to vector<256x8xf32>
    %c2_33 = arith.constant 2 : index
    %c0_34 = arith.constant 0 : index
    %c0_35 = arith.constant 0 : index
    %33 = vector.load %arg9[%c2_33, %c0_34, %c0_35] : memref<18x18x8xf32, #tpu.memory_space<vmem>>, vector<16x16x8xf32>
    %34 = vector.shape_cast %33 : vector<16x16x8xf32> to vector<256x8xf32>
    %c2_36 = arith.constant 2 : index
    %c1_37 = arith.constant 1 : index
    %c0_38 = arith.constant 0 : index
    %35 = vector.load %arg9[%c2_36, %c1_37, %c0_38] : memref<18x18x8xf32, #tpu.memory_space<vmem>>, vector<16x16x8xf32>
    %36 = vector.shape_cast %35 : vector<16x16x8xf32> to vector<256x8xf32>
    %c2_39 = arith.constant 2 : index
    %c2_40 = arith.constant 2 : index
    %c0_41 = arith.constant 0 : index
    %37 = vector.load %arg9[%c2_39, %c2_40, %c0_41] : memref<18x18x8xf32, #tpu.memory_space<vmem>>, vector<16x16x8xf32>
    %38 = vector.shape_cast %37 : vector<16x16x8xf32> to vector<256x8xf32>
    %39 = tpu.concatenate %22, %24, %26, %28, %30, %32, %34, %36, %38 in 1 : vector<256x8xf32>, vector<256x8xf32>, vector<256x8xf32>, vector<256x8xf32>, vector<256x8xf32>, vector<256x8xf32>, vector<256x8xf32>, vector<256x8xf32>, vector<256x8xf32> -> vector<256x72xf32>
    %c0_42 = arith.constant 0 : index
    %c0_43 = arith.constant 0 : index
    %40 = vector.load %arg5[%c0_42, %c0_43] : memref<72x8xf32, #tpu.memory_space<vmem>>, vector<72x8xf32>
    %cst_44 = arith.constant dense<0.000000e+00> : vector<256x8xf32>
    %41 = tpu.matmul %39, %40, %cst_44 {dimension_numbers = #tpu.dot_dimension_numbers<[1], [0], [0], [1], [0, 0, 1, 1], [], []>} : vector<256x72xf32>, vector<72x8xf32>, vector<256x8xf32> -> vector<256x8xf32>
    %c0_45 = arith.constant 0 : index
    %c0_46 = arith.constant 0 : index
    %42 = vector.load %arg6[%c0_45, %c0_46] : memref<1x8xf32, #tpu.memory_space<vmem>>, vector<1x8xf32>
    %43 = vector.broadcast %42 : vector<1x8xf32> to vector<256x8xf32>
    %44 = arith.mulf %41, %43 : vector<256x8xf32>
    %c0_47 = arith.constant 0 : index
    %c0_48 = arith.constant 0 : index
    %45 = vector.load %arg7[%c0_47, %c0_48] : memref<1x8xf32, #tpu.memory_space<vmem>>, vector<1x8xf32>
    %46 = vector.broadcast %45 : vector<1x8xf32> to vector<256x8xf32>
    %47 = arith.addf %44, %46 : vector<256x8xf32>
    %cst_49 = arith.constant 0.000000e+00 : f32
    %48 = vector.broadcast %cst_49 : f32 to vector<256x8xf32>
    %49 = arith.maximumf %47, %48 : vector<256x8xf32>
    %50 = vector.shape_cast %49 : vector<256x8xf32> to vector<1x16x16x8xf32>
    %c0_50 = arith.constant 0 : index
    %c0_51 = arith.constant 0 : index
    %c0_52 = arith.constant 0 : index
    %c0_53 = arith.constant 0 : index
    %51 = vector.load %arg8[%c0_50, %c0_51, %c0_52, %c0_53] : memref<1x16x16x8xf32, #tpu.memory_space<vmem>>, vector<1x16x16x8xf32>
    tpu.vector_store %arg8[%c0_50, %c0_51, %c0_52, %c0_53], %50 {strides = array<i32>} : memref<1x16x16x8xf32, #tpu.memory_space<vmem>>, vector<1x16x16x8xf32>,
    return
  }
  func.func @transform_0(%arg0: i32) -> (i32, i32, i32, i32) {
    %c0_i32 = arith.constant 0 : i32
    %c0_i32_0 = arith.constant 0 : i32
    %c0_i32_1 = arith.constant 0 : i32
    %c0_i32_2 = arith.constant 0 : i32
    return %arg0, %c0_i32, %c0_i32_0, %c0_i32_1 : i32, i32, i32, i32
  }
  func.func @transform_1(%arg0: i32) -> (i32, i32) {
    %c0_i32 = arith.constant 0 : i32
    %c0_i32_0 = arith.constant 0 : i32
    %c0_i32_1 = arith.constant 0 : i32
    return %c0_i32, %c0_i32_0 : i32, i32
  }
  func.func @transform_2(%arg0: i32) -> (i32, i32) {
    %c0_i32 = arith.constant 0 : i32
    %c0_i32_0 = arith.constant 0 : i32
    %c0_i32_1 = arith.constant 0 : i32
    return %c0_i32, %c0_i32_0 : i32, i32
  }
  func.func @transform_3(%arg0: i32) -> (i32, i32) {
    %c0_i32 = arith.constant 0 : i32
    %c0_i32_0 = arith.constant 0 : i32
    %c0_i32_1 = arith.constant 0 : i32
    return %c0_i32, %c0_i32_0 : i32, i32
  }
  func.func @transform_4(%arg0: i32) -> (i32, i32) {
    %c0_i32 = arith.constant 0 : i32
    %c0_i32_0 = arith.constant 0 : i32
    %c0_i32_1 = arith.constant 0 : i32
    return %c0_i32, %c0_i32_0 : i32, i32
  }
  func.func @transform_5(%arg0: i32) -> (i32, i32) {
    %c0_i32 = arith.constant 0 : i32
    %c0_i32_0 = arith.constant 0 : i32
    %c0_i32_1 = arith.constant 0 : i32
    return %c0_i32, %c0_i32_0 : i32, i32
  }
  func.func @transform_6(%arg0: i32) -> (i32, i32) {
    %c0_i32 = arith.constant 0 : i32
    %c0_i32_0 = arith.constant 0 : i32
    %c0_i32_1 = arith.constant 0 : i32
    return %c0_i32, %c0_i32_0 : i32, i32
  }
  func.func @transform_7(%arg0: i32) -> (i32, i32, i32, i32) {
    %c0_i32 = arith.constant 0 : i32
    %c0_i32_0 = arith.constant 0 : i32
    %c0_i32_1 = arith.constant 0 : i32
    %c0_i32_2 = arith.constant 0 : i32
    return %arg0, %c0_i32, %c0_i32_0, %c0_i32_1 : i32, i32, i32, i32
  }
}

</mosaic_0001>

<llo_original>
// kernel: bottleneck_forward.3
$region0: #{bottleneck_forward.3}
  #allocation0 [shape = 'u32[]', space=smem, size = 0x4, offset = 0x4, fixed_abs, tag = 'smem constant byte address 0x4 - core index']
  #allocation1 [shape = 'u32[144,128]{1,0:T(1,128)}', space=vmem, size = 0x12000, scoped, tag = 'internal scratch']
  %s0 = inlined_call_operand.hbm [shape: f32[512,8], index: 0, kind: input, shape index: {}]
  %s1 = inlined_call_operand.hbm [shape: f32[8,32], index: 1, kind: input, shape index: {}]
  %s2 = inlined_call_operand.hbm [shape: f32[1,32], index: 2, kind: input, shape index: {}]
  %s3 = inlined_call_operand.hbm [shape: f32[1,32], index: 3, kind: input, shape index: {}]
  %s4 = inlined_call_operand.hbm [shape: f32[512,16], index: 4, kind: input, shape index: {}]
  %s5 = inlined_call_operand.hbm [shape: f32[16,32], index: 5, kind: input, shape index: {}]
  %s6 = inlined_call_operand.hbm [shape: f32[1,32], index: 6, kind: input, shape index: {}]
  %s7 = inlined_call_operand.hbm [shape: f32[1,32], index: 7, kind: input, shape index: {}]
  %s8 = inlined_call_operand.hbm [shape: f32[512,32], index: 8, kind: output, shape index: {}]
  %s9 = sld [smem:[#allocation0]]
  $region97: #{bottleneck_forward.3} parent=0
    _
  %s11 = ssub.s32 1, %s9
  %s12 = scalar_select 0, %s11, %s9
  $region1: #{bottleneck_forward.3} parent=0
    #allocation2 [shape = 'u8[262144]{0}', space=vmem, size = 0x40000, scoped, tag = 'input window, operand 0']
    #allocation3 [shape = 's32[2]{0}', space=sflag, size = 0x8, scoped, tag = 'scoped memory for bottleneck_forward.3']
    #allocation4 [shape = 's32[2]{0}', space=sflag, size = 0x8, scoped, tag = 'scoped memory for bottleneck_forward.3']
    #allocation5 [shape = 'u8[4096]{0}', space=vmem, size = 0x1000, scoped, tag = 'input window, operand 1, single buffered']
    #allocation6 [shape = 's32[1]{0}', space=sflag, size = 0x4, scoped, tag = 'scoped memory for bottleneck_forward.3']
    #allocation7 [shape = 'u8[512]{0}', space=vmem, size = 0x400, scoped, tag = 'input window, operand 2, single buffered']
    #allocation8 [shape = 'u8[512]{0}', space=vmem, size = 0x400, scoped, tag = 'input window, operand 3, single buffered']
    #allocation9 [shape = 's32[1]{0}', space=sflag, size = 0x4, scoped, tag = 'scoped memory for bottleneck_forward.3']
    #allocation10 [shape = 'u8[262144]{0}', space=vmem, size = 0x40000, scoped, tag = 'input window, operand 4']
    #allocation11 [shape = 'u8[8192]{0}', space=vmem, size = 0x2000, scoped, tag = 'input window, operand 5, single buffered']
    #allocation12 [shape = 'u8[512]{0}', space=vmem, size = 0x400, scoped, tag = 'input window, operand 6, single buffered']
    #allocation13 [shape = 'u8[512]{0}', space=vmem, size = 0x400, scoped, tag = 'input window, operand 7, single buffered']
    #allocation14 [shape = 's32[1]{0}', space=sflag, size = 0x4, scoped, tag = 'scoped memory for bottleneck_forward.3']
    #allocation15 [shape = 'u8[262144]{0}', space=vmem, size = 0x40000, scoped, tag = 'output window, operand 0']
    %13 = vsyncpa [#allocation3], 0
    %s14 = scalar_lea.sflag [#allocation3], 1
    %15 = vsyncpa %s14, 0
    %16 = vsyncpa [#allocation6], 0
    %17 = vsyncpa [#allocation9], 0
    %18 = vsyncpa [#allocation14], 0
    %19 = vsyncpa [#allocation4], 0
    %s20 = scalar_lea.sflag [#allocation4], 1
    %21 = vsyncpa %s20, 0
    loop: start=0, step=1, limit=4
    $region2: #{bottleneck_forward.3} parent=1 // loop_pre_header
      _
    $region3: #{bottleneck_forward.3} parent=1 // loop_header
      %s23 = sphi 0, %s27
      %p24 = scmp.ge.s32.totalorder %s23, 4
      %s33 = sphi 0, %s35
      %s36 = sphi 0, %s33
      %s37 = sphi 0, %s36
      %s53 = sphi 0, %s37
      %s57 = sphi 0, %s57
      %s59 = sphi 0, %s57
      %s60 = sphi 0, %s59
      %s74 = sphi 0, %s60
      %s78 = sphi 0, %s78
      %s80 = sphi 0, %s78
      %s81 = sphi 0, %s80
      %s95 = sphi 0, %s81
      %s99 = sphi 0, %s99
      %s101 = sphi 0, %s99
      %s102 = sphi 0, %s101
      %s116 = sphi 0, %s102
      %s122 = sphi 0, %s124
      %s125 = sphi 0, %s122
      %s126 = sphi 0, %s125
      %s142 = sphi 0, %s126
      %s146 = sphi 0, %s146
      %s148 = sphi 0, %s146
      %s149 = sphi 0, %s148
      %s163 = sphi 0, %s149
      %s167 = sphi 0, %s167
      %s169 = sphi 0, %s167
      %s170 = sphi 0, %s169
      %s184 = sphi 0, %s170
      %s188 = sphi 0, %s188
      %s190 = sphi 0, %s188
      %s191 = sphi 0, %s190
      %s205 = sphi 0, %s191
      %s211 = sphi 0, %s213
      %s214 = sphi 0, %s211
      %s215 = sphi 0, %s214
      %s231 = sphi 0, %s215
    $region4: #{bottleneck_forward.3} parent=1 // loop_header_branch
      %26 = sbr.rel (%p24) target = $region8
    $region5: #{bottleneck_forward.3} parent=1 // loop_body
      %s28 = ssub.s32 %s23, 1
      %s29 = ssub.s32 %s23, 2
      %s30 = sadd.s32 %s23, 1
      %s31 = ssub.s32 %s23, %s30
      %p32 = scmp.eq.s32.totalorder %s31, 0
      %s34 = sadd.s32 %s33, 1
      %s35 = scalar_select %p32, %s33, %s34
      %p38 = pneg %p32
      %p39 = scmp.eq.s32.totalorder %s23, 1
      %p40 = por %p38, %p39
      %p41 = scmp.ne.s32.totalorder %s33, %s36
      %p42 = scmp.eq.s32.totalorder %s23, 0
      %p43 = por %p41, %p42
      %p44 = scmp.ne.s32.totalorder %s33, %s36
      %p45 = scmp.eq.s32.totalorder %s28, 1
      %p46 = por %p44, %p45
      %p47 = scmp.ne.s32.totalorder %s36, %s37
      %p48 = scmp.eq.s32.totalorder %s28, 0
      %p49 = por %p47, %p48
      %p50 = scmp.ne.s32.totalorder %s36, %s37
      %p51 = scmp.eq.s32.totalorder %s29, 1
      %p52 = por %p50, %p51
      %p54 = scmp.ne.s32.totalorder %s37, %s53
      %p55 = scmp.eq.s32.totalorder %s29, 0
      %p56 = por %p54, %p55
      %s58 = sadd.s32 %s57, 1
      %p61 = scmp.eq.s32.totalorder %s23, 1
      %p62 = scmp.ne.s32.totalorder %s57, %s59
      %p63 = scmp.eq.s32.totalorder %s23, 0
      %p64 = por %p62, %p63
      %p65 = scmp.ne.s32.totalorder %s57, %s59
      %p66 = scmp.eq.s32.totalorder %s28, 1
      %p67 = por %p65, %p66
      %p68 = scmp.ne.s32.totalorder %s59, %s60
      %p69 = scmp.eq.s32.totalorder %s28, 0
      %p70 = por %p68, %p69
      %p71 = scmp.ne.s32.totalorder %s59, %s60
      %p72 = scmp.eq.s32.totalorder %s29, 1
      %p73 = por %p71, %p72
      %p75 = scmp.ne.s32.totalorder %s60, %s74
      %p76 = scmp.eq.s32.totalorder %s29, 0
      %p77 = por %p75, %p76
      %s79 = sadd.s32 %s78, 1
      %p82 = scmp.eq.s32.totalorder %s23, 1
      %p83 = scmp.ne.s32.totalorder %s78, %s80
      %p84 = scmp.eq.s32.totalorder %s23, 0
      %p85 = por %p83, %p84
      %p86 = scmp.ne.s32.totalorder %s78, %s80
      %p87 = scmp.eq.s32.totalorder %s28, 1
      %p88 = por %p86, %p87
      %p89 = scmp.ne.s32.totalorder %s80, %s81
      %p90 = scmp.eq.s32.totalorder %s28, 0
      %p91 = por %p89, %p90
      %p92 = scmp.ne.s32.totalorder %s80, %s81
      %p93 = scmp.eq.s32.totalorder %s29, 1
      %p94 = por %p92, %p93
      %p96 = scmp.ne.s32.totalorder %s81, %s95
      %p97 = scmp.eq.s32.totalorder %s29, 0
      %p98 = por %p96, %p97
      %s100 = sadd.s32 %s99, 1
      %p103 = scmp.eq.s32.totalorder %s23, 1
      %p104 = scmp.ne.s32.totalorder %s99, %s101
      %p105 = scmp.eq.s32.totalorder %s23, 0
      %p106 = por %p104, %p105
      %p107 = scmp.ne.s32.totalorder %s99, %s101
      %p108 = scmp.eq.s32.totalorder %s28, 1
      %p109 = por %p107, %p108
      %p110 = scmp.ne.s32.totalorder %s101, %s102
      %p111 = scmp.eq.s32.totalorder %s28, 0
      %p112 = por %p110, %p111
      %p113 = scmp.ne.s32.totalorder %s101, %s102
      %p114 = scmp.eq.s32.totalorder %s29, 1
      %p115 = por %p113, %p114
      %p117 = scmp.ne.s32.totalorder %s102, %s116
      %p118 = scmp.eq.s32.totalorder %s29, 0
      %p119 = por %p117, %p118
      %s120 = ssub.s32 %s23, %s30
      %p121 = scmp.eq.s32.totalorder %s120, 0
      %s123 = sadd.s32 %s122, 1
      %s124 = scalar_select %p121, %s122, %s123
      %p127 = pneg %p121
      %p128 = scmp.eq.s32.totalorder %s23, 1
      %p129 = por %p127, %p128
      %p130 = scmp.ne.s32.totalorder %s122, %s125
      %p131 = scmp.eq.s32.totalorder %s23, 0
      %p132 = por %p130, %p131
      %p133 = scmp.ne.s32.totalorder %s122, %s125
      %p134 = scmp.eq.s32.totalorder %s28, 1
      %p135 = por %p133, %p134
      %p136 = scmp.ne.s32.totalorder %s125, %s126
      %p137 = scmp.eq.s32.totalorder %s28, 0
      %p138 = por %p136, %p137
      %p139 = scmp.ne.s32.totalorder %s125, %s126
      %p140 = scmp.eq.s32.totalorder %s29, 1
      %p141 = por %p139, %p140
      %p143 = scmp.ne.s32.totalorder %s126, %s142
      %p144 = scmp.eq.s32.totalorder %s29, 0
      %p145 = por %p143, %p144
      %s147 = sadd.s32 %s146, 1
      %p150 = scmp.eq.s32.totalorder %s23, 1
      %p151 = scmp.ne.s32.totalorder %s146, %s148
      %p152 = scmp.eq.s32.totalorder %s23, 0
      %p153 = por %p151, %p152
      %p154 = scmp.ne.s32.totalorder %s146, %s148
      %p155 = scmp.eq.s32.totalorder %s28, 1
      %p156 = por %p154, %p155
      %p157 = scmp.ne.s32.totalorder %s148, %s149
      %p158 = scmp.eq.s32.totalorder %s28, 0
      %p159 = por %p157, %p158
      %p160 = scmp.ne.s32.totalorder %s148, %s149
      %p161 = scmp.eq.s32.totalorder %s29, 1
      %p162 = por %p160, %p161
      %p164 = scmp.ne.s32.totalorder %s149, %s163
      %p165 = scmp.eq.s32.totalorder %s29, 0
      %p166 = por %p164, %p165
      %s168 = sadd.s32 %s167, 1
      %p171 = scmp.eq.s32.totalorder %s23, 1
      %p172 = scmp.ne.s32.totalorder %s167, %s169
      %p173 = scmp.eq.s32.totalorder %s23, 0
      %p174 = por %p172, %p173
      %p175 = scmp.ne.s32.totalorder %s167, %s169
      %p176 = scmp.eq.s32.totalorder %s28, 1
      %p177 = por %p175, %p176
      %p178 = scmp.ne.s32.totalorder %s169, %s170
      %p179 = scmp.eq.s32.totalorder %s28, 0
      %p180 = por %p178, %p179
      %p181 = scmp.ne.s32.totalorder %s169, %s170
      %p182 = scmp.eq.s32.totalorder %s29, 1
      %p183 = por %p181, %p182
      %p185 = scmp.ne.s32.totalorder %s170, %s184
      %p186 = scmp.eq.s32.totalorder %s29, 0
      %p187 = por %p185, %p186
      %s189 = sadd.s32 %s188, 1
      %p192 = scmp.eq.s32.totalorder %s23, 1
      %p193 = scmp.ne.s32.totalorder %s188, %s190
      %p194 = scmp.eq.s32.totalorder %s23, 0
      %p195 = por %p193, %p194
      %p196 = scmp.ne.s32.totalorder %s188, %s190
      %p197 = scmp.eq.s32.totalorder %s28, 1
      %p198 = por %p196, %p197
      %p199 = scmp.ne.s32.totalorder %s190, %s191
      %p200 = scmp.eq.s32.totalorder %s28, 0
      %p201 = por %p199, %p200
      %p202 = scmp.ne.s32.totalorder %s190, %s191
      %p203 = scmp.eq.s32.totalorder %s29, 1
      %p204 = por %p202, %p203
      %p206 = scmp.ne.s32.totalorder %s191, %s205
      %p207 = scmp.eq.s32.totalorder %s29, 0
      %p208 = por %p206, %p207
      %s209 = ssub.s32 %s23, %s30
      %p210 = scmp.eq.s32.totalorder %s209, 0
      %s212 = sadd.s32 %s211, 1
      %s213 = scalar_select %p210, %s211, %s212
      %p216 = pneg %p210
      %p217 = scmp.eq.s32.totalorder %s23, 1
      %p218 = por %p216, %p217
      %p219 = scmp.ne.s32.totalorder %s211, %s214
      %p220 = scmp.eq.s32.totalorder %s23, 0
      %p221 = por %p219, %p220
      %p222 = scmp.ne.s32.totalorder %s211, %s214
      %p223 = scmp.eq.s32.totalorder %s28, 1
      %p224 = por %p222, %p223
      %p225 = scmp.ne.s32.totalorder %s214, %s215
      %p226 = scmp.eq.s32.totalorder %s28, 0
      %p227 = por %p225, %p226
      %p228 = scmp.ne.s32.totalorder %s214, %s215
      %p229 = scmp.eq.s32.totalorder %s29, 1
      %p230 = por %p228, %p229
      %p232 = scmp.ne.s32.totalorder %s215, %s231
      %p233 = scmp.eq.s32.totalorder %s29, 0
      %p234 = por %p232, %p233
      %p235 = scmp.le.s32.totalorder 1, %s23
      %p236 = scmp.lt.s32.totalorder %s23, 3
      %p237 = pnand %p235, %p236
      %p238 = pneg %p237
      // Predicated region
      $region9: #{bottleneck_forward.3} parent=5 // pred_check
        _
      $region10: #{bottleneck_forward.3} parent=5 // pred_check_branch
        %240 = sbr.rel (%p237) target = $region12
      $region11: #{bottleneck_forward.3} parent=5 // pred_region
        %s241 = ssub.s32 %s23, 1
        // Predicated region
        $region13: #{bottleneck_forward.3} parent=11 // pred_check
          %p242 = pneg %p70
        $region14: #{bottleneck_forward.3} parent=11 // pred_check_branch
          %244 = sbr.rel (%p242) target = $region16
        $region15: #{bottleneck_forward.3} parent=11 // pred_region
          %s246 = ssub.s32 128, 128
          %247 = vsyncadd [#allocation6], %s246
          %s249 = sshll.u32 [#allocation5], 4
          %s250 = int_to_ptr.vmem [resolvable:$true] %s249
          %252 = dma.hbm_to_vmem [thread:$0]  %s1, 128, %s250, [#allocation6]
        $region16: #{bottleneck_forward.3} parent=11 // pred_fallthru
          _
        // Predicated region
        $region17: #{bottleneck_forward.3} parent=11 // pred_check
          %p253 = pneg %p91
        $region18: #{bottleneck_forward.3} parent=11 // pred_check_branch
          %255 = sbr.rel (%p253) target = $region20
        $region19: #{bottleneck_forward.3} parent=11 // pred_region
          %s257 = ssub.s32 16, 16
          %258 = vsyncadd [#allocation6], %s257
          %s260 = sshll.u32 [#allocation7], 4
          %s261 = int_to_ptr.vmem [resolvable:$true] %s260
          %263 = dma.hbm_to_vmem [thread:$0]  %s2, 16, %s261, [#allocation6]
        $region20: #{bottleneck_forward.3} parent=11 // pred_fallthru
          _
        // Predicated region
        $region21: #{bottleneck_forward.3} parent=11 // pred_check
          %p264 = pneg %p112
        $region22: #{bottleneck_forward.3} parent=11 // pred_check_branch
          %266 = sbr.rel (%p264) target = $region24
        $region23: #{bottleneck_forward.3} parent=11 // pred_region
          %s268 = ssub.s32 16, 16
          %269 = vsyncadd [#allocation9], %s268
          %s271 = sshll.u32 [#allocation8], 4
          %s272 = int_to_ptr.vmem [resolvable:$true] %s271
          %274 = dma.hbm_to_vmem [thread:$0]  %s3, 16, %s272, [#allocation9]
        $region24: #{bottleneck_forward.3} parent=11 // pred_fallthru
          _
        // Predicated region
        $region25: #{bottleneck_forward.3} parent=11 // pred_check
          %p275 = pneg %p159
        $region26: #{bottleneck_forward.3} parent=11 // pred_check_branch
          %277 = sbr.rel (%p275) target = $region28
        $region27: #{bottleneck_forward.3} parent=11 // pred_region
          %s279 = ssub.s32 256, 256
          %280 = vsyncadd [#allocation6], %s279
          %s281 = sshll.u32 [#allocation11], 4
          %s282 = int_to_ptr.vmem [resolvable:$true] %s281
          %287 = dma.hbm_to_vmem [thread:$0]  %s5, 256, %s282, [#allocation6], 128, 128, 8
        $region28: #{bottleneck_forward.3} parent=11 // pred_fallthru
          _
        // Predicated region
        $region29: #{bottleneck_forward.3} parent=11 // pred_check
          %p288 = pneg %p180
        $region30: #{bottleneck_forward.3} parent=11 // pred_check_branch
          %290 = sbr.rel (%p288) target = $region32
        $region31: #{bottleneck_forward.3} parent=11 // pred_region
          %s292 = ssub.s32 16, 16
          %293 = vsyncadd [#allocation9], %s292
          %s295 = sshll.u32 [#allocation12], 4
          %s296 = int_to_ptr.vmem [resolvable:$true] %s295
          %298 = dma.hbm_to_vmem [thread:$0]  %s6, 16, %s296, [#allocation9]
        $region32: #{bottleneck_forward.3} parent=11 // pred_fallthru
          _
        // Predicated region
        $region33: #{bottleneck_forward.3} parent=11 // pred_check
          %p299 = pneg %p201
        $region34: #{bottleneck_forward.3} parent=11 // pred_check_branch
          %301 = sbr.rel (%p299) target = $region36
        $region35: #{bottleneck_forward.3} parent=11 // pred_region
          %s303 = ssub.s32 16, 16
          %304 = vsyncadd [#allocation14], %s303
          %s306 = sshll.u32 [#allocation13], 4
          %s307 = int_to_ptr.vmem [resolvable:$true] %s306
          %309 = dma.hbm_to_vmem [thread:$0]  %s7, 16, %s307, [#allocation14]
        $region36: #{bottleneck_forward.3} parent=11 // pred_fallthru
          _
      $region12: #{bottleneck_forward.3} parent=5 // pred_fallthru
        _
      %p310 = scmp.lt.s32.totalorder %s23, 2
      // Predicated region
      $region37: #{bottleneck_forward.3} parent=5 // pred_check
        %p311 = pneg %p310
      $region38: #{bottleneck_forward.3} parent=5 // pred_check_branch
        %313 = sbr.rel (%p311) target = $region40
      $region39: #{bottleneck_forward.3} parent=5 // pred_region
        // Predicated region
        $region41: #{bottleneck_forward.3} parent=39 // pred_check
          %p314 = pneg %p43
        $region42: #{bottleneck_forward.3} parent=39 // pred_check_branch
          %316 = sbr.rel (%p314) target = $region44
        $region43: #{bottleneck_forward.3} parent=39 // pred_region
          %s317 = sand.u32 %s23, 1
          %s318 = scalar_lea.sflag [#allocation3], %s317
          %s319 = sand.u32 %s33, 1
          %s320 = smul.addr %s319, 256
          %s321 = scalar_lea.vmem [#allocation2], %s320
          %s322 = smul.u32 32, %s23
          %s324 = ssub.s32 4096, 4096
          %325 = vsyncadd %s318, %s324
          %s326 = smul.addr %s322, 128
          %s327 = scalar_lea.hbm %s0, %s326
          %s328 = sshll.u32 %s321, 4
          %s329 = int_to_ptr.vmem [resolvable:$true] %s328
          %334 = dma.hbm_to_vmem [thread:$0]  %s327, 4096, %s329, %s318, 128, 128, 8
        $region44: #{bottleneck_forward.3} parent=39 // pred_fallthru
          _
        // Predicated region
        $region45: #{bottleneck_forward.3} parent=39 // pred_check
          %p335 = pneg %p132
        $region46: #{bottleneck_forward.3} parent=39 // pred_check_branch
          %337 = sbr.rel (%p335) target = $region48
        $region47: #{bottleneck_forward.3} parent=39 // pred_region
          %s338 = sand.u32 %s23, 1
          %s339 = scalar_lea.sflag [#allocation3], %s338
          %s340 = sand.u32 %s122, 1
          %s341 = smul.addr %s340, 256
          %s342 = scalar_lea.vmem [#allocation10], %s341
          %s343 = smul.u32 32, %s23
          %s345 = ssub.s32 4096, 4096
          %346 = vsyncadd %s339, %s345
          %s347 = smul.addr %s343, 128
          %s348 = scalar_lea.hbm %s4, %s347
          %s349 = sshll.u32 %s342, 4
          %s350 = int_to_ptr.vmem [resolvable:$true] %s349
          %355 = dma.hbm_to_vmem [thread:$0]  %s348, 4096, %s350, %s339, 128, 128, 8
        $region48: #{bottleneck_forward.3} parent=39 // pred_fallthru
          _
      $region40: #{bottleneck_forward.3} parent=5 // pred_fallthru
        _
      %p356 = scmp.le.s32.totalorder 1, %s23
      %p357 = scmp.lt.s32.totalorder %s23, 3
      %p358 = pnand %p356, %p357
      %p359 = pneg %p358
      // Predicated region
      $region49: #{bottleneck_forward.3} parent=5 // pred_check
        _
      $region50: #{bottleneck_forward.3} parent=5 // pred_check_branch
        %361 = sbr.rel (%p358) target = $region52
      $region51: #{bottleneck_forward.3} parent=5 // pred_region
        %s362 = ssub.s32 %s23, 1
        %s363 = sand.u32 %s28, 1
        %s364 = scalar_lea.sflag [#allocation3], %s363
        %s365 = sand.u32 %s36, 1
        %s366 = smul.addr %s365, 256
        %s367 = scalar_lea.vmem [#allocation2], %s366
        // Predicated region
        $region53: #{bottleneck_forward.3} parent=51 // pred_check
          %p368 = pneg %p49
        $region54: #{bottleneck_forward.3} parent=51 // pred_check_branch
          %370 = sbr.rel (%p368) target = $region56
        $region55: #{bottleneck_forward.3} parent=51 // pred_region
          %371 = dma.done %s364, 4096
        $region56: #{bottleneck_forward.3} parent=51 // pred_fallthru
          _
        // Predicated region
        $region57: #{bottleneck_forward.3} parent=51 // pred_check
          %p372 = pneg %p70
        $region58: #{bottleneck_forward.3} parent=51 // pred_check_branch
          %374 = sbr.rel (%p372) target = $region60
        $region59: #{bottleneck_forward.3} parent=51 // pred_region
          %375 = dma.done [#allocation6], 128
        $region60: #{bottleneck_forward.3} parent=51 // pred_fallthru
          _
        // Predicated region
        $region61: #{bottleneck_forward.3} parent=51 // pred_check
          %p376 = pneg %p91
        $region62: #{bottleneck_forward.3} parent=51 // pred_check_branch
          %378 = sbr.rel (%p376) target = $region64
        $region63: #{bottleneck_forward.3} parent=51 // pred_region
          %379 = dma.done [#allocation6], 16
        $region64: #{bottleneck_forward.3} parent=51 // pred_fallthru
          _
        // Predicated region
        $region65: #{bottleneck_forward.3} parent=51 // pred_check
          %p380 = pneg %p112
        $region66: #{bottleneck_forward.3} parent=51 // pred_check_branch
          %382 = sbr.rel (%p380) target = $region68
        $region67: #{bottleneck_forward.3} parent=51 // pred_region
          %383 = dma.done [#allocation9], 16
        $region68: #{bottleneck_forward.3} parent=51 // pred_fallthru
          _
        %s384 = sand.u32 %s28, 1
        %s385 = scalar_lea.sflag [#allocation3], %s384
        %s386 = sand.u32 %s125, 1
        %s387 = smul.addr %s386, 256
        %s388 = scalar_lea.vmem [#allocation10], %s387
        // Predicated region
        $region69: #{bottleneck_forward.3} parent=51 // pred_check
          %p389 = pneg %p138
        $region70: #{bottleneck_forward.3} parent=51 // pred_check_branch
          %391 = sbr.rel (%p389) target = $region72
        $region71: #{bottleneck_forward.3} parent=51 // pred_region
          %392 = dma.done %s385, 4096
        $region72: #{bottleneck_forward.3} parent=51 // pred_fallthru
          _
        // Predicated region
        $region73: #{bottleneck_forward.3} parent=51 // pred_check
          %p393 = pneg %p159
        $region74: #{bottleneck_forward.3} parent=51 // pred_check_branch
          %395 = sbr.rel (%p393) target = $region76
        $region75: #{bottleneck_forward.3} parent=51 // pred_region
          %396 = dma.done [#allocation6], 256
        $region76: #{bottleneck_forward.3} parent=51 // pred_fallthru
          _
        // Predicated region
        $region77: #{bottleneck_forward.3} parent=51 // pred_check
          %p397 = pneg %p180
        $region78: #{bottleneck_forward.3} parent=51 // pred_check_branch
          %399 = sbr.rel (%p397) target = $region80
        $region79: #{bottleneck_forward.3} parent=51 // pred_region
          %400 = dma.done [#allocation9], 16
        $region80: #{bottleneck_forward.3} parent=51 // pred_fallthru
          _
        // Predicated region
        $region81: #{bottleneck_forward.3} parent=51 // pred_check
          %p401 = pneg %p201
        $region82: #{bottleneck_forward.3} parent=51 // pred_check_branch
          %403 = sbr.rel (%p401) target = $region84
        $region83: #{bottleneck_forward.3} parent=51 // pred_region
          %404 = dma.done [#allocation14], 16
        $region84: #{bottleneck_forward.3} parent=51 // pred_fallthru
          _
        %s405 = sand.u32 %s28, 1
        %s406 = scalar_lea.sflag [#allocation3], %s405
        %s407 = sand.u32 %s36, 1
        %s408 = smul.addr %s407, 256
        %s409 = scalar_lea.vmem [#allocation2], %s408
        %p410 = pneg %p49
        %p411 = pneg %p46
        %p412 = pneg %p70
        %p413 = pneg %p67
        %p414 = pneg %p91
        %p415 = pneg %p88
        %p416 = pneg %p112
        %p417 = pneg %p109
        %s418 = sand.u32 %s28, 1
        %s419 = scalar_lea.sflag [#allocation3], %s418
        %s420 = sand.u32 %s125, 1
        %s421 = smul.addr %s420, 256
        %s422 = scalar_lea.vmem [#allocation10], %s421
        %p423 = pneg %p138
        %p424 = pneg %p135
        %p425 = pneg %p159
        %p426 = pneg %p156
        %p427 = pneg %p180
        %p428 = pneg %p177
        %p429 = pneg %p201
        %p430 = pneg %p198
        %p431 = pneg %p227
        %p432 = pneg %p224
        %s433 = sand.u32 %s214, 1
        %s434 = scalar_lea.sflag [#allocation4], %s433
        %s435 = sand.u32 %s214, 1
        %s436 = smul.addr %s435, 256
        %s437 = scalar_lea.vmem [#allocation15], %s436
        %s438 = smul.u32 32, %s28
        %s439 = smul.u32 32, %s28
        %s440 = smul.u32 32, %s28
        %v441 = vld [vmem:[%s367] sm:$0xff]
        %v442 = vld [vmem:[%s367 + $0x8] sm:$0xff]
        %v443 = vld [vmem:[%s367 + $0x10] sm:$0xff]
        %v444 = vld [vmem:[%s367 + $0x18] sm:$0xff]
        %v445 = vld [vmem:[%s367 + $0x20] sm:$0xff]
        %v446 = vld [vmem:[%s367 + $0x28] sm:$0xff]
        %v447 = vld [vmem:[%s367 + $0x30] sm:$0xff]
        %v448 = vld [vmem:[%s367 + $0x38] sm:$0xff]
        %v449 = vld [vmem:[%s367 + $0x40] sm:$0xff]
        %v450 = vld [vmem:[%s367 + $0x48] sm:$0xff]
        %v451 = vld [vmem:[%s367 + $0x50] sm:$0xff]
        %v452 = vld [vmem:[%s367 + $0x58] sm:$0xff]
        %v453 = vld [vmem:[%s367 + $0x60] sm:$0xff]
        %v454 = vld [vmem:[%s367 + $0x68] sm:$0xff]
        %v455 = vld [vmem:[%s367 + $0x70] sm:$0xff]
        %v456 = vld [vmem:[%s367 + $0x78] sm:$0xff]
        %v457 = vld [vmem:[%s367 + $0x80] sm:$0xff]
        %v458 = vld [vmem:[%s367 + $0x88] sm:$0xff]
        %v459 = vld [vmem:[%s367 + $0x90] sm:$0xff]
        %v460 = vld [vmem:[%s367 + $0x98] sm:$0xff]
        %v461 = vld [vmem:[%s367 + $0xa0] sm:$0xff]
        %v462 = vld [vmem:[%s367 + $0xa8] sm:$0xff]
        %v463 = vld [vmem:[%s367 + $0xb0] sm:$0xff]
        %v464 = vld [vmem:[%s367 + $0xb8] sm:$0xff]
        %v465 = vld [vmem:[%s367 + $0xc0] sm:$0xff]
        %v466 = vld [vmem:[%s367 + $0xc8] sm:$0xff]
        %v467 = vld [vmem:[%s367 + $0xd0] sm:$0xff]
        %v468 = vld [vmem:[%s367 + $0xd8] sm:$0xff]
        %v469 = vld [vmem:[%s367 + $0xe0] sm:$0xff]
        %v470 = vld [vmem:[%s367 + $0xe8] sm:$0xff]
        %v471 = vld [vmem:[%s367 + $0xf0] sm:$0xff]
        %v472 = vld [vmem:[%s367 + $0xf8] sm:$0xff]
        %v473 = vld [vmem:[#allocation5] sm:$0xff]
        %vm474 = vcmask 64512
        %v476 = vsel %vm474, %v441, 0
        %v479 = vsel %vm474, %v442, 0
        %v482 = vsel %vm474, %v443, 0
        %v485 = vsel %vm474, %v444, 0
        %v488 = vsel %vm474, %v445, 0
        %v491 = vsel %vm474, %v446, 0
        %v494 = vsel %vm474, %v447, 0
        %v497 = vsel %vm474, %v448, 0
        %v500 = vsel %vm474, %v449, 0
        %v503 = vsel %vm474, %v450, 0
        %v506 = vsel %vm474, %v451, 0
        %v509 = vsel %vm474, %v452, 0
        %v512 = vsel %vm474, %v453, 0
        %v515 = vsel %vm474, %v454, 0
        %v518 = vsel %vm474, %v455, 0
        %v521 = vsel %vm474, %v456, 0
        %v524 = vsel %vm474, %v457, 0
        %v527 = vsel %vm474, %v458, 0
        %v530 = vsel %vm474, %v459, 0
        %v533 = vsel %vm474, %v460, 0
        %v536 = vsel %vm474, %v461, 0
        %v539 = vsel %vm474, %v462, 0
        %v542 = vsel %vm474, %v463, 0
        %v545 = vsel %vm474, %v464, 0
        %v548 = vsel %vm474, %v465, 0
        %v551 = vsel %vm474, %v466, 0
        %v554 = vsel %vm474, %v467, 0
        %v557 = vsel %vm474, %v468, 0
        %v560 = vsel %vm474, %v469, 0
        %v563 = vsel %vm474, %v470, 0
        %v566 = vsel %vm474, %v471, 0
        %v569 = vsel %vm474, %v472, 0
        %571 = vmatprep.subr.mxu0 0.0
        %572 = vmatpush1.msra.mxu0 %v473
        %573 = vmatprep.subr.mxu0 0.0
        %574 = vmatpush1.msra.mxu0 0.0
        %575 = vmatprep.subr.mxu0 0.0
        %576 = vmatpush1.msra.mxu0 0.0
        %577 = vmatprep.subr.mxu0 0.0
        %578 = vmatpush1.msra.mxu0 0.0
        %579 = vmatprep.subr.mxu0 0.0
        %580 = vmatpush1.msra.mxu0 0.0
        %581 = vmatprep.subr.mxu0 0.0
        %582 = vmatpush1.msra.mxu0 0.0
        %583 = vmatprep.subr.mxu0 0.0
        %584 = vmatpush1.msra.mxu0 0.0
        %585 = vmatprep.subr.mxu0 0.0
        %586 = vmatpush1.msra.mxu0 0.0
        %587 = vmatprep.subr.mxu0 0.0
        %588 = vmatpush1.msra.mxu0 0.0
        %589 = vmatprep.subr.mxu0 0.0
        %590 = vmatpush1.msra.mxu0 0.0
        %591 = vmatprep.subr.mxu0 0.0
        %592 = vmatpush1.msra.mxu0 0.0
        %593 = vmatprep.subr.mxu0 0.0
        %594 = vmatpush1.msra.mxu0 0.0
        %595 = vmatprep.subr.mxu0 0.0
        %596 = vmatpush1.msra.mxu0 0.0
        %597 = vmatprep.subr.mxu0 0.0
        %598 = vmatpush1.msra.mxu0 0.0
        %599 = vmatprep.subr.mxu0 0.0
        %600 = vmatpush1.msra.mxu0 0.0
        %601 = vmatprep.subr.mxu0 0.0
        %602 = vmatpush1.msra.mxu0 0.0
        %603 = vmatprep.subr.mxu0 0.0
        %604 = vmatpush1.msra.mxu0 0.0
        %605 = vmatprep.subr.mxu0 0.0
        %606 = vmatpush1.msra.mxu0 0.0
        %607 = vmatprep.subr.mxu0 0.0
        %608 = vmatpush1.msra.mxu0 0.0
        %609 = vmatprep.subr.mxu0 0.0
        %610 = vmatpush1.msra.mxu0 0.0
        %611 = vmatprep.subr.mxu0 0.0
        %612 = vmatpush1.msra.mxu0 0.0
        %613 = vmatprep.subr.mxu0 0.0
        %614 = vmatpush1.msra.mxu0 0.0
        %615 = vmatprep.subr.mxu0 0.0
        %616 = vmatpush1.msra.mxu0 0.0
        %617 = vmatprep.subr.mxu0 0.0
        %618 = vmatpush1.msra.mxu0 0.0
        %619 = vmatprep.subr.mxu0 0.0
        %620 = vmatpush1.msra.mxu0 0.0
        %621 = vmatprep.subr.mxu0 0.0
        %622 = vmatpush1.msra.mxu0 0.0
        %623 = vmatprep.subr.mxu0 0.0
        %624 = vmatpush1.msra.mxu0 0.0
        %625 = vmatprep.subr.mxu0 0.0
        %626 = vmatpush1.msra.mxu0 0.0
        %627 = vmatprep.subr.mxu0 0.0
        %628 = vmatpush1.msra.mxu0 0.0
        %629 = vmatprep.subr.mxu0 0.0
        %630 = vmatpush1.msra.mxu0 0.0
        %631 = vmatprep.subr.mxu0 0.0
        %632 = vmatpush1.msra.mxu0 0.0
        %633 = vmatprep.subr.mxu0 0.0
        %634 = vmatpush1.msra.mxu0 0.0
        %635 = vmatprep.mubr.f32.mxu0 0.0
        %636 = vmatmul.mubr.f32.gmra.mrb[0].mxu0 %v476
        %v637 = vpop.f32.mrb[0].mxu0
        %v638 = vadd.f32 0.0, %v637
        %v639 = vpop.f32.mrb[0].mxu0
        %640 = vmatprep.mubr.f32.mxu0 0.0
        %641 = vmatmul.mubr.f32.gmra.mrb[0].mxu0 %v479
        %v642 = vpop.f32.mrb[0].mxu0
        %v643 = vadd.f32 0.0, %v642
        %v644 = vpop.f32.mrb[0].mxu0
        %645 = vmatprep.mubr.f32.mxu0 0.0
        %646 = vmatmul.mubr.f32.gmra.mrb[0].mxu0 %v482
        %v647 = vpop.f32.mrb[0].mxu0
        %v648 = vadd.f32 0.0, %v647
        %v649 = vpop.f32.mrb[0].mxu0
        %650 = vmatprep.mubr.f32.mxu0 0.0
        %651 = vmatmul.mubr.f32.gmra.mrb[0].mxu0 %v485
        %v652 = vpop.f32.mrb[0].mxu0
        %v653 = vadd.f32 0.0, %v652
        %v654 = vpop.f32.mrb[0].mxu0
        %655 = vmatprep.mubr.f32.mxu0 0.0
        %656 = vmatmul.mubr.f32.gmra.mrb[0].mxu0 %v488
        %v657 = vpop.f32.mrb[0].mxu0
        %v658 = vadd.f32 0.0, %v657
        %v659 = vpop.f32.mrb[0].mxu0
        %660 = vmatprep.mubr.f32.mxu0 0.0
        %661 = vmatmul.mubr.f32.gmra.mrb[0].mxu0 %v491
        %v662 = vpop.f32.mrb[0].mxu0
        %v663 = vadd.f32 0.0, %v662
        %v664 = vpop.f32.mrb[0].mxu0
        %665 = vmatprep.mubr.f32.mxu0 0.0
        %666 = vmatmul.mubr.f32.gmra.mrb[0].mxu0 %v494
        %v667 = vpop.f32.mrb[0].mxu0
        %v668 = vadd.f32 0.0, %v667
        %v669 = vpop.f32.mrb[0].mxu0
        %670 = vmatprep.mubr.f32.mxu0 0.0
        %671 = vmatmul.mubr.f32.gmra.mrb[0].mxu0 %v497
        %v672 = vpop.f32.mrb[0].mxu0
        %v673 = vadd.f32 0.0, %v672
        %v674 = vpop.f32.mrb[0].mxu0
        %675 = vmatprep.mubr.f32.mxu0 0.0
        %676 = vmatmul.mubr.f32.gmra.mrb[0].mxu0 %v500
        %v677 = vpop.f32.mrb[0].mxu0
        %v678 = vadd.f32 0.0, %v677
        %v679 = vpop.f32.mrb[0].mxu0
        %680 = vmatprep.mubr.f32.mxu0 0.0
        %681 = vmatmul.mubr.f32.gmra.mrb[0].mxu0 %v503
        %v682 = vpop.f32.mrb[0].mxu0
        %v683 = vadd.f32 0.0, %v682
        %v684 = vpop.f32.mrb[0].mxu0
        %685 = vmatprep.mubr.f32.mxu0 0.0
        %686 = vmatmul.mubr.f32.gmra.mrb[0].mxu0 %v506
        %v687 = vpop.f32.mrb[0].mxu0
        %v688 = vadd.f32 0.0, %v687
        %v689 = vpop.f32.mrb[0].mxu0
        %690 = vmatprep.mubr.f32.mxu0 0.0
        %691 = vmatmul.mubr.f32.gmra.mrb[0].mxu0 %v509
        %v692 = vpop.f32.mrb[0].mxu0
        %v693 = vadd.f32 0.0, %v692
        %v694 = vpop.f32.mrb[0].mxu0
        %695 = vmatprep.mubr.f32.mxu0 0.0
        %696 = vmatmul.mubr.f32.gmra.mrb[0].mxu0 %v512
        %v697 = vpop.f32.mrb[0].mxu0
        %v698 = vadd.f32 0.0, %v697
        %v699 = vpop.f32.mrb[0].mxu0
        %700 = vmatprep.mubr.f32.mxu0 0.0
        %701 = vmatmul.mubr.f32.gmra.mrb[0].mxu0 %v515
        %v702 = vpop.f32.mrb[0].mxu0
        %v703 = vadd.f32 0.0, %v702
        %v704 = vpop.f32.mrb[0].mxu0
        %705 = vmatprep.mubr.f32.mxu0 0.0
        %706 = vmatmul.mubr.f32.gmra.mrb[0].mxu0 %v518
        %v707 = vpop.f32.mrb[0].mxu0
        %v708 = vadd.f32 0.0, %v707
        %v709 = vpop.f32.mrb[0].mxu0
        %710 = vmatprep.mubr.f32.mxu0 0.0
        %711 = vmatmul.mubr.f32.gmra.mrb[0].mxu0 %v521
        %v712 = vpop.f32.mrb[0].mxu0
        %v713 = vadd.f32 0.0, %v712
        %v714 = vpop.f32.mrb[0].mxu0
        %715 = vmatprep.mubr.f32.mxu0 0.0
        %716 = vmatmul.mubr.f32.gmra.mrb[0].mxu0 %v524
        %v717 = vpop.f32.mrb[0].mxu0
        %v718 = vadd.f32 0.0, %v717
        %v719 = vpop.f32.mrb[0].mxu0
        %720 = vmatprep.mubr.f32.mxu0 0.0
        %721 = vmatmul.mubr.f32.gmra.mrb[0].mxu0 %v527
        %v722 = vpop.f32.mrb[0].mxu0
        %v723 = vadd.f32 0.0, %v722
        %v724 = vpop.f32.mrb[0].mxu0
        %725 = vmatprep.mubr.f32.mxu0 0.0
        %726 = vmatmul.mubr.f32.gmra.mrb[0].mxu0 %v530
        %v727 = vpop.f32.mrb[0].mxu0
        %v728 = vadd.f32 0.0, %v727
        %v729 = vpop.f32.mrb[0].mxu0
        %730 = vmatprep.mubr.f32.mxu0 0.0
        %731 = vmatmul.mubr.f32.gmra.mrb[0].mxu0 %v533
        %v732 = vpop.f32.mrb[0].mxu0
        %v733 = vadd.f32 0.0, %v732
        %v734 = vpop.f32.mrb[0].mxu0
        %735 = vmatprep.mubr.f32.mxu0 0.0
        %736 = vmatmul.mubr.f32.gmra.mrb[0].mxu0 %v536
        %v737 = vpop.f32.mrb[0].mxu0
        %v738 = vadd.f32 0.0, %v737
        %v739 = vpop.f32.mrb[0].mxu0
        %740 = vmatprep.mubr.f32.mxu0 0.0
        %741 = vmatmul.mubr.f32.gmra.mrb[0].mxu0 %v539
        %v742 = vpop.f32.mrb[0].mxu0
        %v743 = vadd.f32 0.0, %v742
        %v744 = vpop.f32.mrb[0].mxu0
        %745 = vmatprep.mubr.f32.mxu0 0.0
        %746 = vmatmul.mubr.f32.gmra.mrb[0].mxu0 %v542
        %v747 = vpop.f32.mrb[0].mxu0
        %v748 = vadd.f32 0.0, %v747
        %v749 = vpop.f32.mrb[0].mxu0
        %750 = vmatprep.mubr.f32.mxu0 0.0
        %751 = vmatmul.mubr.f32.gmra.mrb[0].mxu0 %v545
        %v752 = vpop.f32.mrb[0].mxu0
        %v753 = vadd.f32 0.0, %v752
        %v754 = vpop.f32.mrb[0].mxu0
        %755 = vmatprep.mubr.f32.mxu0 0.0
        %756 = vmatmul.mubr.f32.gmra.mrb[0].mxu0 %v548
        %v757 = vpop.f32.mrb[0].mxu0
        %v758 = vadd.f32 0.0, %v757
        %v759 = vpop.f32.mrb[0].mxu0
        %760 = vmatprep.mubr.f32.mxu0 0.0
        %761 = vmatmul.mubr.f32.gmra.mrb[0].mxu0 %v551
        %v762 = vpop.f32.mrb[0].mxu0
        %v763 = vadd.f32 0.0, %v762
        %v764 = vpop.f32.mrb[0].mxu0
        %765 = vmatprep.mubr.f32.mxu0 0.0
        %766 = vmatmul.mubr.f32.gmra.mrb[0].mxu0 %v554
        %v767 = vpop.f32.mrb[0].mxu0
        %v768 = vadd.f32 0.0, %v767
        %v769 = vpop.f32.mrb[0].mxu0
        %770 = vmatprep.mubr.f32.mxu0 0.0
        %771 = vmatmul.mubr.f32.gmra.mrb[0].mxu0 %v557
        %v772 = vpop.f32.mrb[0].mxu0
        %v773 = vadd.f32 0.0, %v772
        %v774 = vpop.f32.mrb[0].mxu0
        %775 = vmatprep.mubr.f32.mxu0 0.0
        %776 = vmatmul.mubr.f32.gmra.mrb[0].mxu0 %v560
        %v777 = vpop.f32.mrb[0].mxu0
        %v778 = vadd.f32 0.0, %v777
        %v779 = vpop.f32.mrb[0].mxu0
        %780 = vmatprep.mubr.f32.mxu0 0.0
        %781 = vmatmul.mubr.f32.gmra.mrb[0].mxu0 %v563
        %v782 = vpop.f32.mrb[0].mxu0
        %v783 = vadd.f32 0.0, %v782
        %v784 = vpop.f32.mrb[0].mxu0
        %785 = vmatprep.mubr.f32.mxu0 0.0
        %786 = vmatmul.mubr.f32.gmra.mrb[0].mxu0 %v566
        %v787 = vpop.f32.mrb[0].mxu0
        %v788 = vadd.f32 0.0, %v787
        %v789 = vpop.f32.mrb[0].mxu0
        %790 = vmatprep.mubr.f32.mxu0 0.0
        %791 = vmatmul.mubr.f32.gmra.mrb[0].mxu0 %v569
        %v792 = vpop.f32.mrb[0].mxu0
        %v793 = vadd.f32 0.0, %v792
        %v794 = vpop.f32.mrb[0].mxu0
        %795 = vdwg.mxu0
        %v796 = vld [vmem:[#allocation7] sm:$0x1]
        %v798 = vlaneseq
        %v799 = vshrl.u32 %v798, 7
        %v800 = vsub.s32 0, %v799
        %v801 = vrot.slane %v796, %v800
        %v803 = vmul.f32 %v638, %v801
        %v804 = vmul.f32 %v643, %v801
        %v805 = vmul.f32 %v648, %v801
        %v806 = vmul.f32 %v653, %v801
        %v807 = vmul.f32 %v658, %v801
        %v808 = vmul.f32 %v663, %v801
        %v809 = vmul.f32 %v668, %v801
        %v810 = vmul.f32 %v673, %v801
        %v811 = vmul.f32 %v678, %v801
        %v812 = vmul.f32 %v683, %v801
        %v813 = vmul.f32 %v688, %v801
        %v814 = vmul.f32 %v693, %v801
        %v815 = vmul.f32 %v698, %v801
        %v816 = vmul.f32 %v703, %v801
        %v817 = vmul.f32 %v708, %v801
        %v818 = vmul.f32 %v713, %v801
        %v819 = vmul.f32 %v718, %v801
        %v820 = vmul.f32 %v723, %v801
        %v821 = vmul.f32 %v728, %v801
        %v822 = vmul.f32 %v733, %v801
        %v823 = vmul.f32 %v738, %v801
        %v824 = vmul.f32 %v743, %v801
        %v825 = vmul.f32 %v748, %v801
        %v826 = vmul.f32 %v753, %v801
        %v827 = vmul.f32 %v758, %v801
        %v828 = vmul.f32 %v763, %v801
        %v829 = vmul.f32 %v768, %v801
        %v830 = vmul.f32 %v773, %v801
        %v831 = vmul.f32 %v778, %v801
        %v832 = vmul.f32 %v783, %v801
        %v833 = vmul.f32 %v788, %v801
        %v834 = vmul.f32 %v793, %v801
        %v835 = vld [vmem:[#allocation8] sm:$0x1]
        %v837 = vlaneseq
        %v838 = vshrl.u32 %v837, 7
        %v839 = vsub.s32 0, %v838
        %v840 = vrot.slane %v835, %v839
        %v842 = vadd.f32 %v803, %v840
        %v843 = vadd.f32 %v804, %v840
        %v844 = vadd.f32 %v805, %v840
        %v845 = vadd.f32 %v806, %v840
        %v846 = vadd.f32 %v807, %v840
        %v847 = vadd.f32 %v808, %v840
        %v848 = vadd.f32 %v809, %v840
        %v849 = vadd.f32 %v810, %v840
        %v850 = vadd.f32 %v811, %v840
        %v851 = vadd.f32 %v812, %v840
        %v852 = vadd.f32 %v813, %v840
        %v853 = vadd.f32 %v814, %v840
        %v854 = vadd.f32 %v815, %v840
        %v855 = vadd.f32 %v816, %v840
        %v856 = vadd.f32 %v817, %v840
        %v857 = vadd.f32 %v818, %v840
        %v858 = vadd.f32 %v819, %v840
        %v859 = vadd.f32 %v820, %v840
        %v860 = vadd.f32 %v821, %v840
        %v861 = vadd.f32 %v822, %v840
        %v862 = vadd.f32 %v823, %v840
        %v863 = vadd.f32 %v824, %v840
        %v864 = vadd.f32 %v825, %v840
        %v865 = vadd.f32 %v826, %v840
        %v866 = vadd.f32 %v827, %v840
        %v867 = vadd.f32 %v828, %v840
        %v868 = vadd.f32 %v829, %v840
        %v869 = vadd.f32 %v830, %v840
        %v870 = vadd.f32 %v831, %v840
        %v871 = vadd.f32 %v832, %v840
        %v872 = vadd.f32 %v833, %v840
        %v873 = vadd.f32 %v834, %v840
        %v874 = vld [vmem:[%s388] sm:$0xff]
        %v875 = vld [vmem:[%s388 + $0x8] sm:$0xff]
        %v876 = vld [vmem:[%s388 + $0x10] sm:$0xff]
        %v877 = vld [vmem:[%s388 + $0x18] sm:$0xff]
        %v878 = vld [vmem:[%s388 + $0x20] sm:$0xff]
        %v879 = vld [vmem:[%s388 + $0x28] sm:$0xff]
        %v880 = vld [vmem:[%s388 + $0x30] sm:$0xff]
        %v881 = vld [vmem:[%s388 + $0x38] sm:$0xff]
        %v882 = vld [vmem:[%s388 + $0x40] sm:$0xff]
        %v883 = vld [vmem:[%s388 + $0x48] sm:$0xff]
        %v884 = vld [vmem:[%s388 + $0x50] sm:$0xff]
        %v885 = vld [vmem:[%s388 + $0x58] sm:$0xff]
        %v886 = vld [vmem:[%s388 + $0x60] sm:$0xff]
        %v887 = vld [vmem:[%s388 + $0x68] sm:$0xff]
        %v888 = vld [vmem:[%s388 + $0x70] sm:$0xff]
        %v889 = vld [vmem:[%s388 + $0x78] sm:$0xff]
        %v890 = vld [vmem:[%s388 + $0x80] sm:$0xff]
        %v891 = vld [vmem:[%s388 + $0x88] sm:$0xff]
        %v892 = vld [vmem:[%s388 + $0x90] sm:$0xff]
        %v893 = vld [vmem:[%s388 + $0x98] sm:$0xff]
        %v894 = vld [vmem:[%s388 + $0xa0] sm:$0xff]
        %v895 = vld [vmem:[%s388 + $0xa8] sm:$0xff]
        %v896 = vld [vmem:[%s388 + $0xb0] sm:$0xff]
        %v897 = vld [vmem:[%s388 + $0xb8] sm:$0xff]
        %v898 = vld [vmem:[%s388 + $0xc0] sm:$0xff]
        %v899 = vld [vmem:[%s388 + $0xc8] sm:$0xff]
        %v900 = vld [vmem:[%s388 + $0xd0] sm:$0xff]
        %v901 = vld [vmem:[%s388 + $0xd8] sm:$0xff]
        %v902 = vld [vmem:[%s388 + $0xe0] sm:$0xff]
        %v903 = vld [vmem:[%s388 + $0xe8] sm:$0xff]
        %v904 = vld [vmem:[%s388 + $0xf0] sm:$0xff]
        %v905 = vld [vmem:[%s388 + $0xf8] sm:$0xff]
        %v906 = vld [vmem:[#allocation11] sm:$0xff]
        %v907 = vld [vmem:[#allocation11 + $0x8] sm:$0xff]
        %vm908 = vcmask 130048
        %v910 = vsel %vm908, %v874, 0
        %v913 = vsel %vm908, %v875, 0
        %v916 = vsel %vm908, %v876, 0
        %v919 = vsel %vm908, %v877, 0
        %v922 = vsel %vm908, %v878, 0
        %v925 = vsel %vm908, %v879, 0
        %v928 = vsel %vm908, %v880, 0
        %v931 = vsel %vm908, %v881, 0
        %v934 = vsel %vm908, %v882, 0
        %v937 = vsel %vm908, %v883, 0
        %v940 = vsel %vm908, %v884, 0
        %v943 = vsel %vm908, %v885, 0
        %v946 = vsel %vm908, %v886, 0
        %v949 = vsel %vm908, %v887, 0
        %v952 = vsel %vm908, %v888, 0
        %v955 = vsel %vm908, %v889, 0
        %v958 = vsel %vm908, %v890, 0
        %v961 = vsel %vm908, %v891, 0
        %v964 = vsel %vm908, %v892, 0
        %v967 = vsel %vm908, %v893, 0
        %v970 = vsel %vm908, %v894, 0
        %v973 = vsel %vm908, %v895, 0
        %v976 = vsel %vm908, %v896, 0
        %v979 = vsel %vm908, %v897, 0
        %v982 = vsel %vm908, %v898, 0
        %v985 = vsel %vm908, %v899, 0
        %v988 = vsel %vm908, %v900, 0
        %v991 = vsel %vm908, %v901, 0
        %v994 = vsel %vm908, %v902, 0
        %v997 = vsel %vm908, %v903, 0
        %v1000 = vsel %vm908, %v904, 0
        %v1003 = vsel %vm908, %v905, 0
        %1005 = vmatprep.subr.mxu0 0.0
        %1006 = vmatpush1.msra.mxu0 %v906
        %1007 = vmatprep.subr.mxu0 0.0
        %1008 = vmatpush1.msra.mxu0 %v907
        %1009 = vmatprep.subr.mxu0 0.0
        %1010 = vmatpush1.msra.mxu0 0.0
        %1011 = vmatprep.subr.mxu0 0.0
        %1012 = vmatpush1.msra.mxu0 0.0
        %1013 = vmatprep.subr.mxu0 0.0
        %1014 = vmatpush1.msra.mxu0 0.0
        %1015 = vmatprep.subr.mxu0 0.0
        %1016 = vmatpush1.msra.mxu0 0.0
        %1017 = vmatprep.subr.mxu0 0.0
        %1018 = vmatpush1.msra.mxu0 0.0
        %1019 = vmatprep.subr.mxu0 0.0
        %1020 = vmatpush1.msra.mxu0 0.0
        %1021 = vmatprep.subr.mxu0 0.0
        %1022 = vmatpush1.msra.mxu0 0.0
        %1023 = vmatprep.subr.mxu0 0.0
        %1024 = vmatpush1.msra.mxu0 0.0
        %1025 = vmatprep.subr.mxu0 0.0
        %1026 = vmatpush1.msra.mxu0 0.0
        %1027 = vmatprep.subr.mxu0 0.0
        %1028 = vmatpush1.msra.mxu0 0.0
        %1029 = vmatprep.subr.mxu0 0.0
        %1030 = vmatpush1.msra.mxu0 0.0
        %1031 = vmatprep.subr.mxu0 0.0
        %1032 = vmatpush1.msra.mxu0 0.0
        %1033 = vmatprep.subr.mxu0 0.0
        %1034 = vmatpush1.msra.mxu0 0.0
        %1035 = vmatprep.subr.mxu0 0.0
        %1036 = vmatpush1.msra.mxu0 0.0
        %1037 = vmatprep.subr.mxu0 0.0
        %1038 = vmatpush1.msra.mxu0 0.0
        %1039 = vmatprep.subr.mxu0 0.0
        %1040 = vmatpush1.msra.mxu0 0.0
        %1041 = vmatprep.subr.mxu0 0.0
        %1042 = vmatpush1.msra.mxu0 0.0
        %1043 = vmatprep.subr.mxu0 0.0
        %1044 = vmatpush1.msra.mxu0 0.0
        %1045 = vmatprep.subr.mxu0 0.0
        %1046 = vmatpush1.msra.mxu0 0.0
        %1047 = vmatprep.subr.mxu0 0.0
        %1048 = vmatpush1.msra.mxu0 0.0
        %1049 = vmatprep.subr.mxu0 0.0
        %1050 = vmatpush1.msra.mxu0 0.0
        %1051 = vmatprep.subr.mxu0 0.0
        %1052 = vmatpush1.msra.mxu0 0.0
        %1053 = vmatprep.subr.mxu0 0.0
        %1054 = vmatpush1.msra.mxu0 0.0
        %1055 = vmatprep.subr.mxu0 0.0
        %1056 = vmatpush1.msra.mxu0 0.0
        %1057 = vmatprep.subr.mxu0 0.0
        %1058 = vmatpush1.msra.mxu0 0.0
        %1059 = vmatprep.subr.mxu0 0.0
        %1060 = vmatpush1.msra.mxu0 0.0
        %1061 = vmatprep.subr.mxu0 0.0
        %1062 = vmatpush1.msra.mxu0 0.0
        %1063 = vmatprep.subr.mxu0 0.0
        %1064 = vmatpush1.msra.mxu0 0.0
        %1065 = vmatprep.subr.mxu0 0.0
        %1066 = vmatpush1.msra.mxu0 0.0
        %1067 = vmatprep.subr.mxu0 0.0
        %1068 = vmatpush1.msra.mxu0 0.0
        %1069 = vmatprep.mubr.f32.mxu0 0.0
        %1070 = vmatmul.mubr.f32.gmra.mrb[0].mxu0 %v910
        %v1071 = vpop.f32.mrb[0].mxu0
        %v1072 = vadd.f32 0.0, %v1071
        %v1073 = vpop.f32.mrb[0].mxu0
        %1074 = vmatprep.mubr.f32.mxu0 0.0
        %1075 = vmatmul.mubr.f32.gmra.mrb[0].mxu0 %v913
        %v1076 = vpop.f32.mrb[0].mxu0
        %v1077 = vadd.f32 0.0, %v1076
        %v1078 = vpop.f32.mrb[0].mxu0
        %1079 = vmatprep.mubr.f32.mxu0 0.0
        %1080 = vmatmul.mubr.f32.gmra.mrb[0].mxu0 %v916
        %v1081 = vpop.f32.mrb[0].mxu0
        %v1082 = vadd.f32 0.0, %v1081
        %v1083 = vpop.f32.mrb[0].mxu0
        %1084 = vmatprep.mubr.f32.mxu0 0.0
        %1085 = vmatmul.mubr.f32.gmra.mrb[0].mxu0 %v919
        %v1086 = vpop.f32.mrb[0].mxu0
        %v1087 = vadd.f32 0.0, %v1086
        %v1088 = vpop.f32.mrb[0].mxu0
        %1089 = vmatprep.mubr.f32.mxu0 0.0
        %1090 = vmatmul.mubr.f32.gmra.mrb[0].mxu0 %v922
        %v1091 = vpop.f32.mrb[0].mxu0
        %v1092 = vadd.f32 0.0, %v1091
        %v1093 = vpop.f32.mrb[0].mxu0
        %1094 = vmatprep.mubr.f32.mxu0 0.0
        %1095 = vmatmul.mubr.f32.gmra.mrb[0].mxu0 %v925
        %v1096 = vpop.f32.mrb[0].mxu0
        %v1097 = vadd.f32 0.0, %v1096
        %v1098 = vpop.f32.mrb[0].mxu0
        %1099 = vmatprep.mubr.f32.mxu0 0.0
        %1100 = vmatmul.mubr.f32.gmra.mrb[0].mxu0 %v928
        %v1101 = vpop.f32.mrb[0].mxu0
        %v1102 = vadd.f32 0.0, %v1101
        %v1103 = vpop.f32.mrb[0].mxu0
        %1104 = vmatprep.mubr.f32.mxu0 0.0
        %1105 = vmatmul.mubr.f32.gmra.mrb[0].mxu0 %v931
        %v1106 = vpop.f32.mrb[0].mxu0
        %v1107 = vadd.f32 0.0, %v1106
        %v1108 = vpop.f32.mrb[0].mxu0
        %1109 = vmatprep.mubr.f32.mxu0 0.0
        %1110 = vmatmul.mubr.f32.gmra.mrb[0].mxu0 %v934
        %v1111 = vpop.f32.mrb[0].mxu0
        %v1112 = vadd.f32 0.0, %v1111
        %v1113 = vpop.f32.mrb[0].mxu0
        %1114 = vmatprep.mubr.f32.mxu0 0.0
        %1115 = vmatmul.mubr.f32.gmra.mrb[0].mxu0 %v937
        %v1116 = vpop.f32.mrb[0].mxu0
        %v1117 = vadd.f32 0.0, %v1116
        %v1118 = vpop.f32.mrb[0].mxu0
        %1119 = vmatprep.mubr.f32.mxu0 0.0
        %1120 = vmatmul.mubr.f32.gmra.mrb[0].mxu0 %v940
        %v1121 = vpop.f32.mrb[0].mxu0
        %v1122 = vadd.f32 0.0, %v1121
        %v1123 = vpop.f32.mrb[0].mxu0
        %1124 = vmatprep.mubr.f32.mxu0 0.0
        %1125 = vmatmul.mubr.f32.gmra.mrb[0].mxu0 %v943
        %v1126 = vpop.f32.mrb[0].mxu0
        %v1127 = vadd.f32 0.0, %v1126
        %v1128 = vpop.f32.mrb[0].mxu0
        %1129 = vmatprep.mubr.f32.mxu0 0.0
        %1130 = vmatmul.mubr.f32.gmra.mrb[0].mxu0 %v946
        %v1131 = vpop.f32.mrb[0].mxu0
        %v1132 = vadd.f32 0.0, %v1131
        %v1133 = vpop.f32.mrb[0].mxu0
        %1134 = vmatprep.mubr.f32.mxu0 0.0
        %1135 = vmatmul.mubr.f32.gmra.mrb[0].mxu0 %v949
        %v1136 = vpop.f32.mrb[0].mxu0
        %v1137 = vadd.f32 0.0, %v1136
        %v1138 = vpop.f32.mrb[0].mxu0
        %1139 = vmatprep.mubr.f32.mxu0 0.0
        %1140 = vmatmul.mubr.f32.gmra.mrb[0].mxu0 %v952
        %v1141 = vpop.f32.mrb[0].mxu0
        %v1142 = vadd.f32 0.0, %v1141
        %v1143 = vpop.f32.mrb[0].mxu0
        %1144 = vmatprep.mubr.f32.mxu0 0.0
        %1145 = vmatmul.mubr.f32.gmra.mrb[0].mxu0 %v955
        %v1146 = vpop.f32.mrb[0].mxu0
        %v1147 = vadd.f32 0.0, %v1146
        %v1148 = vpop.f32.mrb[0].mxu0
        %1149 = vmatprep.mubr.f32.mxu0 0.0
        %1150 = vmatmul.mubr.f32.gmra.mrb[0].mxu0 %v958
        %v1151 = vpop.f32.mrb[0].mxu0
        %v1152 = vadd.f32 0.0, %v1151
        %v1153 = vpop.f32.mrb[0].mxu0
        %1154 = vmatprep.mubr.f32.mxu0 0.0
        %1155 = vmatmul.mubr.f32.gmra.mrb[0].mxu0 %v961
        %v1156 = vpop.f32.mrb[0].mxu0
        %v1157 = vadd.f32 0.0, %v1156
        %v1158 = vpop.f32.mrb[0].mxu0
        %1159 = vmatprep.mubr.f32.mxu0 0.0
        %1160 = vmatmul.mubr.f32.gmra.mrb[0].mxu0 %v964
        %v1161 = vpop.f32.mrb[0].mxu0
        %v1162 = vadd.f32 0.0, %v1161
        %v1163 = vpop.f32.mrb[0].mxu0
        %1164 = vmatprep.mubr.f32.mxu0 0.0
        %1165 = vmatmul.mubr.f32.gmra.mrb[0].mxu0 %v967
        %v1166 = vpop.f32.mrb[0].mxu0
        %v1167 = vadd.f32 0.0, %v1166
        %v1168 = vpop.f32.mrb[0].mxu0
        %1169 = vmatprep.mubr.f32.mxu0 0.0
        %1170 = vmatmul.mubr.f32.gmra.mrb[0].mxu0 %v970
        %v1171 = vpop.f32.mrb[0].mxu0
        %v1172 = vadd.f32 0.0, %v1171
        %v1173 = vpop.f32.mrb[0].mxu0
        %1174 = vmatprep.mubr.f32.mxu0 0.0
        %1175 = vmatmul.mubr.f32.gmra.mrb[0].mxu0 %v973
        %v1176 = vpop.f32.mrb[0].mxu0
        %v1177 = vadd.f32 0.0, %v1176
        %v1178 = vpop.f32.mrb[0].mxu0
        %1179 = vmatprep.mubr.f32.mxu0 0.0
        %1180 = vmatmul.mubr.f32.gmra.mrb[0].mxu0 %v976
        %v1181 = vpop.f32.mrb[0].mxu0
        %v1182 = vadd.f32 0.0, %v1181
        %v1183 = vpop.f32.mrb[0].mxu0
        %1184 = vmatprep.mubr.f32.mxu0 0.0
        %1185 = vmatmul.mubr.f32.gmra.mrb[0].mxu0 %v979
        %v1186 = vpop.f32.mrb[0].mxu0
        %v1187 = vadd.f32 0.0, %v1186
        %v1188 = vpop.f32.mrb[0].mxu0
        %1189 = vmatprep.mubr.f32.mxu0 0.0
        %1190 = vmatmul.mubr.f32.gmra.mrb[0].mxu0 %v982
        %v1191 = vpop.f32.mrb[0].mxu0
        %v1192 = vadd.f32 0.0, %v1191
        %v1193 = vpop.f32.mrb[0].mxu0
        %1194 = vmatprep.mubr.f32.mxu0 0.0
        %1195 = vmatmul.mubr.f32.gmra.mrb[0].mxu0 %v985
        %v1196 = vpop.f32.mrb[0].mxu0
        %v1197 = vadd.f32 0.0, %v1196
        %v1198 = vpop.f32.mrb[0].mxu0
        %1199 = vmatprep.mubr.f32.mxu0 0.0
        %1200 = vmatmul.mubr.f32.gmra.mrb[0].mxu0 %v988
        %v1201 = vpop.f32.mrb[0].mxu0
        %v1202 = vadd.f32 0.0, %v1201
        %v1203 = vpop.f32.mrb[0].mxu0
        %1204 = vmatprep.mubr.f32.mxu0 0.0
        %1205 = vmatmul.mubr.f32.gmra.mrb[0].mxu0 %v991
        %v1206 = vpop.f32.mrb[0].mxu0
        %v1207 = vadd.f32 0.0, %v1206
        %v1208 = vpop.f32.mrb[0].mxu0
        %1209 = vmatprep.mubr.f32.mxu0 0.0
        %1210 = vmatmul.mubr.f32.gmra.mrb[0].mxu0 %v994
        %v1211 = vpop.f32.mrb[0].mxu0
        %v1212 = vadd.f32 0.0, %v1211
        %v1213 = vpop.f32.mrb[0].mxu0
        %1214 = vmatprep.mubr.f32.mxu0 0.0
        %1215 = vmatmul.mubr.f32.gmra.mrb[0].mxu0 %v997
        %v1216 = vpop.f32.mrb[0].mxu0
        %v1217 = vadd.f32 0.0, %v1216
        %v1218 = vpop.f32.mrb[0].mxu0
        %1219 = vmatprep.mubr.f32.mxu0 0.0
        %1220 = vmatmul.mubr.f32.gmra.mrb[0].mxu0 %v1000
        %v1221 = vpop.f32.mrb[0].mxu0
        %v1222 = vadd.f32 0.0, %v1221
        %v1223 = vpop.f32.mrb[0].mxu0
        %1224 = vmatprep.mubr.f32.mxu0 0.0
        %1225 = vmatmul.mubr.f32.gmra.mrb[0].mxu0 %v1003
        %v1226 = vpop.f32.mrb[0].mxu0
        %v1227 = vadd.f32 0.0, %v1226
        %v1228 = vpop.f32.mrb[0].mxu0
        %1229 = vdwg.mxu0
        %v1230 = vld [vmem:[#allocation12] sm:$0x1]
        %v1232 = vlaneseq
        %v1233 = vshrl.u32 %v1232, 7
        %v1234 = vsub.s32 0, %v1233
        %v1235 = vrot.slane %v1230, %v1234
        %v1237 = vmul.f32 %v1072, %v1235
        %v1238 = vmul.f32 %v1077, %v1235
        %v1239 = vmul.f32 %v1082, %v1235
        %v1240 = vmul.f32 %v1087, %v1235
        %v1241 = vmul.f32 %v1092, %v1235
        %v1242 = vmul.f32 %v1097, %v1235
        %v1243 = vmul.f32 %v1102, %v1235
        %v1244 = vmul.f32 %v1107, %v1235
        %v1245 = vmul.f32 %v1112, %v1235
        %v1246 = vmul.f32 %v1117, %v1235
        %v1247 = vmul.f32 %v1122, %v1235
        %v1248 = vmul.f32 %v1127, %v1235
        %v1249 = vmul.f32 %v1132, %v1235
        %v1250 = vmul.f32 %v1137, %v1235
        %v1251 = vmul.f32 %v1142, %v1235
        %v1252 = vmul.f32 %v1147, %v1235
        %v1253 = vmul.f32 %v1152, %v1235
        %v1254 = vmul.f32 %v1157, %v1235
        %v1255 = vmul.f32 %v1162, %v1235
        %v1256 = vmul.f32 %v1167, %v1235
        %v1257 = vmul.f32 %v1172, %v1235
        %v1258 = vmul.f32 %v1177, %v1235
        %v1259 = vmul.f32 %v1182, %v1235
        %v1260 = vmul.f32 %v1187, %v1235
        %v1261 = vmul.f32 %v1192, %v1235
        %v1262 = vmul.f32 %v1197, %v1235
        %v1263 = vmul.f32 %v1202, %v1235
        %v1264 = vmul.f32 %v1207, %v1235
        %v1265 = vmul.f32 %v1212, %v1235
        %v1266 = vmul.f32 %v1217, %v1235
        %v1267 = vmul.f32 %v1222, %v1235
        %v1268 = vmul.f32 %v1227, %v1235
        %v1269 = vld [vmem:[#allocation13] sm:$0x1]
        %v1271 = vlaneseq
        %v1272 = vshrl.u32 %v1271, 7
        %v1273 = vsub.s32 0, %v1272
        %v1274 = vrot.slane %v1269, %v1273
        %v1276 = vadd.f32 %v1237, %v1274
        %v1277 = vadd.f32 %v1238, %v1274
        %v1278 = vadd.f32 %v1239, %v1274
        %v1279 = vadd.f32 %v1240, %v1274
        %v1280 = vadd.f32 %v1241, %v1274
        %v1281 = vadd.f32 %v1242, %v1274
        %v1282 = vadd.f32 %v1243, %v1274
        %v1283 = vadd.f32 %v1244, %v1274
        %v1284 = vadd.f32 %v1245, %v1274
        %v1285 = vadd.f32 %v1246, %v1274
        %v1286 = vadd.f32 %v1247, %v1274
        %v1287 = vadd.f32 %v1248, %v1274
        %v1288 = vadd.f32 %v1249, %v1274
        %v1289 = vadd.f32 %v1250, %v1274
        %v1290 = vadd.f32 %v1251, %v1274
        %v1291 = vadd.f32 %v1252, %v1274
        %v1292 = vadd.f32 %v1253, %v1274
        %v1293 = vadd.f32 %v1254, %v1274
        %v1294 = vadd.f32 %v1255, %v1274
        %v1295 = vadd.f32 %v1256, %v1274
        %v1296 = vadd.f32 %v1257, %v1274
        %v1297 = vadd.f32 %v1258, %v1274
        %v1298 = vadd.f32 %v1259, %v1274
        %v1299 = vadd.f32 %v1260, %v1274
        %v1300 = vadd.f32 %v1261, %v1274
        %v1301 = vadd.f32 %v1262, %v1274
        %v1302 = vadd.f32 %v1263, %v1274
        %v1303 = vadd.f32 %v1264, %v1274
        %v1304 = vadd.f32 %v1265, %v1274
        %v1305 = vadd.f32 %v1266, %v1274
        %v1306 = vadd.f32 %v1267, %v1274
        %v1307 = vadd.f32 %v1268, %v1274
        %v1308 = vadd.f32 %v842, %v1276
        %v1309 = vadd.f32 %v843, %v1277
        %v1310 = vadd.f32 %v844, %v1278
        %v1311 = vadd.f32 %v845, %v1279
        %v1312 = vadd.f32 %v846, %v1280
        %v1313 = vadd.f32 %v847, %v1281
        %v1314 = vadd.f32 %v848, %v1282
        %v1315 = vadd.f32 %v849, %v1283
        %v1316 = vadd.f32 %v850, %v1284
        %v1317 = vadd.f32 %v851, %v1285
        %v1318 = vadd.f32 %v852, %v1286
        %v1319 = vadd.f32 %v853, %v1287
        %v1320 = vadd.f32 %v854, %v1288
        %v1321 = vadd.f32 %v855, %v1289
        %v1322 = vadd.f32 %v856, %v1290
        %v1323 = vadd.f32 %v857, %v1291
        %v1324 = vadd.f32 %v858, %v1292
        %v1325 = vadd.f32 %v859, %v1293
        %v1326 = vadd.f32 %v860, %v1294
        %v1327 = vadd.f32 %v861, %v1295
        %v1328 = vadd.f32 %v862, %v1296
        %v1329 = vadd.f32 %v863, %v1297
        %v1330 = vadd.f32 %v864, %v1298
        %v1331 = vadd.f32 %v865, %v1299
        %v1332 = vadd.f32 %v866, %v1300
        %v1333 = vadd.f32 %v867, %v1301
        %v1334 = vadd.f32 %v868, %v1302
        %v1335 = vadd.f32 %v869, %v1303
        %v1336 = vadd.f32 %v870, %v1304
        %v1337 = vadd.f32 %v871, %v1305
        %v1338 = vadd.f32 %v872, %v1306
        %v1339 = vadd.f32 %v873, %v1307
        %v1340 = vmax.f32 %v1308, 0.0
        %v1341 = vmax.f32 %v1309, 0.0
        %v1342 = vmax.f32 %v1310, 0.0
        %v1343 = vmax.f32 %v1311, 0.0
        %v1344 = vmax.f32 %v1312, 0.0
        %v1345 = vmax.f32 %v1313, 0.0
        %v1346 = vmax.f32 %v1314, 0.0
        %v1347 = vmax.f32 %v1315, 0.0
        %v1348 = vmax.f32 %v1316, 0.0
        %v1349 = vmax.f32 %v1317, 0.0
        %v1350 = vmax.f32 %v1318, 0.0
        %v1351 = vmax.f32 %v1319, 0.0
        %v1352 = vmax.f32 %v1320, 0.0
        %v1353 = vmax.f32 %v1321, 0.0
        %v1354 = vmax.f32 %v1322, 0.0
        %v1355 = vmax.f32 %v1323, 0.0
        %v1356 = vmax.f32 %v1324, 0.0
        %v1357 = vmax.f32 %v1325, 0.0
        %v1358 = vmax.f32 %v1326, 0.0
        %v1359 = vmax.f32 %v1327, 0.0
        %v1360 = vmax.f32 %v1328, 0.0
        %v1361 = vmax.f32 %v1329, 0.0
        %v1362 = vmax.f32 %v1330, 0.0
        %v1363 = vmax.f32 %v1331, 0.0
        %v1364 = vmax.f32 %v1332, 0.0
        %v1365 = vmax.f32 %v1333, 0.0
        %v1366 = vmax.f32 %v1334, 0.0
        %v1367 = vmax.f32 %v1335, 0.0
        %v1368 = vmax.f32 %v1336, 0.0
        %v1369 = vmax.f32 %v1337, 0.0
        %v1370 = vmax.f32 %v1338, 0.0
        %v1371 = vmax.f32 %v1339, 0.0
        %vm1372 = vcmask 261120
        %1373 = vst.msk [vmem:[%s437] sm:$0xff] %vm1372, %v1340
        %1374 = vst.msk [vmem:[%s437 + $0x8] sm:$0xff] %vm1372, %v1341
        %1375 = vst.msk [vmem:[%s437 + $0x10] sm:$0xff] %vm1372, %v1342
        %1376 = vst.msk [vmem:[%s437 + $0x18] sm:$0xff] %vm1372, %v1343
        %1377 = vst.msk [vmem:[%s437 + $0x20] sm:$0xff] %vm1372, %v1344
        %1378 = vst.msk [vmem:[%s437 + $0x28] sm:$0xff] %vm1372, %v1345
        %1379 = vst.msk [vmem:[%s437 + $0x30] sm:$0xff] %vm1372, %v1346
        %1380 = vst.msk [vmem:[%s437 + $0x38] sm:$0xff] %vm1372, %v1347
        %1381 = vst.msk [vmem:[%s437 + $0x40] sm:$0xff] %vm1372, %v1348
        %1382 = vst.msk [vmem:[%s437 + $0x48] sm:$0xff] %vm1372, %v1349
        %1383 = vst.msk [vmem:[%s437 + $0x50] sm:$0xff] %vm1372, %v1350
        %1384 = vst.msk [vmem:[%s437 + $0x58] sm:$0xff] %vm1372, %v1351
        %1385 = vst.msk [vmem:[%s437 + $0x60] sm:$0xff] %vm1372, %v1352
        %1386 = vst.msk [vmem:[%s437 + $0x68] sm:$0xff] %vm1372, %v1353
        %1387 = vst.msk [vmem:[%s437 + $0x70] sm:$0xff] %vm1372, %v1354
        %1388 = vst.msk [vmem:[%s437 + $0x78] sm:$0xff] %vm1372, %v1355
        %1389 = vst.msk [vmem:[%s437 + $0x80] sm:$0xff] %vm1372, %v1356
        %1390 = vst.msk [vmem:[%s437 + $0x88] sm:$0xff] %vm1372, %v1357
        %1391 = vst.msk [vmem:[%s437 + $0x90] sm:$0xff] %vm1372, %v1358
        %1392 = vst.msk [vmem:[%s437 + $0x98] sm:$0xff] %vm1372, %v1359
        %1393 = vst.msk [vmem:[%s437 + $0xa0] sm:$0xff] %vm1372, %v1360
        %1394 = vst.msk [vmem:[%s437 + $0xa8] sm:$0xff] %vm1372, %v1361
        %1395 = vst.msk [vmem:[%s437 + $0xb0] sm:$0xff] %vm1372, %v1362
        %1396 = vst.msk [vmem:[%s437 + $0xb8] sm:$0xff] %vm1372, %v1363
        %1397 = vst.msk [vmem:[%s437 + $0xc0] sm:$0xff] %vm1372, %v1364
        %1398 = vst.msk [vmem:[%s437 + $0xc8] sm:$0xff] %vm1372, %v1365
        %1399 = vst.msk [vmem:[%s437 + $0xd0] sm:$0xff] %vm1372, %v1366
        %1400 = vst.msk [vmem:[%s437 + $0xd8] sm:$0xff] %vm1372, %v1367
        %1401 = vst.msk [vmem:[%s437 + $0xe0] sm:$0xff] %vm1372, %v1368
        %1402 = vst.msk [vmem:[%s437 + $0xe8] sm:$0xff] %vm1372, %v1369
        %1403 = vst.msk [vmem:[%s437 + $0xf0] sm:$0xff] %vm1372, %v1370
        %1404 = vst.msk [vmem:[%s437 + $0xf8] sm:$0xff] %vm1372, %v1371
        %s1405 = sand.u32 %s214, 1
        %s1406 = scalar_lea.sflag [#allocation4], %s1405
        %s1407 = sand.u32 %s214, 1
        %s1408 = smul.addr %s1407, 256
        %s1409 = scalar_lea.vmem [#allocation15], %s1408
        // Predicated region
        $region85: #{bottleneck_forward.3} parent=51 // pred_check
          %p1410 = pneg %p224
        $region86: #{bottleneck_forward.3} parent=51 // pred_check_branch
          %1412 = sbr.rel (%p1410) target = $region88
        $region87: #{bottleneck_forward.3} parent=51 // pred_region
          %s1413 = smul.u32 32, %s28
          %s1415 = ssub.s32 4096, 4096
          %1416 = vsyncadd %s1406, %s1415
          %s1417 = smul.addr %s1413, 128
          %s1418 = scalar_lea.hbm %s8, %s1417
          %s1419 = sshll.u32 %s1409, 4
          %s1420 = int_to_ptr.vmem [resolvable:$true] %s1419
          %1425 = dma.vmem_to_hbm [thread:$0]  %s1420, 4096, %s1418, %s1406, 128, 128, 8
        $region88: #{bottleneck_forward.3} parent=51 // pred_fallthru
          _
      $region52: #{bottleneck_forward.3} parent=5 // pred_fallthru
        _
      %p1426 = scmp.le.s32.totalorder 2, %s23
      // Predicated region
      $region89: #{bottleneck_forward.3} parent=5 // pred_check
        %p1427 = pneg %p1426
      $region90: #{bottleneck_forward.3} parent=5 // pred_check_branch
        %1429 = sbr.rel (%p1427) target = $region92
      $region91: #{bottleneck_forward.3} parent=5 // pred_region
        %s1430 = ssub.s32 %s23, 2
        // Predicated region
        $region93: #{bottleneck_forward.3} parent=91 // pred_check
          %p1431 = pneg %p230
        $region94: #{bottleneck_forward.3} parent=91 // pred_check_branch
          %1433 = sbr.rel (%p1431) target = $region96
        $region95: #{bottleneck_forward.3} parent=91 // pred_region
          %s1434 = sand.u32 %s215, 1
          %s1435 = scalar_lea.sflag [#allocation4], %s1434
          %s1436 = sand.u32 %s215, 1
          %s1437 = smul.addr %s1436, 256
          %s1438 = scalar_lea.vmem [#allocation15], %s1437
          %1439 = dma.done %s1435, 4096
        $region96: #{bottleneck_forward.3} parent=91 // pred_fallthru
          _
      $region92: #{bottleneck_forward.3} parent=5 // pred_fallthru
        _
    $region6: #{bottleneck_forward.3} parent=1 // loop_footer
      %s27 = sadd.s32 1, %s23
    $region7: #{bottleneck_forward.3} parent=1 // loop_footer_branch
      %22 = sbr.rel target = $region3
    $region8: #{bottleneck_forward.3} parent=1 // loop_exit
      _
    %1440 = vsyncpa [#allocation3], 1
    %s1441 = scalar_lea.sflag [#allocation3], 1
    %1442 = vsyncpa %s1441, 1
    %1443 = vsyncpa [#allocation6], 1
    %1444 = vsyncpa [#allocation9], 1
    %1445 = vsyncpa [#allocation14], 1
    %1446 = vsyncpa [#allocation4], 1
    %s1447 = scalar_lea.sflag [#allocation4], 1
    %1448 = vsyncpa %s1447, 1

// kernel: bottleneck_forward.2
$region0: #{bottleneck_forward.2}
  #allocation0 [shape = 'u32[]', space=smem, size = 0x4, offset = 0x4, fixed_abs, tag = 'smem constant byte address 0x4 - core index']
  #allocation1 [shape = 'u32[144,128]{1,0:T(1,128)}', space=vmem, size = 0x12000, scoped, tag = 'internal scratch']
  #allocation2 [shape = 'f32[18,18,8]{2,1,0:T(8,128)}', space=vmem, size = 0x36000, scoped, tag = 'scratch operand']
  %s0 = inlined_call_operand.hbm [shape: f32[2,16,16,16], index: 0, kind: input, shape index: {}]
  %s1 = inlined_call_operand.hbm [shape: f32[16,8], index: 1, kind: input, shape index: {}]
  %s2 = inlined_call_operand.hbm [shape: f32[1,8], index: 2, kind: input, shape index: {}]
  %s3 = inlined_call_operand.hbm [shape: f32[1,8], index: 3, kind: input, shape index: {}]
  %s4 = inlined_call_operand.hbm [shape: f32[72,8], index: 4, kind: input, shape index: {}]
  %s5 = inlined_call_operand.hbm [shape: f32[1,8], index: 5, kind: input, shape index: {}]
  %s6 = inlined_call_operand.hbm [shape: f32[1,8], index: 6, kind: input, shape index: {}]
  %s7 = inlined_call_operand.hbm [shape: f32[2,16,16,8], index: 7, kind: output, shape index: {}]
  %s8 = sld [smem:[#allocation0]]
  $region89: #{bottleneck_forward.2} parent=0
    _
  %s10 = ssub.s32 1, %s8
  %s11 = scalar_select 0, %s10, %s8
  $region1: #{bottleneck_forward.2} parent=0
    #allocation3 [shape = 'u8[262144]{0}', space=vmem, size = 0x40000, scoped, tag = 'input window, operand 0']
    #allocation4 [shape = 's32[2]{0}', space=sflag, size = 0x8, scoped, tag = 'scoped memory for bottleneck_forward.2']
    #allocation5 [shape = 's32[2]{0}', space=sflag, size = 0x8, scoped, tag = 'scoped memory for bottleneck_forward.2']
    #allocation6 [shape = 'u8[8192]{0}', space=vmem, size = 0x2000, scoped, tag = 'input window, operand 1, single buffered']
    #allocation7 [shape = 's32[1]{0}', space=sflag, size = 0x4, scoped, tag = 'scoped memory for bottleneck_forward.2']
    #allocation8 [shape = 'u8[512]{0}', space=vmem, size = 0x400, scoped, tag = 'input window, operand 2, single buffered']
    #allocation9 [shape = 'u8[512]{0}', space=vmem, size = 0x400, scoped, tag = 'input window, operand 3, single buffered']
    #allocation10 [shape = 's32[1]{0}', space=sflag, size = 0x4, scoped, tag = 'scoped memory for bottleneck_forward.2']
    #allocation11 [shape = 'u8[36864]{0}', space=vmem, size = 0x9000, scoped, tag = 'input window, operand 4, single buffered']
    #allocation12 [shape = 'u8[512]{0}', space=vmem, size = 0x400, scoped, tag = 'input window, operand 5, single buffered']
    #allocation13 [shape = 's32[1]{0}', space=sflag, size = 0x4, scoped, tag = 'scoped memory for bottleneck_forward.2']
    #allocation14 [shape = 'u8[512]{0}', space=vmem, size = 0x400, scoped, tag = 'input window, operand 6, single buffered']
    #allocation15 [shape = 'u8[262144]{0}', space=vmem, size = 0x40000, scoped, tag = 'output window, operand 0']
    %12 = vsyncpa [#allocation4], 0
    %s13 = scalar_lea.sflag [#allocation4], 1
    %14 = vsyncpa %s13, 0
    %15 = vsyncpa [#allocation7], 0
    %16 = vsyncpa [#allocation10], 0
    %17 = vsyncpa [#allocation13], 0
    %18 = vsyncpa [#allocation5], 0
    %s19 = scalar_lea.sflag [#allocation5], 1
    %20 = vsyncpa %s19, 0
    loop: start=0, step=1, limit=4
    $region2: #{bottleneck_forward.2} parent=1 // loop_pre_header
      _
    $region3: #{bottleneck_forward.2} parent=1 // loop_header
      %s22 = sphi 0, %s26
      %p23 = scmp.ge.s32.totalorder %s22, 4
      %s32 = sphi 0, %s34
      %s35 = sphi 0, %s32
      %s36 = sphi 0, %s35
      %s52 = sphi 0, %s36
      %s56 = sphi 0, %s56
      %s58 = sphi 0, %s56
      %s59 = sphi 0, %s58
      %s73 = sphi 0, %s59
      %s77 = sphi 0, %s77
      %s79 = sphi 0, %s77
      %s80 = sphi 0, %s79
      %s94 = sphi 0, %s80
      %s98 = sphi 0, %s98
      %s100 = sphi 0, %s98
      %s101 = sphi 0, %s100
      %s115 = sphi 0, %s101
      %s119 = sphi 0, %s119
      %s121 = sphi 0, %s119
      %s122 = sphi 0, %s121
      %s136 = sphi 0, %s122
      %s140 = sphi 0, %s140
      %s142 = sphi 0, %s140
      %s143 = sphi 0, %s142
      %s157 = sphi 0, %s143
      %s161 = sphi 0, %s161
      %s163 = sphi 0, %s161
      %s164 = sphi 0, %s163
      %s178 = sphi 0, %s164
      %s184 = sphi 0, %s186
      %s187 = sphi 0, %s184
      %s188 = sphi 0, %s187
      %s204 = sphi 0, %s188
    $region4: #{bottleneck_forward.2} parent=1 // loop_header_branch
      %25 = sbr.rel (%p23) target = $region8
    $region5: #{bottleneck_forward.2} parent=1 // loop_body
      %s27 = ssub.s32 %s22, 1
      %s28 = ssub.s32 %s22, 2
      %s29 = sadd.s32 %s22, 1
      %s30 = ssub.s32 %s22, %s29
      %p31 = scmp.eq.s32.totalorder %s30, 0
      %s33 = sadd.s32 %s32, 1
      %s34 = scalar_select %p31, %s32, %s33
      %p37 = pneg %p31
      %p38 = scmp.eq.s32.totalorder %s22, 1
      %p39 = por %p37, %p38
      %p40 = scmp.ne.s32.totalorder %s32, %s35
      %p41 = scmp.eq.s32.totalorder %s22, 0
      %p42 = por %p40, %p41
      %p43 = scmp.ne.s32.totalorder %s32, %s35
      %p44 = scmp.eq.s32.totalorder %s27, 1
      %p45 = por %p43, %p44
      %p46 = scmp.ne.s32.totalorder %s35, %s36
      %p47 = scmp.eq.s32.totalorder %s27, 0
      %p48 = por %p46, %p47
      %p49 = scmp.ne.s32.totalorder %s35, %s36
      %p50 = scmp.eq.s32.totalorder %s28, 1
      %p51 = por %p49, %p50
      %p53 = scmp.ne.s32.totalorder %s36, %s52
      %p54 = scmp.eq.s32.totalorder %s28, 0
      %p55 = por %p53, %p54
      %s57 = sadd.s32 %s56, 1
      %p60 = scmp.eq.s32.totalorder %s22, 1
      %p61 = scmp.ne.s32.totalorder %s56, %s58
      %p62 = scmp.eq.s32.totalorder %s22, 0
      %p63 = por %p61, %p62
      %p64 = scmp.ne.s32.totalorder %s56, %s58
      %p65 = scmp.eq.s32.totalorder %s27, 1
      %p66 = por %p64, %p65
      %p67 = scmp.ne.s32.totalorder %s58, %s59
      %p68 = scmp.eq.s32.totalorder %s27, 0
      %p69 = por %p67, %p68
      %p70 = scmp.ne.s32.totalorder %s58, %s59
      %p71 = scmp.eq.s32.totalorder %s28, 1
      %p72 = por %p70, %p71
      %p74 = scmp.ne.s32.totalorder %s59, %s73
      %p75 = scmp.eq.s32.totalorder %s28, 0
      %p76 = por %p74, %p75
      %s78 = sadd.s32 %s77, 1
      %p81 = scmp.eq.s32.totalorder %s22, 1
      %p82 = scmp.ne.s32.totalorder %s77, %s79
      %p83 = scmp.eq.s32.totalorder %s22, 0
      %p84 = por %p82, %p83
      %p85 = scmp.ne.s32.totalorder %s77, %s79
      %p86 = scmp.eq.s32.totalorder %s27, 1
      %p87 = por %p85, %p86
      %p88 = scmp.ne.s32.totalorder %s79, %s80
      %p89 = scmp.eq.s32.totalorder %s27, 0
      %p90 = por %p88, %p89
      %p91 = scmp.ne.s32.totalorder %s79, %s80
      %p92 = scmp.eq.s32.totalorder %s28, 1
      %p93 = por %p91, %p92
      %p95 = scmp.ne.s32.totalorder %s80, %s94
      %p96 = scmp.eq.s32.totalorder %s28, 0
      %p97 = por %p95, %p96
      %s99 = sadd.s32 %s98, 1
      %p102 = scmp.eq.s32.totalorder %s22, 1
      %p103 = scmp.ne.s32.totalorder %s98, %s100
      %p104 = scmp.eq.s32.totalorder %s22, 0
      %p105 = por %p103, %p104
      %p106 = scmp.ne.s32.totalorder %s98, %s100
      %p107 = scmp.eq.s32.totalorder %s27, 1
      %p108 = por %p106, %p107
      %p109 = scmp.ne.s32.totalorder %s100, %s101
      %p110 = scmp.eq.s32.totalorder %s27, 0
      %p111 = por %p109, %p110
      %p112 = scmp.ne.s32.totalorder %s100, %s101
      %p113 = scmp.eq.s32.totalorder %s28, 1
      %p114 = por %p112, %p113
      %p116 = scmp.ne.s32.totalorder %s101, %s115
      %p117 = scmp.eq.s32.totalorder %s28, 0
      %p118 = por %p116, %p117
      %s120 = sadd.s32 %s119, 1
      %p123 = scmp.eq.s32.totalorder %s22, 1
      %p124 = scmp.ne.s32.totalorder %s119, %s121
      %p125 = scmp.eq.s32.totalorder %s22, 0
      %p126 = por %p124, %p125
      %p127 = scmp.ne.s32.totalorder %s119, %s121
      %p128 = scmp.eq.s32.totalorder %s27, 1
      %p129 = por %p127, %p128
      %p130 = scmp.ne.s32.totalorder %s121, %s122
      %p131 = scmp.eq.s32.totalorder %s27, 0
      %p132 = por %p130, %p131
      %p133 = scmp.ne.s32.totalorder %s121, %s122
      %p134 = scmp.eq.s32.totalorder %s28, 1
      %p135 = por %p133, %p134
      %p137 = scmp.ne.s32.totalorder %s122, %s136
      %p138 = scmp.eq.s32.totalorder %s28, 0
      %p139 = por %p137, %p138
      %s141 = sadd.s32 %s140, 1
      %p144 = scmp.eq.s32.totalorder %s22, 1
      %p145 = scmp.ne.s32.totalorder %s140, %s142
      %p146 = scmp.eq.s32.totalorder %s22, 0
      %p147 = por %p145, %p146
      %p148 = scmp.ne.s32.totalorder %s140, %s142
      %p149 = scmp.eq.s32.totalorder %s27, 1
      %p150 = por %p148, %p149
      %p151 = scmp.ne.s32.totalorder %s142, %s143
      %p152 = scmp.eq.s32.totalorder %s27, 0
      %p153 = por %p151, %p152
      %p154 = scmp.ne.s32.totalorder %s142, %s143
      %p155 = scmp.eq.s32.totalorder %s28, 1
      %p156 = por %p154, %p155
      %p158 = scmp.ne.s32.totalorder %s143, %s157
      %p159 = scmp.eq.s32.totalorder %s28, 0
      %p160 = por %p158, %p159
      %s162 = sadd.s32 %s161, 1
      %p165 = scmp.eq.s32.totalorder %s22, 1
      %p166 = scmp.ne.s32.totalorder %s161, %s163
      %p167 = scmp.eq.s32.totalorder %s22, 0
      %p168 = por %p166, %p167
      %p169 = scmp.ne.s32.totalorder %s161, %s163
      %p170 = scmp.eq.s32.totalorder %s27, 1
      %p171 = por %p169, %p170
      %p172 = scmp.ne.s32.totalorder %s163, %s164
      %p173 = scmp.eq.s32.totalorder %s27, 0
      %p174 = por %p172, %p173
      %p175 = scmp.ne.s32.totalorder %s163, %s164
      %p176 = scmp.eq.s32.totalorder %s28, 1
      %p177 = por %p175, %p176
      %p179 = scmp.ne.s32.totalorder %s164, %s178
      %p180 = scmp.eq.s32.totalorder %s28, 0
      %p181 = por %p179, %p180
      %s182 = ssub.s32 %s22, %s29
      %p183 = scmp.eq.s32.totalorder %s182, 0
      %s185 = sadd.s32 %s184, 1
      %s186 = scalar_select %p183, %s184, %s185
      %p189 = pneg %p183
      %p190 = scmp.eq.s32.totalorder %s22, 1
      %p191 = por %p189, %p190
      %p192 = scmp.ne.s32.totalorder %s184, %s187
      %p193 = scmp.eq.s32.totalorder %s22, 0
      %p194 = por %p192, %p193
      %p195 = scmp.ne.s32.totalorder %s184, %s187
      %p196 = scmp.eq.s32.totalorder %s27, 1
      %p197 = por %p195, %p196
      %p198 = scmp.ne.s32.totalorder %s187, %s188
      %p199 = scmp.eq.s32.totalorder %s27, 0
      %p200 = por %p198, %p199
      %p201 = scmp.ne.s32.totalorder %s187, %s188
      %p202 = scmp.eq.s32.totalorder %s28, 1
      %p203 = por %p201, %p202
      %p205 = scmp.ne.s32.totalorder %s188, %s204
      %p206 = scmp.eq.s32.totalorder %s28, 0
      %p207 = por %p205, %p206
      %p208 = scmp.le.s32.totalorder 1, %s22
      %p209 = scmp.lt.s32.totalorder %s22, 3
      %p210 = pnand %p208, %p209
      %p211 = pneg %p210
      // Predicated region
      $region9: #{bottleneck_forward.2} parent=5 // pred_check
        _
      $region10: #{bottleneck_forward.2} parent=5 // pred_check_branch
        %213 = sbr.rel (%p210) target = $region12
      $region11: #{bottleneck_forward.2} parent=5 // pred_region
        %s214 = ssub.s32 %s22, 1
        // Predicated region
        $region13: #{bottleneck_forward.2} parent=11 // pred_check
          %p215 = pneg %p69
        $region14: #{bottleneck_forward.2} parent=11 // pred_check_branch
          %217 = sbr.rel (%p215) target = $region16
        $region15: #{bottleneck_forward.2} parent=11 // pred_region
          %s219 = ssub.s32 256, 256
          %220 = vsyncadd [#allocation7], %s219
          %s221 = sshll.u32 [#allocation6], 4
          %s222 = int_to_ptr.vmem [resolvable:$true] %s221
          %227 = dma.hbm_to_vmem [thread:$0]  %s1, 256, %s222, [#allocation7], 128, 128, 8
        $region16: #{bottleneck_forward.2} parent=11 // pred_fallthru
          _
        // Predicated region
        $region17: #{bottleneck_forward.2} parent=11 // pred_check
          %p228 = pneg %p90
        $region18: #{bottleneck_forward.2} parent=11 // pred_check_branch
          %230 = sbr.rel (%p228) target = $region20
        $region19: #{bottleneck_forward.2} parent=11 // pred_region
          %s232 = ssub.s32 16, 16
          %233 = vsyncadd [#allocation7], %s232
          %s235 = sshll.u32 [#allocation8], 4
          %s236 = int_to_ptr.vmem [resolvable:$true] %s235
          %238 = dma.hbm_to_vmem [thread:$0]  %s2, 16, %s236, [#allocation7]
        $region20: #{bottleneck_forward.2} parent=11 // pred_fallthru
          _
        // Predicated region
        $region21: #{bottleneck_forward.2} parent=11 // pred_check
          %p239 = pneg %p111
        $region22: #{bottleneck_forward.2} parent=11 // pred_check_branch
          %241 = sbr.rel (%p239) target = $region24
        $region23: #{bottleneck_forward.2} parent=11 // pred_region
          %s243 = ssub.s32 16, 16
          %244 = vsyncadd [#allocation10], %s243
          %s246 = sshll.u32 [#allocation9], 4
          %s247 = int_to_ptr.vmem [resolvable:$true] %s246
          %249 = dma.hbm_to_vmem [thread:$0]  %s3, 16, %s247, [#allocation10]
        $region24: #{bottleneck_forward.2} parent=11 // pred_fallthru
          _
        // Predicated region
        $region25: #{bottleneck_forward.2} parent=11 // pred_check
          %p250 = pneg %p132
        $region26: #{bottleneck_forward.2} parent=11 // pred_check_branch
          %252 = sbr.rel (%p250) target = $region28
        $region27: #{bottleneck_forward.2} parent=11 // pred_region
          %s254 = ssub.s32 1152, 1152
          %255 = vsyncadd [#allocation10], %s254
          %s256 = sshll.u32 [#allocation11], 4
          %s257 = int_to_ptr.vmem [resolvable:$true] %s256
          %262 = dma.hbm_to_vmem [thread:$0]  %s4, 1152, %s257, [#allocation10], 128, 128, 8
        $region28: #{bottleneck_forward.2} parent=11 // pred_fallthru
          _
        // Predicated region
        $region29: #{bottleneck_forward.2} parent=11 // pred_check
          %p263 = pneg %p153
        $region30: #{bottleneck_forward.2} parent=11 // pred_check_branch
          %265 = sbr.rel (%p263) target = $region32
        $region31: #{bottleneck_forward.2} parent=11 // pred_region
          %s267 = ssub.s32 16, 16
          %268 = vsyncadd [#allocation13], %s267
          %s270 = sshll.u32 [#allocation12], 4
          %s271 = int_to_ptr.vmem [resolvable:$true] %s270
          %273 = dma.hbm_to_vmem [thread:$0]  %s5, 16, %s271, [#allocation13]
        $region32: #{bottleneck_forward.2} parent=11 // pred_fallthru
          _
        // Predicated region
        $region33: #{bottleneck_forward.2} parent=11 // pred_check
          %p274 = pneg %p174
        $region34: #{bottleneck_forward.2} parent=11 // pred_check_branch
          %276 = sbr.rel (%p274) target = $region36
        $region35: #{bottleneck_forward.2} parent=11 // pred_region
          %s278 = ssub.s32 16, 16
          %279 = vsyncadd [#allocation13], %s278
          %s281 = sshll.u32 [#allocation14], 4
          %s282 = int_to_ptr.vmem [resolvable:$true] %s281
          %284 = dma.hbm_to_vmem [thread:$0]  %s6, 16, %s282, [#allocation13]
        $region36: #{bottleneck_forward.2} parent=11 // pred_fallthru
          _
      $region12: #{bottleneck_forward.2} parent=5 // pred_fallthru
        _
      %p285 = scmp.lt.s32.totalorder %s22, 2
      // Predicated region
      $region37: #{bottleneck_forward.2} parent=5 // pred_check
        %p286 = pneg %p285
      $region38: #{bottleneck_forward.2} parent=5 // pred_check_branch
        %288 = sbr.rel (%p286) target = $region40
      $region39: #{bottleneck_forward.2} parent=5 // pred_region
        // Predicated region
        $region41: #{bottleneck_forward.2} parent=39 // pred_check
          %p289 = pneg %p42
        $region42: #{bottleneck_forward.2} parent=39 // pred_check_branch
          %291 = sbr.rel (%p289) target = $region44
        $region43: #{bottleneck_forward.2} parent=39 // pred_region
          %s292 = sand.u32 %s32, 1
          %s293 = scalar_lea.sflag [#allocation4], %s292
          %s294 = sand.u32 %s32, 1
          %s295 = smul.addr %s294, 256
          %s296 = scalar_lea.vmem [#allocation3], %s295
          %s298 = ssub.s32 4096, 4096
          %299 = vsyncadd %s293, %s298
          %s300 = smul.addr %s22, 32
          %s301 = smul.addr %s300, 128
          %s302 = scalar_lea.hbm %s0, %s301
          %s303 = sshll.u32 %s296, 4
          %s304 = int_to_ptr.vmem [resolvable:$true] %s303
          %309 = dma.hbm_to_vmem [thread:$0]  %s302, 4096, %s304, %s293, 128, 128, 8
        $region44: #{bottleneck_forward.2} parent=39 // pred_fallthru
          _
      $region40: #{bottleneck_forward.2} parent=5 // pred_fallthru
        _
      %p310 = scmp.le.s32.totalorder 1, %s22
      %p311 = scmp.lt.s32.totalorder %s22, 3
      %p312 = pnand %p310, %p311
      %p313 = pneg %p312
      // Predicated region
      $region45: #{bottleneck_forward.2} parent=5 // pred_check
        _
      $region46: #{bottleneck_forward.2} parent=5 // pred_check_branch
        %315 = sbr.rel (%p312) target = $region48
      $region47: #{bottleneck_forward.2} parent=5 // pred_region
        %s316 = ssub.s32 %s22, 1
        %s317 = sand.u32 %s35, 1
        %s318 = scalar_lea.sflag [#allocation4], %s317
        %s319 = sand.u32 %s35, 1
        %s320 = smul.addr %s319, 256
        %s321 = scalar_lea.vmem [#allocation3], %s320
        // Predicated region
        $region49: #{bottleneck_forward.2} parent=47 // pred_check
          %p322 = pneg %p48
        $region50: #{bottleneck_forward.2} parent=47 // pred_check_branch
          %324 = sbr.rel (%p322) target = $region52
        $region51: #{bottleneck_forward.2} parent=47 // pred_region
          %325 = dma.done %s318, 4096
        $region52: #{bottleneck_forward.2} parent=47 // pred_fallthru
          _
        // Predicated region
        $region53: #{bottleneck_forward.2} parent=47 // pred_check
          %p326 = pneg %p69
        $region54: #{bottleneck_forward.2} parent=47 // pred_check_branch
          %328 = sbr.rel (%p326) target = $region56
        $region55: #{bottleneck_forward.2} parent=47 // pred_region
          %329 = dma.done [#allocation7], 256
        $region56: #{bottleneck_forward.2} parent=47 // pred_fallthru
          _
        // Predicated region
        $region57: #{bottleneck_forward.2} parent=47 // pred_check
          %p330 = pneg %p90
        $region58: #{bottleneck_forward.2} parent=47 // pred_check_branch
          %332 = sbr.rel (%p330) target = $region60
        $region59: #{bottleneck_forward.2} parent=47 // pred_region
          %333 = dma.done [#allocation7], 16
        $region60: #{bottleneck_forward.2} parent=47 // pred_fallthru
          _
        // Predicated region
        $region61: #{bottleneck_forward.2} parent=47 // pred_check
          %p334 = pneg %p111
        $region62: #{bottleneck_forward.2} parent=47 // pred_check_branch
          %336 = sbr.rel (%p334) target = $region64
        $region63: #{bottleneck_forward.2} parent=47 // pred_region
          %337 = dma.done [#allocation10], 16
        $region64: #{bottleneck_forward.2} parent=47 // pred_fallthru
          _
        // Predicated region
        $region65: #{bottleneck_forward.2} parent=47 // pred_check
          %p338 = pneg %p132
        $region66: #{bottleneck_forward.2} parent=47 // pred_check_branch
          %340 = sbr.rel (%p338) target = $region68
        $region67: #{bottleneck_forward.2} parent=47 // pred_region
          %341 = dma.done [#allocation10], 1152
        $region68: #{bottleneck_forward.2} parent=47 // pred_fallthru
          _
        // Predicated region
        $region69: #{bottleneck_forward.2} parent=47 // pred_check
          %p342 = pneg %p153
        $region70: #{bottleneck_forward.2} parent=47 // pred_check_branch
          %344 = sbr.rel (%p342) target = $region72
        $region71: #{bottleneck_forward.2} parent=47 // pred_region
          %345 = dma.done [#allocation13], 16
        $region72: #{bottleneck_forward.2} parent=47 // pred_fallthru
          _
        // Predicated region
        $region73: #{bottleneck_forward.2} parent=47 // pred_check
          %p346 = pneg %p174
        $region74: #{bottleneck_forward.2} parent=47 // pred_check_branch
          %348 = sbr.rel (%p346) target = $region76
        $region75: #{bottleneck_forward.2} parent=47 // pred_region
          %349 = dma.done [#allocation13], 16
        $region76: #{bottleneck_forward.2} parent=47 // pred_fallthru
          _
        %s350 = sand.u32 %s35, 1
        %s351 = scalar_lea.sflag [#allocation4], %s350
        %s352 = sand.u32 %s35, 1
        %s353 = smul.addr %s352, 256
        %s354 = scalar_lea.vmem [#allocation3], %s353
        %p355 = pneg %p48
        %p356 = pneg %p45
        %p357 = pneg %p69
        %p358 = pneg %p66
        %p359 = pneg %p90
        %p360 = pneg %p87
        %p361 = pneg %p111
        %p362 = pneg %p108
        %p363 = pneg %p132
        %p364 = pneg %p129
        %p365 = pneg %p153
        %p366 = pneg %p150
        %p367 = pneg %p174
        %p368 = pneg %p171
        %p369 = pneg %p200
        %p370 = pneg %p197
        %s371 = sand.u32 %s187, 1
        %s372 = scalar_lea.sflag [#allocation5], %s371
        %s373 = sand.u32 %s187, 1
        %s374 = smul.addr %s373, 256
        %s375 = scalar_lea.vmem [#allocation15], %s374
        %v376 = vld [vmem:[%s321] sm:$0xff]
        %v377 = vld [vmem:[%s321 + $0x8] sm:$0xff]
        %v378 = vld [vmem:[%s321 + $0x10] sm:$0xff]
        %v379 = vld [vmem:[%s321 + $0x18] sm:$0xff]
        %v380 = vld [vmem:[%s321 + $0x20] sm:$0xff]
        %v381 = vld [vmem:[%s321 + $0x28] sm:$0xff]
        %v382 = vld [vmem:[%s321 + $0x30] sm:$0xff]
        %v383 = vld [vmem:[%s321 + $0x38] sm:$0xff]
        %v384 = vld [vmem:[%s321 + $0x40] sm:$0xff]
        %v385 = vld [vmem:[%s321 + $0x48] sm:$0xff]
        %v386 = vld [vmem:[%s321 + $0x50] sm:$0xff]
        %v387 = vld [vmem:[%s321 + $0x58] sm:$0xff]
        %v388 = vld [vmem:[%s321 + $0x60] sm:$0xff]
        %v389 = vld [vmem:[%s321 + $0x68] sm:$0xff]
        %v390 = vld [vmem:[%s321 + $0x70] sm:$0xff]
        %v391 = vld [vmem:[%s321 + $0x78] sm:$0xff]
        %v392 = vld [vmem:[%s321 + $0x80] sm:$0xff]
        %v393 = vld [vmem:[%s321 + $0x88] sm:$0xff]
        %v394 = vld [vmem:[%s321 + $0x90] sm:$0xff]
        %v395 = vld [vmem:[%s321 + $0x98] sm:$0xff]
        %v396 = vld [vmem:[%s321 + $0xa0] sm:$0xff]
        %v397 = vld [vmem:[%s321 + $0xa8] sm:$0xff]
        %v398 = vld [vmem:[%s321 + $0xb0] sm:$0xff]
        %v399 = vld [vmem:[%s321 + $0xb8] sm:$0xff]
        %v400 = vld [vmem:[%s321 + $0xc0] sm:$0xff]
        %v401 = vld [vmem:[%s321 + $0xc8] sm:$0xff]
        %v402 = vld [vmem:[%s321 + $0xd0] sm:$0xff]
        %v403 = vld [vmem:[%s321 + $0xd8] sm:$0xff]
        %v404 = vld [vmem:[%s321 + $0xe0] sm:$0xff]
        %v405 = vld [vmem:[%s321 + $0xe8] sm:$0xff]
        %v406 = vld [vmem:[%s321 + $0xf0] sm:$0xff]
        %v407 = vld [vmem:[%s321 + $0xf8] sm:$0xff]
        %v408 = vld [vmem:[#allocation6] sm:$0xff]
        %v409 = vld [vmem:[#allocation6 + $0x8] sm:$0xff]
        %vm410 = vcmask 130048
        %v412 = vsel %vm410, %v376, 0
        %v415 = vsel %vm410, %v377, 0
        %v418 = vsel %vm410, %v378, 0
        %v421 = vsel %vm410, %v379, 0
        %v424 = vsel %vm410, %v380, 0
        %v427 = vsel %vm410, %v381, 0
        %v430 = vsel %vm410, %v382, 0
        %v433 = vsel %vm410, %v383, 0
        %v436 = vsel %vm410, %v384, 0
        %v439 = vsel %vm410, %v385, 0
        %v442 = vsel %vm410, %v386, 0
        %v445 = vsel %vm410, %v387, 0
        %v448 = vsel %vm410, %v388, 0
        %v451 = vsel %vm410, %v389, 0
        %v454 = vsel %vm410, %v390, 0
        %v457 = vsel %vm410, %v391, 0
        %v460 = vsel %vm410, %v392, 0
        %v463 = vsel %vm410, %v393, 0
        %v466 = vsel %vm410, %v394, 0
        %v469 = vsel %vm410, %v395, 0
        %v472 = vsel %vm410, %v396, 0
        %v475 = vsel %vm410, %v397, 0
        %v478 = vsel %vm410, %v398, 0
        %v481 = vsel %vm410, %v399, 0
        %v484 = vsel %vm410, %v400, 0
        %v487 = vsel %vm410, %v401, 0
        %v490 = vsel %vm410, %v402, 0
        %v493 = vsel %vm410, %v403, 0
        %v496 = vsel %vm410, %v404, 0
        %v499 = vsel %vm410, %v405, 0
        %v502 = vsel %vm410, %v406, 0
        %v505 = vsel %vm410, %v407, 0
        %507 = vmatprep.subr.mxu0 0.0
        %508 = vmatpush1.msra.mxu0 %v408
        %509 = vmatprep.subr.mxu0 0.0
        %510 = vmatpush1.msra.mxu0 %v409
        %511 = vmatprep.subr.mxu0 0.0
        %512 = vmatpush1.msra.mxu0 0.0
        %513 = vmatprep.subr.mxu0 0.0
        %514 = vmatpush1.msra.mxu0 0.0
        %515 = vmatprep.subr.mxu0 0.0
        %516 = vmatpush1.msra.mxu0 0.0
        %517 = vmatprep.subr.mxu0 0.0
        %518 = vmatpush1.msra.mxu0 0.0
        %519 = vmatprep.subr.mxu0 0.0
        %520 = vmatpush1.msra.mxu0 0.0
        %521 = vmatprep.subr.mxu0 0.0
        %522 = vmatpush1.msra.mxu0 0.0
        %523 = vmatprep.subr.mxu0 0.0
        %524 = vmatpush1.msra.mxu0 0.0
        %525 = vmatprep.subr.mxu0 0.0
        %526 = vmatpush1.msra.mxu0 0.0
        %527 = vmatprep.subr.mxu0 0.0
        %528 = vmatpush1.msra.mxu0 0.0
        %529 = vmatprep.subr.mxu0 0.0
        %530 = vmatpush1.msra.mxu0 0.0
        %531 = vmatprep.subr.mxu0 0.0
        %532 = vmatpush1.msra.mxu0 0.0
        %533 = vmatprep.subr.mxu0 0.0
        %534 = vmatpush1.msra.mxu0 0.0
        %535 = vmatprep.subr.mxu0 0.0
        %536 = vmatpush1.msra.mxu0 0.0
        %537 = vmatprep.subr.mxu0 0.0
        %538 = vmatpush1.msra.mxu0 0.0
        %539 = vmatprep.subr.mxu0 0.0
        %540 = vmatpush1.msra.mxu0 0.0
        %541 = vmatprep.subr.mxu0 0.0
        %542 = vmatpush1.msra.mxu0 0.0
        %543 = vmatprep.subr.mxu0 0.0
        %544 = vmatpush1.msra.mxu0 0.0
        %545 = vmatprep.subr.mxu0 0.0
        %546 = vmatpush1.msra.mxu0 0.0
        %547 = vmatprep.subr.mxu0 0.0
        %548 = vmatpush1.msra.mxu0 0.0
        %549 = vmatprep.subr.mxu0 0.0
        %550 = vmatpush1.msra.mxu0 0.0
        %551 = vmatprep.subr.mxu0 0.0
        %552 = vmatpush1.msra.mxu0 0.0
        %553 = vmatprep.subr.mxu0 0.0
        %554 = vmatpush1.msra.mxu0 0.0
        %555 = vmatprep.subr.mxu0 0.0
        %556 = vmatpush1.msra.mxu0 0.0
        %557 = vmatprep.subr.mxu0 0.0
        %558 = vmatpush1.msra.mxu0 0.0
        %559 = vmatprep.subr.mxu0 0.0
        %560 = vmatpush1.msra.mxu0 0.0
        %561 = vmatprep.subr.mxu0 0.0
        %562 = vmatpush1.msra.mxu0 0.0
        %563 = vmatprep.subr.mxu0 0.0
        %564 = vmatpush1.msra.mxu0 0.0
        %565 = vmatprep.subr.mxu0 0.0
        %566 = vmatpush1.msra.mxu0 0.0
        %567 = vmatprep.subr.mxu0 0.0
        %568 = vmatpush1.msra.mxu0 0.0
        %569 = vmatprep.subr.mxu0 0.0
        %570 = vmatpush1.msra.mxu0 0.0
        %571 = vmatprep.mubr.f32.mxu0 0.0
        %572 = vmatmul.mubr.f32.gmra.mrb[0].mxu0 %v412
        %v573 = vpop.f32.mrb[0].mxu0
        %v574 = vadd.f32 0.0, %v573
        %v575 = vpop.f32.mrb[0].mxu0
        %576 = vmatprep.mubr.f32.mxu0 0.0
        %577 = vmatmul.mubr.f32.gmra.mrb[0].mxu0 %v415
        %v578 = vpop.f32.mrb[0].mxu0
        %v579 = vadd.f32 0.0, %v578
        %v580 = vpop.f32.mrb[0].mxu0
        %581 = vmatprep.mubr.f32.mxu0 0.0
        %582 = vmatmul.mubr.f32.gmra.mrb[0].mxu0 %v418
        %v583 = vpop.f32.mrb[0].mxu0
        %v584 = vadd.f32 0.0, %v583
        %v585 = vpop.f32.mrb[0].mxu0
        %586 = vmatprep.mubr.f32.mxu0 0.0
        %587 = vmatmul.mubr.f32.gmra.mrb[0].mxu0 %v421
        %v588 = vpop.f32.mrb[0].mxu0
        %v589 = vadd.f32 0.0, %v588
        %v590 = vpop.f32.mrb[0].mxu0
        %591 = vmatprep.mubr.f32.mxu0 0.0
        %592 = vmatmul.mubr.f32.gmra.mrb[0].mxu0 %v424
        %v593 = vpop.f32.mrb[0].mxu0
        %v594 = vadd.f32 0.0, %v593
        %v595 = vpop.f32.mrb[0].mxu0
        %596 = vmatprep.mubr.f32.mxu0 0.0
        %597 = vmatmul.mubr.f32.gmra.mrb[0].mxu0 %v427
        %v598 = vpop.f32.mrb[0].mxu0
        %v599 = vadd.f32 0.0, %v598
        %v600 = vpop.f32.mrb[0].mxu0
        %601 = vmatprep.mubr.f32.mxu0 0.0
        %602 = vmatmul.mubr.f32.gmra.mrb[0].mxu0 %v430
        %v603 = vpop.f32.mrb[0].mxu0
        %v604 = vadd.f32 0.0, %v603
        %v605 = vpop.f32.mrb[0].mxu0
        %606 = vmatprep.mubr.f32.mxu0 0.0
        %607 = vmatmul.mubr.f32.gmra.mrb[0].mxu0 %v433
        %v608 = vpop.f32.mrb[0].mxu0
        %v609 = vadd.f32 0.0, %v608
        %v610 = vpop.f32.mrb[0].mxu0
        %611 = vmatprep.mubr.f32.mxu0 0.0
        %612 = vmatmul.mubr.f32.gmra.mrb[0].mxu0 %v436
        %v613 = vpop.f32.mrb[0].mxu0
        %v614 = vadd.f32 0.0, %v613
        %v615 = vpop.f32.mrb[0].mxu0
        %616 = vmatprep.mubr.f32.mxu0 0.0
        %617 = vmatmul.mubr.f32.gmra.mrb[0].mxu0 %v439
        %v618 = vpop.f32.mrb[0].mxu0
        %v619 = vadd.f32 0.0, %v618
        %v620 = vpop.f32.mrb[0].mxu0
        %621 = vmatprep.mubr.f32.mxu0 0.0
        %622 = vmatmul.mubr.f32.gmra.mrb[0].mxu0 %v442
        %v623 = vpop.f32.mrb[0].mxu0
        %v624 = vadd.f32 0.0, %v623
        %v625 = vpop.f32.mrb[0].mxu0
        %626 = vmatprep.mubr.f32.mxu0 0.0
        %627 = vmatmul.mubr.f32.gmra.mrb[0].mxu0 %v445
        %v628 = vpop.f32.mrb[0].mxu0
        %v629 = vadd.f32 0.0, %v628
        %v630 = vpop.f32.mrb[0].mxu0
        %631 = vmatprep.mubr.f32.mxu0 0.0
        %632 = vmatmul.mubr.f32.gmra.mrb[0].mxu0 %v448
        %v633 = vpop.f32.mrb[0].mxu0
        %v634 = vadd.f32 0.0, %v633
        %v635 = vpop.f32.mrb[0].mxu0
        %636 = vmatprep.mubr.f32.mxu0 0.0
        %637 = vmatmul.mubr.f32.gmra.mrb[0].mxu0 %v451
        %v638 = vpop.f32.mrb[0].mxu0
        %v639 = vadd.f32 0.0, %v638
        %v640 = vpop.f32.mrb[0].mxu0
        %641 = vmatprep.mubr.f32.mxu0 0.0
        %642 = vmatmul.mubr.f32.gmra.mrb[0].mxu0 %v454
        %v643 = vpop.f32.mrb[0].mxu0
        %v644 = vadd.f32 0.0, %v643
        %v645 = vpop.f32.mrb[0].mxu0
        %646 = vmatprep.mubr.f32.mxu0 0.0
        %647 = vmatmul.mubr.f32.gmra.mrb[0].mxu0 %v457
        %v648 = vpop.f32.mrb[0].mxu0
        %v649 = vadd.f32 0.0, %v648
        %v650 = vpop.f32.mrb[0].mxu0
        %651 = vmatprep.mubr.f32.mxu0 0.0
        %652 = vmatmul.mubr.f32.gmra.mrb[0].mxu0 %v460
        %v653 = vpop.f32.mrb[0].mxu0
        %v654 = vadd.f32 0.0, %v653
        %v655 = vpop.f32.mrb[0].mxu0
        %656 = vmatprep.mubr.f32.mxu0 0.0
        %657 = vmatmul.mubr.f32.gmra.mrb[0].mxu0 %v463
        %v658 = vpop.f32.mrb[0].mxu0
        %v659 = vadd.f32 0.0, %v658
        %v660 = vpop.f32.mrb[0].mxu0
        %661 = vmatprep.mubr.f32.mxu0 0.0
        %662 = vmatmul.mubr.f32.gmra.mrb[0].mxu0 %v466
        %v663 = vpop.f32.mrb[0].mxu0
        %v664 = vadd.f32 0.0, %v663
        %v665 = vpop.f32.mrb[0].mxu0
        %666 = vmatprep.mubr.f32.mxu0 0.0
        %667 = vmatmul.mubr.f32.gmra.mrb[0].mxu0 %v469
        %v668 = vpop.f32.mrb[0].mxu0
        %v669 = vadd.f32 0.0, %v668
        %v670 = vpop.f32.mrb[0].mxu0
        %671 = vmatprep.mubr.f32.mxu0 0.0
        %672 = vmatmul.mubr.f32.gmra.mrb[0].mxu0 %v472
        %v673 = vpop.f32.mrb[0].mxu0
        %v674 = vadd.f32 0.0, %v673
        %v675 = vpop.f32.mrb[0].mxu0
        %676 = vmatprep.mubr.f32.mxu0 0.0
        %677 = vmatmul.mubr.f32.gmra.mrb[0].mxu0 %v475
        %v678 = vpop.f32.mrb[0].mxu0
        %v679 = vadd.f32 0.0, %v678
        %v680 = vpop.f32.mrb[0].mxu0
        %681 = vmatprep.mubr.f32.mxu0 0.0
        %682 = vmatmul.mubr.f32.gmra.mrb[0].mxu0 %v478
        %v683 = vpop.f32.mrb[0].mxu0
        %v684 = vadd.f32 0.0, %v683
        %v685 = vpop.f32.mrb[0].mxu0
        %686 = vmatprep.mubr.f32.mxu0 0.0
        %687 = vmatmul.mubr.f32.gmra.mrb[0].mxu0 %v481
        %v688 = vpop.f32.mrb[0].mxu0
        %v689 = vadd.f32 0.0, %v688
        %v690 = vpop.f32.mrb[0].mxu0
        %691 = vmatprep.mubr.f32.mxu0 0.0
        %692 = vmatmul.mubr.f32.gmra.mrb[0].mxu0 %v484
        %v693 = vpop.f32.mrb[0].mxu0
        %v694 = vadd.f32 0.0, %v693
        %v695 = vpop.f32.mrb[0].mxu0
        %696 = vmatprep.mubr.f32.mxu0 0.0
        %697 = vmatmul.mubr.f32.gmra.mrb[0].mxu0 %v487
        %v698 = vpop.f32.mrb[0].mxu0
        %v699 = vadd.f32 0.0, %v698
        %v700 = vpop.f32.mrb[0].mxu0
        %701 = vmatprep.mubr.f32.mxu0 0.0
        %702 = vmatmul.mubr.f32.gmra.mrb[0].mxu0 %v490
        %v703 = vpop.f32.mrb[0].mxu0
        %v704 = vadd.f32 0.0, %v703
        %v705 = vpop.f32.mrb[0].mxu0
        %706 = vmatprep.mubr.f32.mxu0 0.0
        %707 = vmatmul.mubr.f32.gmra.mrb[0].mxu0 %v493
        %v708 = vpop.f32.mrb[0].mxu0
        %v709 = vadd.f32 0.0, %v708
        %v710 = vpop.f32.mrb[0].mxu0
        %711 = vmatprep.mubr.f32.mxu0 0.0
        %712 = vmatmul.mubr.f32.gmra.mrb[0].mxu0 %v496
        %v713 = vpop.f32.mrb[0].mxu0
        %v714 = vadd.f32 0.0, %v713
        %v715 = vpop.f32.mrb[0].mxu0
        %716 = vmatprep.mubr.f32.mxu0 0.0
        %717 = vmatmul.mubr.f32.gmra.mrb[0].mxu0 %v499
        %v718 = vpop.f32.mrb[0].mxu0
        %v719 = vadd.f32 0.0, %v718
        %v720 = vpop.f32.mrb[0].mxu0
        %721 = vmatprep.mubr.f32.mxu0 0.0
        %722 = vmatmul.mubr.f32.gmra.mrb[0].mxu0 %v502
        %v723 = vpop.f32.mrb[0].mxu0
        %v724 = vadd.f32 0.0, %v723
        %v725 = vpop.f32.mrb[0].mxu0
        %726 = vmatprep.mubr.f32.mxu0 0.0
        %727 = vmatmul.mubr.f32.gmra.mrb[0].mxu0 %v505
        %v728 = vpop.f32.mrb[0].mxu0
        %v729 = vadd.f32 0.0, %v728
        %v730 = vpop.f32.mrb[0].mxu0
        %731 = vdwg.mxu0
        %v732 = vld [vmem:[#allocation8] sm:$0x1]
        %v734 = vlaneseq
        %v735 = vshrl.u32 %v734, 7
        %v736 = vsub.s32 0, %v735
        %v737 = vrot.slane %v732, %v736
        %v739 = vmul.f32 %v574, %v737
        %v740 = vmul.f32 %v579, %v737
        %v741 = vmul.f32 %v584, %v737
        %v742 = vmul.f32 %v589, %v737
        %v743 = vmul.f32 %v594, %v737
        %v744 = vmul.f32 %v599, %v737
        %v745 = vmul.f32 %v604, %v737
        %v746 = vmul.f32 %v609, %v737
        %v747 = vmul.f32 %v614, %v737
        %v748 = vmul.f32 %v619, %v737
        %v749 = vmul.f32 %v624, %v737
        %v750 = vmul.f32 %v629, %v737
        %v751 = vmul.f32 %v634, %v737
        %v752 = vmul.f32 %v639, %v737
        %v753 = vmul.f32 %v644, %v737
        %v754 = vmul.f32 %v649, %v737
        %v755 = vmul.f32 %v654, %v737
        %v756 = vmul.f32 %v659, %v737
        %v757 = vmul.f32 %v664, %v737
        %v758 = vmul.f32 %v669, %v737
        %v759 = vmul.f32 %v674, %v737
        %v760 = vmul.f32 %v679, %v737
        %v761 = vmul.f32 %v684, %v737
        %v762 = vmul.f32 %v689, %v737
        %v763 = vmul.f32 %v694, %v737
        %v764 = vmul.f32 %v699, %v737
        %v765 = vmul.f32 %v704, %v737
        %v766 = vmul.f32 %v709, %v737
        %v767 = vmul.f32 %v714, %v737
        %v768 = vmul.f32 %v719, %v737
        %v769 = vmul.f32 %v724, %v737
        %v770 = vmul.f32 %v729, %v737
        %v771 = vld [vmem:[#allocation9] sm:$0x1]
        %v773 = vlaneseq
        %v774 = vshrl.u32 %v773, 7
        %v775 = vsub.s32 0, %v774
        %v776 = vrot.slane %v771, %v775
        %v778 = vadd.f32 %v739, %v776
        %v779 = vadd.f32 %v740, %v776
        %v780 = vadd.f32 %v741, %v776
        %v781 = vadd.f32 %v742, %v776
        %v782 = vadd.f32 %v743, %v776
        %v783 = vadd.f32 %v744, %v776
        %v784 = vadd.f32 %v745, %v776
        %v785 = vadd.f32 %v746, %v776
        %v786 = vadd.f32 %v747, %v776
        %v787 = vadd.f32 %v748, %v776
        %v788 = vadd.f32 %v749, %v776
        %v789 = vadd.f32 %v750, %v776
        %v790 = vadd.f32 %v751, %v776
        %v791 = vadd.f32 %v752, %v776
        %v792 = vadd.f32 %v753, %v776
        %v793 = vadd.f32 %v754, %v776
        %v794 = vadd.f32 %v755, %v776
        %v795 = vadd.f32 %v756, %v776
        %v796 = vadd.f32 %v757, %v776
        %v797 = vadd.f32 %v758, %v776
        %v798 = vadd.f32 %v759, %v776
        %v799 = vadd.f32 %v760, %v776
        %v800 = vadd.f32 %v761, %v776
        %v801 = vadd.f32 %v762, %v776
        %v802 = vadd.f32 %v763, %v776
        %v803 = vadd.f32 %v764, %v776
        %v804 = vadd.f32 %v765, %v776
        %v805 = vadd.f32 %v766, %v776
        %v806 = vadd.f32 %v767, %v776
        %v807 = vadd.f32 %v768, %v776
        %v808 = vadd.f32 %v769, %v776
        %v809 = vadd.f32 %v770, %v776
        %v810 = vmax.f32 %v778, 0.0
        %v811 = vmax.f32 %v779, 0.0
        %v812 = vmax.f32 %v780, 0.0
        %v813 = vmax.f32 %v781, 0.0
        %v814 = vmax.f32 %v782, 0.0
        %v815 = vmax.f32 %v783, 0.0
        %v816 = vmax.f32 %v784, 0.0
        %v817 = vmax.f32 %v785, 0.0
        %v818 = vmax.f32 %v786, 0.0
        %v819 = vmax.f32 %v787, 0.0
        %v820 = vmax.f32 %v788, 0.0
        %v821 = vmax.f32 %v789, 0.0
        %v822 = vmax.f32 %v790, 0.0
        %v823 = vmax.f32 %v791, 0.0
        %v824 = vmax.f32 %v792, 0.0
        %v825 = vmax.f32 %v793, 0.0
        %v826 = vmax.f32 %v794, 0.0
        %v827 = vmax.f32 %v795, 0.0
        %v828 = vmax.f32 %v796, 0.0
        %v829 = vmax.f32 %v797, 0.0
        %v830 = vmax.f32 %v798, 0.0
        %v831 = vmax.f32 %v799, 0.0
        %v832 = vmax.f32 %v800, 0.0
        %v833 = vmax.f32 %v801, 0.0
        %v834 = vmax.f32 %v802, 0.0
        %v835 = vmax.f32 %v803, 0.0
        %v836 = vmax.f32 %v804, 0.0
        %v837 = vmax.f32 %v805, 0.0
        %v838 = vmax.f32 %v806, 0.0
        %v839 = vmax.f32 %v807, 0.0
        %v840 = vmax.f32 %v808, 0.0
        %v841 = vmax.f32 %v809, 0.0
        %vm875 = vcmask 1040384
        %v876 = vrot.slane 0.0, 7
        %v877 = vsel %vm875, %v876, %v876
        %v878 = vrot.slane %v810, 7
        %v879 = vrot.slane %v811, 7
        %v880 = vsel %vm875, %v878, %v879
        %v881 = vrot.slane %v812, 7
        %v882 = vrot.slane %v813, 7
        %v883 = vsel %vm875, %v881, %v882
        %v884 = vrot.slane %v814, 7
        %v885 = vrot.slane %v815, 7
        %v886 = vsel %vm875, %v884, %v885
        %v887 = vrot.slane %v816, 7
        %v888 = vrot.slane %v817, 7
        %v889 = vsel %vm875, %v887, %v888
        %v890 = vrot.slane %v818, 7
        %v891 = vrot.slane %v819, 7
        %v892 = vsel %vm875, %v890, %v891
        %v893 = vrot.slane %v820, 7
        %v894 = vrot.slane %v821, 7
        %v895 = vsel %vm875, %v893, %v894
        %v896 = vrot.slane %v822, 7
        %v897 = vrot.slane %v823, 7
        %v898 = vsel %vm875, %v896, %v897
        %v899 = vrot.slane %v824, 7
        %v900 = vrot.slane %v825, 7
        %v901 = vsel %vm875, %v899, %v900
        %v902 = vrot.slane %v826, 7
        %v903 = vrot.slane %v827, 7
        %v904 = vsel %vm875, %v902, %v903
        %v905 = vrot.slane %v828, 7
        %v906 = vrot.slane %v829, 7
        %v907 = vsel %vm875, %v905, %v906
        %v908 = vrot.slane %v830, 7
        %v909 = vrot.slane %v831, 7
        %v910 = vsel %vm875, %v908, %v909
        %v911 = vrot.slane %v832, 7
        %v912 = vrot.slane %v833, 7
        %v913 = vsel %vm875, %v911, %v912
        %v914 = vrot.slane %v834, 7
        %v915 = vrot.slane %v835, 7
        %v916 = vsel %vm875, %v914, %v915
        %v917 = vrot.slane %v836, 7
        %v918 = vrot.slane %v837, 7
        %v919 = vsel %vm875, %v917, %v918
        %v920 = vrot.slane %v838, 7
        %v921 = vrot.slane %v839, 7
        %v922 = vsel %vm875, %v920, %v921
        %v923 = vrot.slane %v840, 7
        %v924 = vrot.slane %v841, 7
        %v925 = vsel %vm875, %v923, %v924
        %v976 = vsel %vm875, 0.0, %v876
        %v977 = vsel %vm875, 0.0, %v878
        %v978 = vsel %vm875, 0.0, %v881
        %v979 = vsel %vm875, 0.0, %v884
        %v980 = vsel %vm875, 0.0, %v887
        %v981 = vsel %vm875, 0.0, %v890
        %v982 = vsel %vm875, 0.0, %v893
        %v983 = vsel %vm875, 0.0, %v896
        %v984 = vsel %vm875, 0.0, %v899
        %v985 = vsel %vm875, 0.0, %v902
        %v986 = vsel %vm875, 0.0, %v905
        %v987 = vsel %vm875, 0.0, %v908
        %v988 = vsel %vm875, 0.0, %v911
        %v989 = vsel %vm875, 0.0, %v914
        %v990 = vsel %vm875, 0.0, %v917
        %v991 = vsel %vm875, 0.0, %v920
        %v992 = vsel %vm875, 0.0, %v923
        %v993 = vsel %vm875, %v876, 0.0
        %v994 = vsel %vm875, %v879, 0.0
        %v995 = vsel %vm875, %v882, 0.0
        %v996 = vsel %vm875, %v885, 0.0
        %v997 = vsel %vm875, %v888, 0.0
        %v998 = vsel %vm875, %v891, 0.0
        %v999 = vsel %vm875, %v894, 0.0
        %v1000 = vsel %vm875, %v897, 0.0
        %v1001 = vsel %vm875, %v900, 0.0
        %v1002 = vsel %vm875, %v903, 0.0
        %v1003 = vsel %vm875, %v906, 0.0
        %v1004 = vsel %vm875, %v909, 0.0
        %v1005 = vsel %vm875, %v912, 0.0
        %v1006 = vsel %vm875, %v915, 0.0
        %v1007 = vsel %vm875, %v918, 0.0
        %v1008 = vsel %vm875, %v921, 0.0
        %v1009 = vsel %vm875, %v924, 0.0
        %vm1010 = vcmask 64512
        %1011 = vst.msk [vmem:[#allocation2] sm:$0xff] %vm1010, %v976
        %1012 = vst.msk [vmem:[#allocation2 + $0x8] sm:$0xff] %vm1010, %v877
        %vm1013 = vcmask 58368
        %1014 = vst.msk [vmem:[#allocation2 + $0x10] sm:$0x3] %vm1013, %v993
        %1015 = vst.msk [vmem:[#allocation2 + $0x18] sm:$0xff] %vm1010, %v977
        %1016 = vst.msk [vmem:[#allocation2 + $0x20] sm:$0xff] %vm1010, %v880
        %1017 = vst.msk [vmem:[#allocation2 + $0x28] sm:$0x3] %vm1013, %v994
        %1018 = vst.msk [vmem:[#allocation2 + $0x30] sm:$0xff] %vm1010, %v978
        %1019 = vst.msk [vmem:[#allocation2 + $0x38] sm:$0xff] %vm1010, %v883
        %1020 = vst.msk [vmem:[#allocation2 + $0x40] sm:$0x3] %vm1013, %v995
        %1021 = vst.msk [vmem:[#allocation2 + $0x48] sm:$0xff] %vm1010, %v979
        %1022 = vst.msk [vmem:[#allocation2 + $0x50] sm:$0xff] %vm1010, %v886
        %1023 = vst.msk [vmem:[#allocation2 + $0x58] sm:$0x3] %vm1013, %v996
        %1024 = vst.msk [vmem:[#allocation2 + $0x60] sm:$0xff] %vm1010, %v980
        %1025 = vst.msk [vmem:[#allocation2 + $0x68] sm:$0xff] %vm1010, %v889
        %1026 = vst.msk [vmem:[#allocation2 + $0x70] sm:$0x3] %vm1013, %v997
        %1027 = vst.msk [vmem:[#allocation2 + $0x78] sm:$0xff] %vm1010, %v981
        %1028 = vst.msk [vmem:[#allocation2 + $0x80] sm:$0xff] %vm1010, %v892
        %1029 = vst.msk [vmem:[#allocation2 + $0x88] sm:$0x3] %vm1013, %v998
        %1030 = vst.msk [vmem:[#allocation2 + $0x90] sm:$0xff] %vm1010, %v982
        %1031 = vst.msk [vmem:[#allocation2 + $0x98] sm:$0xff] %vm1010, %v895
        %1032 = vst.msk [vmem:[#allocation2 + $0xa0] sm:$0x3] %vm1013, %v999
        %1033 = vst.msk [vmem:[#allocation2 + $0xa8] sm:$0xff] %vm1010, %v983
        %1034 = vst.msk [vmem:[#allocation2 + $0xb0] sm:$0xff] %vm1010, %v898
        %1035 = vst.msk [vmem:[#allocation2 + $0xb8] sm:$0x3] %vm1013, %v1000
        %1036 = vst.msk [vmem:[#allocation2 + $0xc0] sm:$0xff] %vm1010, %v984
        %1037 = vst.msk [vmem:[#allocation2 + $0xc8] sm:$0xff] %vm1010, %v901
        %1038 = vst.msk [vmem:[#allocation2 + $0xd0] sm:$0x3] %vm1013, %v1001
        %1039 = vst.msk [vmem:[#allocation2 + $0xd8] sm:$0xff] %vm1010, %v985
        %1040 = vst.msk [vmem:[#allocation2 + $0xe0] sm:$0xff] %vm1010, %v904
        %1041 = vst.msk [vmem:[#allocation2 + $0xe8] sm:$0x3] %vm1013, %v1002
        %1042 = vst.msk [vmem:[#allocation2 + $0xf0] sm:$0xff] %vm1010, %v986
        %1043 = vst.msk [vmem:[#allocation2 + $0xf8] sm:$0xff] %vm1010, %v907
        %1044 = vst.msk [vmem:[#allocation2 + $0x100] sm:$0x3] %vm1013, %v1003
        %1045 = vst.msk [vmem:[#allocation2 + $0x108] sm:$0xff] %vm1010, %v987
        %1046 = vst.msk [vmem:[#allocation2 + $0x110] sm:$0xff] %vm1010, %v910
        %1047 = vst.msk [vmem:[#allocation2 + $0x118] sm:$0x3] %vm1013, %v1004
        %1048 = vst.msk [vmem:[#allocation2 + $0x120] sm:$0xff] %vm1010, %v988
        %1049 = vst.msk [vmem:[#allocation2 + $0x128] sm:$0xff] %vm1010, %v913
        %1050 = vst.msk [vmem:[#allocation2 + $0x130] sm:$0x3] %vm1013, %v1005
        %1051 = vst.msk [vmem:[#allocation2 + $0x138] sm:$0xff] %vm1010, %v989
        %1052 = vst.msk [vmem:[#allocation2 + $0x140] sm:$0xff] %vm1010, %v916
        %1053 = vst.msk [vmem:[#allocation2 + $0x148] sm:$0x3] %vm1013, %v1006
        %1054 = vst.msk [vmem:[#allocation2 + $0x150] sm:$0xff] %vm1010, %v990
        %1055 = vst.msk [vmem:[#allocation2 + $0x158] sm:$0xff] %vm1010, %v919
        %1056 = vst.msk [vmem:[#allocation2 + $0x160] sm:$0x3] %vm1013, %v1007
        %1057 = vst.msk [vmem:[#allocation2 + $0x168] sm:$0xff] %vm1010, %v991
        %1058 = vst.msk [vmem:[#allocation2 + $0x170] sm:$0xff] %vm1010, %v922
        %1059 = vst.msk [vmem:[#allocation2 + $0x178] sm:$0x3] %vm1013, %v1008
        %1060 = vst.msk [vmem:[#allocation2 + $0x180] sm:$0xff] %vm1010, %v992
        %1061 = vst.msk [vmem:[#allocation2 + $0x188] sm:$0xff] %vm1010, %v925
        %1062 = vst.msk [vmem:[#allocation2 + $0x190] sm:$0x3] %vm1013, %v1009
        %1063 = vst.msk [vmem:[#allocation2 + $0x198] sm:$0xff] %vm1010, %v976
        %1064 = vst.msk [vmem:[#allocation2 + $0x1a0] sm:$0xff] %vm1010, %v877
        %1065 = vst.msk [vmem:[#allocation2 + $0x1a8] sm:$0x3] %vm1013, %v993
        %v1066 = vld [vmem:[#allocation2] sm:$0xff]
        %v1067 = vld [vmem:[#allocation2 + $0x8] sm:$0xff]
        %v1068 = vld [vmem:[#allocation2 + $0x18] sm:$0xff]
        %v1069 = vld [vmem:[#allocation2 + $0x20] sm:$0xff]
        %v1070 = vld [vmem:[#allocation2 + $0x30] sm:$0xff]
        %v1071 = vld [vmem:[#allocation2 + $0x38] sm:$0xff]
        %v1072 = vld [vmem:[#allocation2 + $0x48] sm:$0xff]
        %v1073 = vld [vmem:[#allocation2 + $0x50] sm:$0xff]
        %v1074 = vld [vmem:[#allocation2 + $0x60] sm:$0xff]
        %v1075 = vld [vmem:[#allocation2 + $0x68] sm:$0xff]
        %v1076 = vld [vmem:[#allocation2 + $0x78] sm:$0xff]
        %v1077 = vld [vmem:[#allocation2 + $0x80] sm:$0xff]
        %v1078 = vld [vmem:[#allocation2 + $0x90] sm:$0xff]
        %v1079 = vld [vmem:[#allocation2 + $0x98] sm:$0xff]
        %v1080 = vld [vmem:[#allocation2 + $0xa8] sm:$0xff]
        %v1081 = vld [vmem:[#allocation2 + $0xb0] sm:$0xff]
        %v1082 = vld [vmem:[#allocation2 + $0xc0] sm:$0xff]
        %v1083 = vld [vmem:[#allocation2 + $0xc8] sm:$0xff]
        %v1084 = vld [vmem:[#allocation2 + $0xd8] sm:$0xff]
        %v1085 = vld [vmem:[#allocation2 + $0xe0] sm:$0xff]
        %v1086 = vld [vmem:[#allocation2 + $0xf0] sm:$0xff]
        %v1087 = vld [vmem:[#allocation2 + $0xf8] sm:$0xff]
        %v1088 = vld [vmem:[#allocation2 + $0x108] sm:$0xff]
        %v1089 = vld [vmem:[#allocation2 + $0x110] sm:$0xff]
        %v1090 = vld [vmem:[#allocation2 + $0x120] sm:$0xff]
        %v1091 = vld [vmem:[#allocation2 + $0x128] sm:$0xff]
        %v1092 = vld [vmem:[#allocation2 + $0x138] sm:$0xff]
        %v1093 = vld [vmem:[#allocation2 + $0x140] sm:$0xff]
        %v1094 = vld [vmem:[#allocation2 + $0x150] sm:$0xff]
        %v1095 = vld [vmem:[#allocation2 + $0x158] sm:$0xff]
        %v1096 = vld [vmem:[#allocation2 + $0x168] sm:$0xff]
        %v1097 = vld [vmem:[#allocation2 + $0x170] sm:$0xff]
        %v1098 = vld [vmem:[#allocation2 + $0x1] sm:$0xff]
        %v1099 = vld [vmem:[#allocation2 + $0x9] sm:$0xff]
        %v1100 = vld [vmem:[#allocation2 + $0x19] sm:$0xff]
        %v1101 = vld [vmem:[#allocation2 + $0x21] sm:$0xff]
        %v1102 = vld [vmem:[#allocation2 + $0x31] sm:$0xff]
        %v1103 = vld [vmem:[#allocation2 + $0x39] sm:$0xff]
        %v1104 = vld [vmem:[#allocation2 + $0x49] sm:$0xff]
        %v1105 = vld [vmem:[#allocation2 + $0x51] sm:$0xff]
        %v1106 = vld [vmem:[#allocation2 + $0x61] sm:$0xff]
        %v1107 = vld [vmem:[#allocation2 + $0x69] sm:$0xff]
        %v1108 = vld [vmem:[#allocation2 + $0x79] sm:$0xff]
        %v1109 = vld [vmem:[#allocation2 + $0x81] sm:$0xff]
        %v1110 = vld [vmem:[#allocation2 + $0x91] sm:$0xff]
        %v1111 = vld [vmem:[#allocation2 + $0x99] sm:$0xff]
        %v1112 = vld [vmem:[#allocation2 + $0xa9] sm:$0xff]
        %v1113 = vld [vmem:[#allocation2 + $0xb1] sm:$0xff]
        %v1114 = vld [vmem:[#allocation2 + $0xc1] sm:$0xff]
        %v1115 = vld [vmem:[#allocation2 + $0xc9] sm:$0xff]
        %v1116 = vld [vmem:[#allocation2 + $0xd9] sm:$0xff]
        %v1117 = vld [vmem:[#allocation2 + $0xe1] sm:$0xff]
        %v1118 = vld [vmem:[#allocation2 + $0xf1] sm:$0xff]
        %v1119 = vld [vmem:[#allocation2 + $0xf9] sm:$0xff]
        %v1120 = vld [vmem:[#allocation2 + $0x109] sm:$0xff]
        %v1121 = vld [vmem:[#allocation2 + $0x111] sm:$0xff]
        %v1122 = vld [vmem:[#allocation2 + $0x121] sm:$0xff]
        %v1123 = vld [vmem:[#allocation2 + $0x129] sm:$0xff]
        %v1124 = vld [vmem:[#allocation2 + $0x139] sm:$0xff]
        %v1125 = vld [vmem:[#allocation2 + $0x141] sm:$0xff]
        %v1126 = vld [vmem:[#allocation2 + $0x151] sm:$0xff]
        %v1127 = vld [vmem:[#allocation2 + $0x159] sm:$0xff]
        %v1128 = vld [vmem:[#allocation2 + $0x169] sm:$0xff]
        %v1129 = vld [vmem:[#allocation2 + $0x171] sm:$0xff]
        %v1130 = vld [vmem:[#allocation2 + $0x2] sm:$0xff]
        %v1131 = vld [vmem:[#allocation2 + $0xa] sm:$0xff]
        %v1132 = vld [vmem:[#allocation2 + $0x1a] sm:$0xff]
        %v1133 = vld [vmem:[#allocation2 + $0x22] sm:$0xff]
        %v1134 = vld [vmem:[#allocation2 + $0x32] sm:$0xff]
        %v1135 = vld [vmem:[#allocation2 + $0x3a] sm:$0xff]
        %v1136 = vld [vmem:[#allocation2 + $0x4a] sm:$0xff]
        %v1137 = vld [vmem:[#allocation2 + $0x52] sm:$0xff]
        %v1138 = vld [vmem:[#allocation2 + $0x62] sm:$0xff]
        %v1139 = vld [vmem:[#allocation2 + $0x6a] sm:$0xff]
        %v1140 = vld [vmem:[#allocation2 + $0x7a] sm:$0xff]
        %v1141 = vld [vmem:[#allocation2 + $0x82] sm:$0xff]
        %v1142 = vld [vmem:[#allocation2 + $0x92] sm:$0xff]
        %v1143 = vld [vmem:[#allocation2 + $0x9a] sm:$0xff]
        %v1144 = vld [vmem:[#allocation2 + $0xaa] sm:$0xff]
        %v1145 = vld [vmem:[#allocation2 + $0xb2] sm:$0xff]
        %v1146 = vld [vmem:[#allocation2 + $0xc2] sm:$0xff]
        %v1147 = vld [vmem:[#allocation2 + $0xca] sm:$0xff]
        %v1148 = vld [vmem:[#allocation2 + $0xda] sm:$0xff]
        %v1149 = vld [vmem:[#allocation2 + $0xe2] sm:$0xff]
        %v1150 = vld [vmem:[#allocation2 + $0xf2] sm:$0xff]
        %v1151 = vld [vmem:[#allocation2 + $0xfa] sm:$0xff]
        %v1152 = vld [vmem:[#allocation2 + $0x10a] sm:$0xff]
        %v1153 = vld [vmem:[#allocation2 + $0x112] sm:$0xff]
        %v1154 = vld [vmem:[#allocation2 + $0x122] sm:$0xff]
        %v1155 = vld [vmem:[#allocation2 + $0x12a] sm:$0xff]
        %v1156 = vld [vmem:[#allocation2 + $0x13a] sm:$0xff]
        %v1157 = vld [vmem:[#allocation2 + $0x142] sm:$0xff]
        %v1158 = vld [vmem:[#allocation2 + $0x152] sm:$0xff]
        %v1159 = vld [vmem:[#allocation2 + $0x15a] sm:$0xff]
        %v1160 = vld [vmem:[#allocation2 + $0x16a] sm:$0xff]
        %v1161 = vld [vmem:[#allocation2 + $0x172] sm:$0xff]
        %s1162 = scalar_lea.vmem [#allocation2], 24
        %v1163 = vld [vmem:[%s1162] sm:$0xff]
        %v1164 = vld [vmem:[%s1162 + $0x8] sm:$0xff]
        %v1165 = vld [vmem:[%s1162 + $0x18] sm:$0xff]
        %v1166 = vld [vmem:[%s1162 + $0x20] sm:$0xff]
        %v1167 = vld [vmem:[%s1162 + $0x30] sm:$0xff]
        %v1168 = vld [vmem:[%s1162 + $0x38] sm:$0xff]
        %v1169 = vld [vmem:[%s1162 + $0x48] sm:$0xff]
        %v1170 = vld [vmem:[%s1162 + $0x50] sm:$0xff]
        %v1171 = vld [vmem:[%s1162 + $0x60] sm:$0xff]
        %v1172 = vld [vmem:[%s1162 + $0x68] sm:$0xff]
        %v1173 = vld [vmem:[%s1162 + $0x78] sm:$0xff]
        %v1174 = vld [vmem:[%s1162 + $0x80] sm:$0xff]
        %v1175 = vld [vmem:[%s1162 + $0x90] sm:$0xff]
        %v1176 = vld [vmem:[%s1162 + $0x98] sm:$0xff]
        %v1177 = vld [vmem:[%s1162 + $0xa8] sm:$0xff]
        %v1178 = vld [vmem:[%s1162 + $0xb0] sm:$0xff]
        %v1179 = vld [vmem:[%s1162 + $0xc0] sm:$0xff]
        %v1180 = vld [vmem:[%s1162 + $0xc8] sm:$0xff]
        %v1181 = vld [vmem:[%s1162 + $0xd8] sm:$0xff]
        %v1182 = vld [vmem:[%s1162 + $0xe0] sm:$0xff]
        %v1183 = vld [vmem:[%s1162 + $0xf0] sm:$0xff]
        %v1184 = vld [vmem:[%s1162 + $0xf8] sm:$0xff]
        %v1185 = vld [vmem:[%s1162 + $0x108] sm:$0xff]
        %v1186 = vld [vmem:[%s1162 + $0x110] sm:$0xff]
        %v1187 = vld [vmem:[%s1162 + $0x120] sm:$0xff]
        %v1188 = vld [vmem:[%s1162 + $0x128] sm:$0xff]
        %v1189 = vld [vmem:[%s1162 + $0x138] sm:$0xff]
        %v1190 = vld [vmem:[%s1162 + $0x140] sm:$0xff]
        %v1191 = vld [vmem:[%s1162 + $0x150] sm:$0xff]
        %v1192 = vld [vmem:[%s1162 + $0x158] sm:$0xff]
        %v1193 = vld [vmem:[%s1162 + $0x168] sm:$0xff]
        %v1194 = vld [vmem:[%s1162 + $0x170] sm:$0xff]
        %v1195 = vld [vmem:[%s1162 + $0x1] sm:$0xff]
        %v1196 = vld [vmem:[%s1162 + $0x9] sm:$0xff]
        %v1197 = vld [vmem:[%s1162 + $0x19] sm:$0xff]
        %v1198 = vld [vmem:[%s1162 + $0x21] sm:$0xff]
        %v1199 = vld [vmem:[%s1162 + $0x31] sm:$0xff]
        %v1200 = vld [vmem:[%s1162 + $0x39] sm:$0xff]
        %v1201 = vld [vmem:[%s1162 + $0x49] sm:$0xff]
        %v1202 = vld [vmem:[%s1162 + $0x51] sm:$0xff]
        %v1203 = vld [vmem:[%s1162 + $0x61] sm:$0xff]
        %v1204 = vld [vmem:[%s1162 + $0x69] sm:$0xff]
        %v1205 = vld [vmem:[%s1162 + $0x79] sm:$0xff]
        %v1206 = vld [vmem:[%s1162 + $0x81] sm:$0xff]
        %v1207 = vld [vmem:[%s1162 + $0x91] sm:$0xff]
        %v1208 = vld [vmem:[%s1162 + $0x99] sm:$0xff]
        %v1209 = vld [vmem:[%s1162 + $0xa9] sm:$0xff]
        %v1210 = vld [vmem:[%s1162 + $0xb1] sm:$0xff]
        %v1211 = vld [vmem:[%s1162 + $0xc1] sm:$0xff]
        %v1212 = vld [vmem:[%s1162 + $0xc9] sm:$0xff]
        %v1213 = vld [vmem:[%s1162 + $0xd9] sm:$0xff]
        %v1214 = vld [vmem:[%s1162 + $0xe1] sm:$0xff]
        %v1215 = vld [vmem:[%s1162 + $0xf1] sm:$0xff]
        %v1216 = vld [vmem:[%s1162 + $0xf9] sm:$0xff]
        %v1217 = vld [vmem:[%s1162 + $0x109] sm:$0xff]
        %v1218 = vld [vmem:[%s1162 + $0x111] sm:$0xff]
        %v1219 = vld [vmem:[%s1162 + $0x121] sm:$0xff]
        %v1220 = vld [vmem:[%s1162 + $0x129] sm:$0xff]
        %v1221 = vld [vmem:[%s1162 + $0x139] sm:$0xff]
        %v1222 = vld [vmem:[%s1162 + $0x141] sm:$0xff]
        %v1223 = vld [vmem:[%s1162 + $0x151] sm:$0xff]
        %v1224 = vld [vmem:[%s1162 + $0x159] sm:$0xff]
        %v1225 = vld [vmem:[%s1162 + $0x169] sm:$0xff]
        %v1226 = vld [vmem:[%s1162 + $0x171] sm:$0xff]
        %v1227 = vld [vmem:[%s1162 + $0x2] sm:$0xff]
        %v1228 = vld [vmem:[%s1162 + $0xa] sm:$0xff]
        %v1229 = vld [vmem:[%s1162 + $0x1a] sm:$0xff]
        %v1230 = vld [vmem:[%s1162 + $0x22] sm:$0xff]
        %v1231 = vld [vmem:[%s1162 + $0x32] sm:$0xff]
        %v1232 = vld [vmem:[%s1162 + $0x3a] sm:$0xff]
        %v1233 = vld [vmem:[%s1162 + $0x4a] sm:$0xff]
        %v1234 = vld [vmem:[%s1162 + $0x52] sm:$0xff]
        %v1235 = vld [vmem:[%s1162 + $0x62] sm:$0xff]
        %v1236 = vld [vmem:[%s1162 + $0x6a] sm:$0xff]
        %v1237 = vld [vmem:[%s1162 + $0x7a] sm:$0xff]
        %v1238 = vld [vmem:[%s1162 + $0x82] sm:$0xff]
        %v1239 = vld [vmem:[%s1162 + $0x92] sm:$0xff]
        %v1240 = vld [vmem:[%s1162 + $0x9a] sm:$0xff]
        %v1241 = vld [vmem:[%s1162 + $0xaa] sm:$0xff]
        %v1242 = vld [vmem:[%s1162 + $0xb2] sm:$0xff]
        %v1243 = vld [vmem:[%s1162 + $0xc2] sm:$0xff]
        %v1244 = vld [vmem:[%s1162 + $0xca] sm:$0xff]
        %v1245 = vld [vmem:[%s1162 + $0xda] sm:$0xff]
        %v1246 = vld [vmem:[%s1162 + $0xe2] sm:$0xff]
        %v1247 = vld [vmem:[%s1162 + $0xf2] sm:$0xff]
        %v1248 = vld [vmem:[%s1162 + $0xfa] sm:$0xff]
        %v1249 = vld [vmem:[%s1162 + $0x10a] sm:$0xff]
        %v1250 = vld [vmem:[%s1162 + $0x112] sm:$0xff]
        %v1251 = vld [vmem:[%s1162 + $0x122] sm:$0xff]
        %v1252 = vld [vmem:[%s1162 + $0x12a] sm:$0xff]
        %v1253 = vld [vmem:[%s1162 + $0x13a] sm:$0xff]
        %v1254 = vld [vmem:[%s1162 + $0x142] sm:$0xff]
        %v1255 = vld [vmem:[%s1162 + $0x152] sm:$0xff]
        %v1256 = vld [vmem:[%s1162 + $0x15a] sm:$0xff]
        %v1257 = vld [vmem:[%s1162 + $0x16a] sm:$0xff]
        %v1258 = vld [vmem:[%s1162 + $0x172] sm:$0xff]
        %s1259 = scalar_lea.vmem [#allocation2], 48
        %v1260 = vld [vmem:[%s1259] sm:$0xff]
        %v1261 = vld [vmem:[%s1259 + $0x8] sm:$0xff]
        %v1262 = vld [vmem:[%s1259 + $0x18] sm:$0xff]
        %v1263 = vld [vmem:[%s1259 + $0x20] sm:$0xff]
        %v1264 = vld [vmem:[%s1259 + $0x30] sm:$0xff]
        %v1265 = vld [vmem:[%s1259 + $0x38] sm:$0xff]
        %v1266 = vld [vmem:[%s1259 + $0x48] sm:$0xff]
        %v1267 = vld [vmem:[%s1259 + $0x50] sm:$0xff]
        %v1268 = vld [vmem:[%s1259 + $0x60] sm:$0xff]
        %v1269 = vld [vmem:[%s1259 + $0x68] sm:$0xff]
        %v1270 = vld [vmem:[%s1259 + $0x78] sm:$0xff]
        %v1271 = vld [vmem:[%s1259 + $0x80] sm:$0xff]
        %v1272 = vld [vmem:[%s1259 + $0x90] sm:$0xff]
        %v1273 = vld [vmem:[%s1259 + $0x98] sm:$0xff]
        %v1274 = vld [vmem:[%s1259 + $0xa8] sm:$0xff]
        %v1275 = vld [vmem:[%s1259 + $0xb0] sm:$0xff]
        %v1276 = vld [vmem:[%s1259 + $0xc0] sm:$0xff]
        %v1277 = vld [vmem:[%s1259 + $0xc8] sm:$0xff]
        %v1278 = vld [vmem:[%s1259 + $0xd8] sm:$0xff]
        %v1279 = vld [vmem:[%s1259 + $0xe0] sm:$0xff]
        %v1280 = vld [vmem:[%s1259 + $0xf0] sm:$0xff]
        %v1281 = vld [vmem:[%s1259 + $0xf8] sm:$0xff]
        %v1282 = vld [vmem:[%s1259 + $0x108] sm:$0xff]
        %v1283 = vld [vmem:[%s1259 + $0x110] sm:$0xff]
        %v1284 = vld [vmem:[%s1259 + $0x120] sm:$0xff]
        %v1285 = vld [vmem:[%s1259 + $0x128] sm:$0xff]
        %v1286 = vld [vmem:[%s1259 + $0x138] sm:$0xff]
        %v1287 = vld [vmem:[%s1259 + $0x140] sm:$0xff]
        %v1288 = vld [vmem:[%s1259 + $0x150] sm:$0xff]
        %v1289 = vld [vmem:[%s1259 + $0x158] sm:$0xff]
        %v1290 = vld [vmem:[%s1259 + $0x168] sm:$0xff]
        %v1291 = vld [vmem:[%s1259 + $0x170] sm:$0xff]
        %v1292 = vld [vmem:[%s1259 + $0x1] sm:$0xff]
        %v1293 = vld [vmem:[%s1259 + $0x9] sm:$0xff]
        %v1294 = vld [vmem:[%s1259 + $0x19] sm:$0xff]
        %v1295 = vld [vmem:[%s1259 + $0x21] sm:$0xff]
        %v1296 = vld [vmem:[%s1259 + $0x31] sm:$0xff]
        %v1297 = vld [vmem:[%s1259 + $0x39] sm:$0xff]
        %v1298 = vld [vmem:[%s1259 + $0x49] sm:$0xff]
        %v1299 = vld [vmem:[%s1259 + $0x51] sm:$0xff]
        %v1300 = vld [vmem:[%s1259 + $0x61] sm:$0xff]
        %v1301 = vld [vmem:[%s1259 + $0x69] sm:$0xff]
        %v1302 = vld [vmem:[%s1259 + $0x79] sm:$0xff]
        %v1303 = vld [vmem:[%s1259 + $0x81] sm:$0xff]
        %v1304 = vld [vmem:[%s1259 + $0x91] sm:$0xff]
        %v1305 = vld [vmem:[%s1259 + $0x99] sm:$0xff]
        %v1306 = vld [vmem:[%s1259 + $0xa9] sm:$0xff]
        %v1307 = vld [vmem:[%s1259 + $0xb1] sm:$0xff]
        %v1308 = vld [vmem:[%s1259 + $0xc1] sm:$0xff]
        %v1309 = vld [vmem:[%s1259 + $0xc9] sm:$0xff]
        %v1310 = vld [vmem:[%s1259 + $0xd9] sm:$0xff]
        %v1311 = vld [vmem:[%s1259 + $0xe1] sm:$0xff]
        %v1312 = vld [vmem:[%s1259 + $0xf1] sm:$0xff]
        %v1313 = vld [vmem:[%s1259 + $0xf9] sm:$0xff]
        %v1314 = vld [vmem:[%s1259 + $0x109] sm:$0xff]
        %v1315 = vld [vmem:[%s1259 + $0x111] sm:$0xff]
        %v1316 = vld [vmem:[%s1259 + $0x121] sm:$0xff]
        %v1317 = vld [vmem:[%s1259 + $0x129] sm:$0xff]
        %v1318 = vld [vmem:[%s1259 + $0x139] sm:$0xff]
        %v1319 = vld [vmem:[%s1259 + $0x141] sm:$0xff]
        %v1320 = vld [vmem:[%s1259 + $0x151] sm:$0xff]
        %v1321 = vld [vmem:[%s1259 + $0x159] sm:$0xff]
        %v1322 = vld [vmem:[%s1259 + $0x169] sm:$0xff]
        %v1323 = vld [vmem:[%s1259 + $0x171] sm:$0xff]
        %v1324 = vld [vmem:[%s1259 + $0x2] sm:$0xff]
        %v1325 = vld [vmem:[%s1259 + $0xa] sm:$0xff]
        %v1326 = vld [vmem:[%s1259 + $0x1a] sm:$0xff]
        %v1327 = vld [vmem:[%s1259 + $0x22] sm:$0xff]
        %v1328 = vld [vmem:[%s1259 + $0x32] sm:$0xff]
        %v1329 = vld [vmem:[%s1259 + $0x3a] sm:$0xff]
        %v1330 = vld [vmem:[%s1259 + $0x4a] sm:$0xff]
        %v1331 = vld [vmem:[%s1259 + $0x52] sm:$0xff]
        %v1332 = vld [vmem:[%s1259 + $0x62] sm:$0xff]
        %v1333 = vld [vmem:[%s1259 + $0x6a] sm:$0xff]
        %v1334 = vld [vmem:[%s1259 + $0x7a] sm:$0xff]
        %v1335 = vld [vmem:[%s1259 + $0x82] sm:$0xff]
        %v1336 = vld [vmem:[%s1259 + $0x92] sm:$0xff]
        %v1337 = vld [vmem:[%s1259 + $0x9a] sm:$0xff]
        %v1338 = vld [vmem:[%s1259 + $0xaa] sm:$0xff]
        %v1339 = vld [vmem:[%s1259 + $0xb2] sm:$0xff]
        %v1340 = vld [vmem:[%s1259 + $0xc2] sm:$0xff]
        %v1341 = vld [vmem:[%s1259 + $0xca] sm:$0xff]
        %v1342 = vld [vmem:[%s1259 + $0xda] sm:$0xff]
        %v1343 = vld [vmem:[%s1259 + $0xe2] sm:$0xff]
        %v1344 = vld [vmem:[%s1259 + $0xf2] sm:$0xff]
        %v1345 = vld [vmem:[%s1259 + $0xfa] sm:$0xff]
        %v1346 = vld [vmem:[%s1259 + $0x10a] sm:$0xff]
        %v1347 = vld [vmem:[%s1259 + $0x112] sm:$0xff]
        %v1348 = vld [vmem:[%s1259 + $0x122] sm:$0xff]
        %v1349 = vld [vmem:[%s1259 + $0x12a] sm:$0xff]
        %v1350 = vld [vmem:[%s1259 + $0x13a] sm:$0xff]
        %v1351 = vld [vmem:[%s1259 + $0x142] sm:$0xff]
        %v1352 = vld [vmem:[%s1259 + $0x152] sm:$0xff]
        %v1353 = vld [vmem:[%s1259 + $0x15a] sm:$0xff]
        %v1354 = vld [vmem:[%s1259 + $0x16a] sm:$0xff]
        %v1355 = vld [vmem:[%s1259 + $0x172] sm:$0xff]
        %1388 = vrot.lane.b32.xlu0 %v1098, 8
        %v1389 = vpop.permute.xlu0 %1388
        %1390 = vrot.lane.b32.xlu0 %v1099, 8
        %v1391 = vpop.permute.xlu0 %1390
        %1392 = vrot.lane.b32.xlu0 %v1100, 8
        %v1393 = vpop.permute.xlu0 %1392
        %1394 = vrot.lane.b32.xlu0 %v1101, 8
        %v1395 = vpop.permute.xlu0 %1394
        %1396 = vrot.lane.b32.xlu0 %v1102, 8
        %v1397 = vpop.permute.xlu0 %1396
        %1398 = vrot.lane.b32.xlu0 %v1103, 8
        %v1399 = vpop.permute.xlu0 %1398
        %1400 = vrot.lane.b32.xlu0 %v1104, 8
        %v1401 = vpop.permute.xlu0 %1400
        %1402 = vrot.lane.b32.xlu0 %v1105, 8
        %v1403 = vpop.permute.xlu0 %1402
        %1404 = vrot.lane.b32.xlu0 %v1106, 8
        %v1405 = vpop.permute.xlu0 %1404
        %1406 = vrot.lane.b32.xlu0 %v1107, 8
        %v1407 = vpop.permute.xlu0 %1406
        %1408 = vrot.lane.b32.xlu0 %v1108, 8
        %v1409 = vpop.permute.xlu0 %1408
        %1410 = vrot.lane.b32.xlu0 %v1109, 8
        %v1411 = vpop.permute.xlu0 %1410
        %1412 = vrot.lane.b32.xlu0 %v1110, 8
        %v1413 = vpop.permute.xlu0 %1412
        %1414 = vrot.lane.b32.xlu0 %v1111, 8
        %v1415 = vpop.permute.xlu0 %1414
        %1416 = vrot.lane.b32.xlu0 %v1112, 8
        %v1417 = vpop.permute.xlu0 %1416
        %1418 = vrot.lane.b32.xlu0 %v1113, 8
        %v1419 = vpop.permute.xlu0 %1418
        %1420 = vrot.lane.b32.xlu0 %v1114, 8
        %v1421 = vpop.permute.xlu0 %1420
        %1422 = vrot.lane.b32.xlu0 %v1115, 8
        %v1423 = vpop.permute.xlu0 %1422
        %1424 = vrot.lane.b32.xlu0 %v1116, 8
        %v1425 = vpop.permute.xlu0 %1424
        %1426 = vrot.lane.b32.xlu0 %v1117, 8
        %v1427 = vpop.permute.xlu0 %1426
        %1428 = vrot.lane.b32.xlu0 %v1118, 8
        %v1429 = vpop.permute.xlu0 %1428
        %1430 = vrot.lane.b32.xlu0 %v1119, 8
        %v1431 = vpop.permute.xlu0 %1430
        %1432 = vrot.lane.b32.xlu0 %v1120, 8
        %v1433 = vpop.permute.xlu0 %1432
        %1434 = vrot.lane.b32.xlu0 %v1121, 8
        %v1435 = vpop.permute.xlu0 %1434
        %1436 = vrot.lane.b32.xlu0 %v1122, 8
        %v1437 = vpop.permute.xlu0 %1436
        %1438 = vrot.lane.b32.xlu0 %v1123, 8
        %v1439 = vpop.permute.xlu0 %1438
        %1440 = vrot.lane.b32.xlu0 %v1124, 8
        %v1441 = vpop.permute.xlu0 %1440
        %1442 = vrot.lane.b32.xlu0 %v1125, 8
        %v1443 = vpop.permute.xlu0 %1442
        %1444 = vrot.lane.b32.xlu0 %v1126, 8
        %v1445 = vpop.permute.xlu0 %1444
        %1446 = vrot.lane.b32.xlu0 %v1127, 8
        %v1447 = vpop.permute.xlu0 %1446
        %1448 = vrot.lane.b32.xlu0 %v1128, 8
        %v1449 = vpop.permute.xlu0 %1448
        %1450 = vrot.lane.b32.xlu0 %v1129, 8
        %v1451 = vpop.permute.xlu0 %1450
        %1516 = vrot.lane.b32.xlu0 %v1130, 16
        %v1517 = vpop.permute.xlu0 %1516
        %1518 = vrot.lane.b32.xlu0 %v1131, 16
        %v1519 = vpop.permute.xlu0 %1518
        %1520 = vrot.lane.b32.xlu0 %v1132, 16
        %v1521 = vpop.permute.xlu0 %1520
        %1522 = vrot.lane.b32.xlu0 %v1133, 16
        %v1523 = vpop.permute.xlu0 %1522
        %1524 = vrot.lane.b32.xlu0 %v1134, 16
        %v1525 = vpop.permute.xlu0 %1524
        %1526 = vrot.lane.b32.xlu0 %v1135, 16
        %v1527 = vpop.permute.xlu0 %1526
        %1528 = vrot.lane.b32.xlu0 %v1136, 16
        %v1529 = vpop.permute.xlu0 %1528
        %1530 = vrot.lane.b32.xlu0 %v1137, 16
        %v1531 = vpop.permute.xlu0 %1530
        %1532 = vrot.lane.b32.xlu0 %v1138, 16
        %v1533 = vpop.permute.xlu0 %1532
        %1534 = vrot.lane.b32.xlu0 %v1139, 16
        %v1535 = vpop.permute.xlu0 %1534
        %1536 = vrot.lane.b32.xlu0 %v1140, 16
        %v1537 = vpop.permute.xlu0 %1536
        %1538 = vrot.lane.b32.xlu0 %v1141, 16
        %v1539 = vpop.permute.xlu0 %1538
        %1540 = vrot.lane.b32.xlu0 %v1142, 16
        %v1541 = vpop.permute.xlu0 %1540
        %1542 = vrot.lane.b32.xlu0 %v1143, 16
        %v1543 = vpop.permute.xlu0 %1542
        %1544 = vrot.lane.b32.xlu0 %v1144, 16
        %v1545 = vpop.permute.xlu0 %1544
        %1546 = vrot.lane.b32.xlu0 %v1145, 16
        %v1547 = vpop.permute.xlu0 %1546
        %1548 = vrot.lane.b32.xlu0 %v1146, 16
        %v1549 = vpop.permute.xlu0 %1548
        %1550 = vrot.lane.b32.xlu0 %v1147, 16
        %v1551 = vpop.permute.xlu0 %1550
        %1552 = vrot.lane.b32.xlu0 %v1148, 16
        %v1553 = vpop.permute.xlu0 %1552
        %1554 = vrot.lane.b32.xlu0 %v1149, 16
        %v1555 = vpop.permute.xlu0 %1554
        %1556 = vrot.lane.b32.xlu0 %v1150, 16
        %v1557 = vpop.permute.xlu0 %1556
        %1558 = vrot.lane.b32.xlu0 %v1151, 16
        %v1559 = vpop.permute.xlu0 %1558
        %1560 = vrot.lane.b32.xlu0 %v1152, 16
        %v1561 = vpop.permute.xlu0 %1560
        %1562 = vrot.lane.b32.xlu0 %v1153, 16
        %v1563 = vpop.permute.xlu0 %1562
        %1564 = vrot.lane.b32.xlu0 %v1154, 16
        %v1565 = vpop.permute.xlu0 %1564
        %1566 = vrot.lane.b32.xlu0 %v1155, 16
        %v1567 = vpop.permute.xlu0 %1566
        %1568 = vrot.lane.b32.xlu0 %v1156, 16
        %v1569 = vpop.permute.xlu0 %1568
        %1570 = vrot.lane.b32.xlu0 %v1157, 16
        %v1571 = vpop.permute.xlu0 %1570
        %1572 = vrot.lane.b32.xlu0 %v1158, 16
        %v1573 = vpop.permute.xlu0 %1572
        %1574 = vrot.lane.b32.xlu0 %v1159, 16
        %v1575 = vpop.permute.xlu0 %1574
        %1576 = vrot.lane.b32.xlu0 %v1160, 16
        %v1577 = vpop.permute.xlu0 %1576
        %1578 = vrot.lane.b32.xlu0 %v1161, 16
        %v1579 = vpop.permute.xlu0 %1578
        %1644 = vrot.lane.b32.xlu0 %v1163, 24
        %v1645 = vpop.permute.xlu0 %1644
        %1646 = vrot.lane.b32.xlu0 %v1164, 24
        %v1647 = vpop.permute.xlu0 %1646
        %1648 = vrot.lane.b32.xlu0 %v1165, 24
        %v1649 = vpop.permute.xlu0 %1648
        %1650 = vrot.lane.b32.xlu0 %v1166, 24
        %v1651 = vpop.permute.xlu0 %1650
        %1652 = vrot.lane.b32.xlu0 %v1167, 24
        %v1653 = vpop.permute.xlu0 %1652
        %1654 = vrot.lane.b32.xlu0 %v1168, 24
        %v1655 = vpop.permute.xlu0 %1654
        %1656 = vrot.lane.b32.xlu0 %v1169, 24
        %v1657 = vpop.permute.xlu0 %1656
        %1658 = vrot.lane.b32.xlu0 %v1170, 24
        %v1659 = vpop.permute.xlu0 %1658
        %1660 = vrot.lane.b32.xlu0 %v1171, 24
        %v1661 = vpop.permute.xlu0 %1660
        %1662 = vrot.lane.b32.xlu0 %v1172, 24
        %v1663 = vpop.permute.xlu0 %1662
        %1664 = vrot.lane.b32.xlu0 %v1173, 24
        %v1665 = vpop.permute.xlu0 %1664
        %1666 = vrot.lane.b32.xlu0 %v1174, 24
        %v1667 = vpop.permute.xlu0 %1666
        %1668 = vrot.lane.b32.xlu0 %v1175, 24
        %v1669 = vpop.permute.xlu0 %1668
        %1670 = vrot.lane.b32.xlu0 %v1176, 24
        %v1671 = vpop.permute.xlu0 %1670
        %1672 = vrot.lane.b32.xlu0 %v1177, 24
        %v1673 = vpop.permute.xlu0 %1672
        %1674 = vrot.lane.b32.xlu0 %v1178, 24
        %v1675 = vpop.permute.xlu0 %1674
        %1676 = vrot.lane.b32.xlu0 %v1179, 24
        %v1677 = vpop.permute.xlu0 %1676
        %1678 = vrot.lane.b32.xlu0 %v1180, 24
        %v1679 = vpop.permute.xlu0 %1678
        %1680 = vrot.lane.b32.xlu0 %v1181, 24
        %v1681 = vpop.permute.xlu0 %1680
        %1682 = vrot.lane.b32.xlu0 %v1182, 24
        %v1683 = vpop.permute.xlu0 %1682
        %1684 = vrot.lane.b32.xlu0 %v1183, 24
        %v1685 = vpop.permute.xlu0 %1684
        %1686 = vrot.lane.b32.xlu0 %v1184, 24
        %v1687 = vpop.permute.xlu0 %1686
        %1688 = vrot.lane.b32.xlu0 %v1185, 24
        %v1689 = vpop.permute.xlu0 %1688
        %1690 = vrot.lane.b32.xlu0 %v1186, 24
        %v1691 = vpop.permute.xlu0 %1690
        %1692 = vrot.lane.b32.xlu0 %v1187, 24
        %v1693 = vpop.permute.xlu0 %1692
        %1694 = vrot.lane.b32.xlu0 %v1188, 24
        %v1695 = vpop.permute.xlu0 %1694
        %1696 = vrot.lane.b32.xlu0 %v1189, 24
        %v1697 = vpop.permute.xlu0 %1696
        %1698 = vrot.lane.b32.xlu0 %v1190, 24
        %v1699 = vpop.permute.xlu0 %1698
        %1700 = vrot.lane.b32.xlu0 %v1191, 24
        %v1701 = vpop.permute.xlu0 %1700
        %1702 = vrot.lane.b32.xlu0 %v1192, 24
        %v1703 = vpop.permute.xlu0 %1702
        %1704 = vrot.lane.b32.xlu0 %v1193, 24
        %v1705 = vpop.permute.xlu0 %1704
        %1706 = vrot.lane.b32.xlu0 %v1194, 24
        %v1707 = vpop.permute.xlu0 %1706
        %1772 = vrot.lane.b32.xlu0 %v1195, 32
        %v1773 = vpop.permute.xlu0 %1772
        %1774 = vrot.lane.b32.xlu0 %v1196, 32
        %v1775 = vpop.permute.xlu0 %1774
        %1776 = vrot.lane.b32.xlu0 %v1197, 32
        %v1777 = vpop.permute.xlu0 %1776
        %1778 = vrot.lane.b32.xlu0 %v1198, 32
        %v1779 = vpop.permute.xlu0 %1778
        %1780 = vrot.lane.b32.xlu0 %v1199, 32
        %v1781 = vpop.permute.xlu0 %1780
        %1782 = vrot.lane.b32.xlu0 %v1200, 32
        %v1783 = vpop.permute.xlu0 %1782
        %1784 = vrot.lane.b32.xlu0 %v1201, 32
        %v1785 = vpop.permute.xlu0 %1784
        %1786 = vrot.lane.b32.xlu0 %v1202, 32
        %v1787 = vpop.permute.xlu0 %1786
        %1788 = vrot.lane.b32.xlu0 %v1203, 32
        %v1789 = vpop.permute.xlu0 %1788
        %1790 = vrot.lane.b32.xlu0 %v1204, 32
        %v1791 = vpop.permute.xlu0 %1790
        %1792 = vrot.lane.b32.xlu0 %v1205, 32
        %v1793 = vpop.permute.xlu0 %1792
        %1794 = vrot.lane.b32.xlu0 %v1206, 32
        %v1795 = vpop.permute.xlu0 %1794
        %1796 = vrot.lane.b32.xlu0 %v1207, 32
        %v1797 = vpop.permute.xlu0 %1796
        %1798 = vrot.lane.b32.xlu0 %v1208, 32
        %v1799 = vpop.permute.xlu0 %1798
        %1800 = vrot.lane.b32.xlu0 %v1209, 32
        %v1801 = vpop.permute.xlu0 %1800
        %1802 = vrot.lane.b32.xlu0 %v1210, 32
        %v1803 = vpop.permute.xlu0 %1802
        %1804 = vrot.lane.b32.xlu0 %v1211, 32
        %v1805 = vpop.permute.xlu0 %1804
        %1806 = vrot.lane.b32.xlu0 %v1212, 32
        %v1807 = vpop.permute.xlu0 %1806
        %1808 = vrot.lane.b32.xlu0 %v1213, 32
        %v1809 = vpop.permute.xlu0 %1808
        %1810 = vrot.lane.b32.xlu0 %v1214, 32
        %v1811 = vpop.permute.xlu0 %1810
        %1812 = vrot.lane.b32.xlu0 %v1215, 32
        %v1813 = vpop.permute.xlu0 %1812
        %1814 = vrot.lane.b32.xlu0 %v1216, 32
        %v1815 = vpop.permute.xlu0 %1814
        %1816 = vrot.lane.b32.xlu0 %v1217, 32
        %v1817 = vpop.permute.xlu0 %1816
        %1818 = vrot.lane.b32.xlu0 %v1218, 32
        %v1819 = vpop.permute.xlu0 %1818
        %1820 = vrot.lane.b32.xlu0 %v1219, 32
        %v1821 = vpop.permute.xlu0 %1820
        %1822 = vrot.lane.b32.xlu0 %v1220, 32
        %v1823 = vpop.permute.xlu0 %1822
        %1824 = vrot.lane.b32.xlu0 %v1221, 32
        %v1825 = vpop.permute.xlu0 %1824
        %1826 = vrot.lane.b32.xlu0 %v1222, 32
        %v1827 = vpop.permute.xlu0 %1826
        %1828 = vrot.lane.b32.xlu0 %v1223, 32
        %v1829 = vpop.permute.xlu0 %1828
        %1830 = vrot.lane.b32.xlu0 %v1224, 32
        %v1831 = vpop.permute.xlu0 %1830
        %1832 = vrot.lane.b32.xlu0 %v1225, 32
        %v1833 = vpop.permute.xlu0 %1832
        %1834 = vrot.lane.b32.xlu0 %v1226, 32
        %v1835 = vpop.permute.xlu0 %1834
        %1900 = vrot.lane.b32.xlu0 %v1227, 40
        %v1901 = vpop.permute.xlu0 %1900
        %1902 = vrot.lane.b32.xlu0 %v1228, 40
        %v1903 = vpop.permute.xlu0 %1902
        %1904 = vrot.lane.b32.xlu0 %v1229, 40
        %v1905 = vpop.permute.xlu0 %1904
        %1906 = vrot.lane.b32.xlu0 %v1230, 40
        %v1907 = vpop.permute.xlu0 %1906
        %1908 = vrot.lane.b32.xlu0 %v1231, 40
        %v1909 = vpop.permute.xlu0 %1908
        %1910 = vrot.lane.b32.xlu0 %v1232, 40
        %v1911 = vpop.permute.xlu0 %1910
        %1912 = vrot.lane.b32.xlu0 %v1233, 40
        %v1913 = vpop.permute.xlu0 %1912
        %1914 = vrot.lane.b32.xlu0 %v1234, 40
        %v1915 = vpop.permute.xlu0 %1914
        %1916 = vrot.lane.b32.xlu0 %v1235, 40
        %v1917 = vpop.permute.xlu0 %1916
        %1918 = vrot.lane.b32.xlu0 %v1236, 40
        %v1919 = vpop.permute.xlu0 %1918
        %1920 = vrot.lane.b32.xlu0 %v1237, 40
        %v1921 = vpop.permute.xlu0 %1920
        %1922 = vrot.lane.b32.xlu0 %v1238, 40
        %v1923 = vpop.permute.xlu0 %1922
        %1924 = vrot.lane.b32.xlu0 %v1239, 40
        %v1925 = vpop.permute.xlu0 %1924
        %1926 = vrot.lane.b32.xlu0 %v1240, 40
        %v1927 = vpop.permute.xlu0 %1926
        %1928 = vrot.lane.b32.xlu0 %v1241, 40
        %v1929 = vpop.permute.xlu0 %1928
        %1930 = vrot.lane.b32.xlu0 %v1242, 40
        %v1931 = vpop.permute.xlu0 %1930
        %1932 = vrot.lane.b32.xlu0 %v1243, 40
        %v1933 = vpop.permute.xlu0 %1932
        %1934 = vrot.lane.b32.xlu0 %v1244, 40
        %v1935 = vpop.permute.xlu0 %1934
        %1936 = vrot.lane.b32.xlu0 %v1245, 40
        %v1937 = vpop.permute.xlu0 %1936
        %1938 = vrot.lane.b32.xlu0 %v1246, 40
        %v1939 = vpop.permute.xlu0 %1938
        %1940 = vrot.lane.b32.xlu0 %v1247, 40
        %v1941 = vpop.permute.xlu0 %1940
        %1942 = vrot.lane.b32.xlu0 %v1248, 40
        %v1943 = vpop.permute.xlu0 %1942
        %1944 = vrot.lane.b32.xlu0 %v1249, 40
        %v1945 = vpop.permute.xlu0 %1944
        %1946 = vrot.lane.b32.xlu0 %v1250, 40
        %v1947 = vpop.permute.xlu0 %1946
        %1948 = vrot.lane.b32.xlu0 %v1251, 40
        %v1949 = vpop.permute.xlu0 %1948
        %1950 = vrot.lane.b32.xlu0 %v1252, 40
        %v1951 = vpop.permute.xlu0 %1950
        %1952 = vrot.lane.b32.xlu0 %v1253, 40
        %v1953 = vpop.permute.xlu0 %1952
        %1954 = vrot.lane.b32.xlu0 %v1254, 40
        %v1955 = vpop.permute.xlu0 %1954
        %1956 = vrot.lane.b32.xlu0 %v1255, 40
        %v1957 = vpop.permute.xlu0 %1956
        %1958 = vrot.lane.b32.xlu0 %v1256, 40
        %v1959 = vpop.permute.xlu0 %1958
        %1960 = vrot.lane.b32.xlu0 %v1257, 40
        %v1961 = vpop.permute.xlu0 %1960
        %1962 = vrot.lane.b32.xlu0 %v1258, 40
        %v1963 = vpop.permute.xlu0 %1962
        %2028 = vrot.lane.b32.xlu0 %v1260, 48
        %v2029 = vpop.permute.xlu0 %2028
        %2030 = vrot.lane.b32.xlu0 %v1261, 48
        %v2031 = vpop.permute.xlu0 %2030
        %2032 = vrot.lane.b32.xlu0 %v1262, 48
        %v2033 = vpop.permute.xlu0 %2032
        %2034 = vrot.lane.b32.xlu0 %v1263, 48
        %v2035 = vpop.permute.xlu0 %2034
        %2036 = vrot.lane.b32.xlu0 %v1264, 48
        %v2037 = vpop.permute.xlu0 %2036
        %2038 = vrot.lane.b32.xlu0 %v1265, 48
        %v2039 = vpop.permute.xlu0 %2038
        %2040 = vrot.lane.b32.xlu0 %v1266, 48
        %v2041 = vpop.permute.xlu0 %2040
        %2042 = vrot.lane.b32.xlu0 %v1267, 48
        %v2043 = vpop.permute.xlu0 %2042
        %2044 = vrot.lane.b32.xlu0 %v1268, 48
        %v2045 = vpop.permute.xlu0 %2044
        %2046 = vrot.lane.b32.xlu0 %v1269, 48
        %v2047 = vpop.permute.xlu0 %2046
        %2048 = vrot.lane.b32.xlu0 %v1270, 48
        %v2049 = vpop.permute.xlu0 %2048
        %2050 = vrot.lane.b32.xlu0 %v1271, 48
        %v2051 = vpop.permute.xlu0 %2050
        %2052 = vrot.lane.b32.xlu0 %v1272, 48
        %v2053 = vpop.permute.xlu0 %2052
        %2054 = vrot.lane.b32.xlu0 %v1273, 48
        %v2055 = vpop.permute.xlu0 %2054
        %2056 = vrot.lane.b32.xlu0 %v1274, 48
        %v2057 = vpop.permute.xlu0 %2056
        %2058 = vrot.lane.b32.xlu0 %v1275, 48
        %v2059 = vpop.permute.xlu0 %2058
        %2060 = vrot.lane.b32.xlu0 %v1276, 48
        %v2061 = vpop.permute.xlu0 %2060
        %2062 = vrot.lane.b32.xlu0 %v1277, 48
        %v2063 = vpop.permute.xlu0 %2062
        %2064 = vrot.lane.b32.xlu0 %v1278, 48
        %v2065 = vpop.permute.xlu0 %2064
        %2066 = vrot.lane.b32.xlu0 %v1279, 48
        %v2067 = vpop.permute.xlu0 %2066
        %2068 = vrot.lane.b32.xlu0 %v1280, 48
        %v2069 = vpop.permute.xlu0 %2068
        %2070 = vrot.lane.b32.xlu0 %v1281, 48
        %v2071 = vpop.permute.xlu0 %2070
        %2072 = vrot.lane.b32.xlu0 %v1282, 48
        %v2073 = vpop.permute.xlu0 %2072
        %2074 = vrot.lane.b32.xlu0 %v1283, 48
        %v2075 = vpop.permute.xlu0 %2074
        %2076 = vrot.lane.b32.xlu0 %v1284, 48
        %v2077 = vpop.permute.xlu0 %2076
        %2078 = vrot.lane.b32.xlu0 %v1285, 48
        %v2079 = vpop.permute.xlu0 %2078
        %2080 = vrot.lane.b32.xlu0 %v1286, 48
        %v2081 = vpop.permute.xlu0 %2080
        %2082 = vrot.lane.b32.xlu0 %v1287, 48
        %v2083 = vpop.permute.xlu0 %2082
        %2084 = vrot.lane.b32.xlu0 %v1288, 48
        %v2085 = vpop.permute.xlu0 %2084
        %2086 = vrot.lane.b32.xlu0 %v1289, 48
        %v2087 = vpop.permute.xlu0 %2086
        %2088 = vrot.lane.b32.xlu0 %v1290, 48
        %v2089 = vpop.permute.xlu0 %2088
        %2090 = vrot.lane.b32.xlu0 %v1291, 48
        %v2091 = vpop.permute.xlu0 %2090
        %2156 = vrot.lane.b32.xlu0 %v1292, 56
        %v2157 = vpop.permute.xlu0 %2156
        %2158 = vrot.lane.b32.xlu0 %v1293, 56
        %v2159 = vpop.permute.xlu0 %2158
        %2160 = vrot.lane.b32.xlu0 %v1294, 56
        %v2161 = vpop.permute.xlu0 %2160
        %2162 = vrot.lane.b32.xlu0 %v1295, 56
        %v2163 = vpop.permute.xlu0 %2162
        %2164 = vrot.lane.b32.xlu0 %v1296, 56
        %v2165 = vpop.permute.xlu0 %2164
        %2166 = vrot.lane.b32.xlu0 %v1297, 56
        %v2167 = vpop.permute.xlu0 %2166
        %2168 = vrot.lane.b32.xlu0 %v1298, 56
        %v2169 = vpop.permute.xlu0 %2168
        %2170 = vrot.lane.b32.xlu0 %v1299, 56
        %v2171 = vpop.permute.xlu0 %2170
        %2172 = vrot.lane.b32.xlu0 %v1300, 56
        %v2173 = vpop.permute.xlu0 %2172
        %2174 = vrot.lane.b32.xlu0 %v1301, 56
        %v2175 = vpop.permute.xlu0 %2174
        %2176 = vrot.lane.b32.xlu0 %v1302, 56
        %v2177 = vpop.permute.xlu0 %2176
        %2178 = vrot.lane.b32.xlu0 %v1303, 56
        %v2179 = vpop.permute.xlu0 %2178
        %2180 = vrot.lane.b32.xlu0 %v1304, 56
        %v2181 = vpop.permute.xlu0 %2180
        %2182 = vrot.lane.b32.xlu0 %v1305, 56
        %v2183 = vpop.permute.xlu0 %2182
        %2184 = vrot.lane.b32.xlu0 %v1306, 56
        %v2185 = vpop.permute.xlu0 %2184
        %2186 = vrot.lane.b32.xlu0 %v1307, 56
        %v2187 = vpop.permute.xlu0 %2186
        %2188 = vrot.lane.b32.xlu0 %v1308, 56
        %v2189 = vpop.permute.xlu0 %2188
        %2190 = vrot.lane.b32.xlu0 %v1309, 56
        %v2191 = vpop.permute.xlu0 %2190
        %2192 = vrot.lane.b32.xlu0 %v1310, 56
        %v2193 = vpop.permute.xlu0 %2192
        %2194 = vrot.lane.b32.xlu0 %v1311, 56
        %v2195 = vpop.permute.xlu0 %2194
        %2196 = vrot.lane.b32.xlu0 %v1312, 56
        %v2197 = vpop.permute.xlu0 %2196
        %2198 = vrot.lane.b32.xlu0 %v1313, 56
        %v2199 = vpop.permute.xlu0 %2198
        %2200 = vrot.lane.b32.xlu0 %v1314, 56
        %v2201 = vpop.permute.xlu0 %2200
        %2202 = vrot.lane.b32.xlu0 %v1315, 56
        %v2203 = vpop.permute.xlu0 %2202
        %2204 = vrot.lane.b32.xlu0 %v1316, 56
        %v2205 = vpop.permute.xlu0 %2204
        %2206 = vrot.lane.b32.xlu0 %v1317, 56
        %v2207 = vpop.permute.xlu0 %2206
        %2208 = vrot.lane.b32.xlu0 %v1318, 56
        %v2209 = vpop.permute.xlu0 %2208
        %2210 = vrot.lane.b32.xlu0 %v1319, 56
        %v2211 = vpop.permute.xlu0 %2210
        %2212 = vrot.lane.b32.xlu0 %v1320, 56
        %v2213 = vpop.permute.xlu0 %2212
        %2214 = vrot.lane.b32.xlu0 %v1321, 56
        %v2215 = vpop.permute.xlu0 %2214
        %2216 = vrot.lane.b32.xlu0 %v1322, 56
        %v2217 = vpop.permute.xlu0 %2216
        %2218 = vrot.lane.b32.xlu0 %v1323, 56
        %v2219 = vpop.permute.xlu0 %2218
        %2284 = vrot.lane.b32.xlu0 %v1324, 64
        %v2285 = vpop.permute.xlu0 %2284
        %2286 = vrot.lane.b32.xlu0 %v1325, 64
        %v2287 = vpop.permute.xlu0 %2286
        %2288 = vrot.lane.b32.xlu0 %v1326, 64
        %v2289 = vpop.permute.xlu0 %2288
        %2290 = vrot.lane.b32.xlu0 %v1327, 64
        %v2291 = vpop.permute.xlu0 %2290
        %2292 = vrot.lane.b32.xlu0 %v1328, 64
        %v2293 = vpop.permute.xlu0 %2292
        %2294 = vrot.lane.b32.xlu0 %v1329, 64
        %v2295 = vpop.permute.xlu0 %2294
        %2296 = vrot.lane.b32.xlu0 %v1330, 64
        %v2297 = vpop.permute.xlu0 %2296
        %2298 = vrot.lane.b32.xlu0 %v1331, 64
        %v2299 = vpop.permute.xlu0 %2298
        %2300 = vrot.lane.b32.xlu0 %v1332, 64
        %v2301 = vpop.permute.xlu0 %2300
        %2302 = vrot.lane.b32.xlu0 %v1333, 64
        %v2303 = vpop.permute.xlu0 %2302
        %2304 = vrot.lane.b32.xlu0 %v1334, 64
        %v2305 = vpop.permute.xlu0 %2304
        %2306 = vrot.lane.b32.xlu0 %v1335, 64
        %v2307 = vpop.permute.xlu0 %2306
        %2308 = vrot.lane.b32.xlu0 %v1336, 64
        %v2309 = vpop.permute.xlu0 %2308
        %2310 = vrot.lane.b32.xlu0 %v1337, 64
        %v2311 = vpop.permute.xlu0 %2310
        %2312 = vrot.lane.b32.xlu0 %v1338, 64
        %v2313 = vpop.permute.xlu0 %2312
        %2314 = vrot.lane.b32.xlu0 %v1339, 64
        %v2315 = vpop.permute.xlu0 %2314
        %2316 = vrot.lane.b32.xlu0 %v1340, 64
        %v2317 = vpop.permute.xlu0 %2316
        %2318 = vrot.lane.b32.xlu0 %v1341, 64
        %v2319 = vpop.permute.xlu0 %2318
        %2320 = vrot.lane.b32.xlu0 %v1342, 64
        %v2321 = vpop.permute.xlu0 %2320
        %2322 = vrot.lane.b32.xlu0 %v1343, 64
        %v2323 = vpop.permute.xlu0 %2322
        %2324 = vrot.lane.b32.xlu0 %v1344, 64
        %v2325 = vpop.permute.xlu0 %2324
        %2326 = vrot.lane.b32.xlu0 %v1345, 64
        %v2327 = vpop.permute.xlu0 %2326
        %2328 = vrot.lane.b32.xlu0 %v1346, 64
        %v2329 = vpop.permute.xlu0 %2328
        %2330 = vrot.lane.b32.xlu0 %v1347, 64
        %v2331 = vpop.permute.xlu0 %2330
        %2332 = vrot.lane.b32.xlu0 %v1348, 64
        %v2333 = vpop.permute.xlu0 %2332
        %2334 = vrot.lane.b32.xlu0 %v1349, 64
        %v2335 = vpop.permute.xlu0 %2334
        %2336 = vrot.lane.b32.xlu0 %v1350, 64
        %v2337 = vpop.permute.xlu0 %2336
        %2338 = vrot.lane.b32.xlu0 %v1351, 64
        %v2339 = vpop.permute.xlu0 %2338
        %2340 = vrot.lane.b32.xlu0 %v1352, 64
        %v2341 = vpop.permute.xlu0 %2340
        %2342 = vrot.lane.b32.xlu0 %v1353, 64
        %v2343 = vpop.permute.xlu0 %2342
        %2344 = vrot.lane.b32.xlu0 %v1354, 64
        %v2345 = vpop.permute.xlu0 %2344
        %2346 = vrot.lane.b32.xlu0 %v1355, 64
        %v2347 = vpop.permute.xlu0 %2346
        %v2380 = vsel %vm1010, %v1066, %v1389
        %v2381 = vsel %vm1010, %v1067, %v1391
        %v2382 = vsel %vm1010, %v1068, %v1393
        %v2383 = vsel %vm1010, %v1069, %v1395
        %v2384 = vsel %vm1010, %v1070, %v1397
        %v2385 = vsel %vm1010, %v1071, %v1399
        %v2386 = vsel %vm1010, %v1072, %v1401
        %v2387 = vsel %vm1010, %v1073, %v1403
        %v2388 = vsel %vm1010, %v1074, %v1405
        %v2389 = vsel %vm1010, %v1075, %v1407
        %v2390 = vsel %vm1010, %v1076, %v1409
        %v2391 = vsel %vm1010, %v1077, %v1411
        %v2392 = vsel %vm1010, %v1078, %v1413
        %v2393 = vsel %vm1010, %v1079, %v1415
        %v2394 = vsel %vm1010, %v1080, %v1417
        %v2395 = vsel %vm1010, %v1081, %v1419
        %v2396 = vsel %vm1010, %v1082, %v1421
        %v2397 = vsel %vm1010, %v1083, %v1423
        %v2398 = vsel %vm1010, %v1084, %v1425
        %v2399 = vsel %vm1010, %v1085, %v1427
        %v2400 = vsel %vm1010, %v1086, %v1429
        %v2401 = vsel %vm1010, %v1087, %v1431
        %v2402 = vsel %vm1010, %v1088, %v1433
        %v2403 = vsel %vm1010, %v1089, %v1435
        %v2404 = vsel %vm1010, %v1090, %v1437
        %v2405 = vsel %vm1010, %v1091, %v1439
        %v2406 = vsel %vm1010, %v1092, %v1441
        %v2407 = vsel %vm1010, %v1093, %v1443
        %v2408 = vsel %vm1010, %v1094, %v1445
        %v2409 = vsel %vm1010, %v1095, %v1447
        %v2410 = vsel %vm1010, %v1096, %v1449
        %v2411 = vsel %vm1010, %v1097, %v1451
        %v2412 = vsel %vm410, %v2380, %v1517
        %v2413 = vsel %vm410, %v2381, %v1519
        %v2414 = vsel %vm410, %v2382, %v1521
        %v2415 = vsel %vm410, %v2383, %v1523
        %v2416 = vsel %vm410, %v2384, %v1525
        %v2417 = vsel %vm410, %v2385, %v1527
        %v2418 = vsel %vm410, %v2386, %v1529
        %v2419 = vsel %vm410, %v2387, %v1531
        %v2420 = vsel %vm410, %v2388, %v1533
        %v2421 = vsel %vm410, %v2389, %v1535
        %v2422 = vsel %vm410, %v2390, %v1537
        %v2423 = vsel %vm410, %v2391, %v1539
        %v2424 = vsel %vm410, %v2392, %v1541
        %v2425 = vsel %vm410, %v2393, %v1543
        %v2426 = vsel %vm410, %v2394, %v1545
        %v2427 = vsel %vm410, %v2395, %v1547
        %v2428 = vsel %vm410, %v2396, %v1549
        %v2429 = vsel %vm410, %v2397, %v1551
        %v2430 = vsel %vm410, %v2398, %v1553
        %v2431 = vsel %vm410, %v2399, %v1555
        %v2432 = vsel %vm410, %v2400, %v1557
        %v2433 = vsel %vm410, %v2401, %v1559
        %v2434 = vsel %vm410, %v2402, %v1561
        %v2435 = vsel %vm410, %v2403, %v1563
        %v2436 = vsel %vm410, %v2404, %v1565
        %v2437 = vsel %vm410, %v2405, %v1567
        %v2438 = vsel %vm410, %v2406, %v1569
        %v2439 = vsel %vm410, %v2407, %v1571
        %v2440 = vsel %vm410, %v2408, %v1573
        %v2441 = vsel %vm410, %v2409, %v1575
        %v2442 = vsel %vm410, %v2410, %v1577
        %v2443 = vsel %vm410, %v2411, %v1579
        %vm2444 = vcmask 195584
        %v2445 = vsel %vm2444, %v2412, %v1645
        %v2446 = vsel %vm2444, %v2413, %v1647
        %v2447 = vsel %vm2444, %v2414, %v1649
        %v2448 = vsel %vm2444, %v2415, %v1651
        %v2449 = vsel %vm2444, %v2416, %v1653
        %v2450 = vsel %vm2444, %v2417, %v1655
        %v2451 = vsel %vm2444, %v2418, %v1657
        %v2452 = vsel %vm2444, %v2419, %v1659
        %v2453 = vsel %vm2444, %v2420, %v1661
        %v2454 = vsel %vm2444, %v2421, %v1663
        %v2455 = vsel %vm2444, %v2422, %v1665
        %v2456 = vsel %vm2444, %v2423, %v1667
        %v2457 = vsel %vm2444, %v2424, %v1669
        %v2458 = vsel %vm2444, %v2425, %v1671
        %v2459 = vsel %vm2444, %v2426, %v1673
        %v2460 = vsel %vm2444, %v2427, %v1675
        %v2461 = vsel %vm2444, %v2428, %v1677
        %v2462 = vsel %vm2444, %v2429, %v1679
        %v2463 = vsel %vm2444, %v2430, %v1681
        %v2464 = vsel %vm2444, %v2431, %v1683
        %v2465 = vsel %vm2444, %v2432, %v1685
        %v2466 = vsel %vm2444, %v2433, %v1687
        %v2467 = vsel %vm2444, %v2434, %v1689
        %v2468 = vsel %vm2444, %v2435, %v1691
        %v2469 = vsel %vm2444, %v2436, %v1693
        %v2470 = vsel %vm2444, %v2437, %v1695
        %v2471 = vsel %vm2444, %v2438, %v1697
        %v2472 = vsel %vm2444, %v2439, %v1699
        %v2473 = vsel %vm2444, %v2440, %v1701
        %v2474 = vsel %vm2444, %v2441, %v1703
        %v2475 = vsel %vm2444, %v2442, %v1705
        %v2476 = vsel %vm2444, %v2443, %v1707
        %vm2477 = vcmask 261120
        %v2478 = vsel %vm2477, %v2445, %v1773
        %v2479 = vsel %vm2477, %v2446, %v1775
        %v2480 = vsel %vm2477, %v2447, %v1777
        %v2481 = vsel %vm2477, %v2448, %v1779
        %v2482 = vsel %vm2477, %v2449, %v1781
        %v2483 = vsel %vm2477, %v2450, %v1783
        %v2484 = vsel %vm2477, %v2451, %v1785
        %v2485 = vsel %vm2477, %v2452, %v1787
        %v2486 = vsel %vm2477, %v2453, %v1789
        %v2487 = vsel %vm2477, %v2454, %v1791
        %v2488 = vsel %vm2477, %v2455, %v1793
        %v2489 = vsel %vm2477, %v2456, %v1795
        %v2490 = vsel %vm2477, %v2457, %v1797
        %v2491 = vsel %vm2477, %v2458, %v1799
        %v2492 = vsel %vm2477, %v2459, %v1801
        %v2493 = vsel %vm2477, %v2460, %v1803
        %v2494 = vsel %vm2477, %v2461, %v1805
        %v2495 = vsel %vm2477, %v2462, %v1807
        %v2496 = vsel %vm2477, %v2463, %v1809
        %v2497 = vsel %vm2477, %v2464, %v1811
        %v2498 = vsel %vm2477, %v2465, %v1813
        %v2499 = vsel %vm2477, %v2466, %v1815
        %v2500 = vsel %vm2477, %v2467, %v1817
        %v2501 = vsel %vm2477, %v2468, %v1819
        %v2502 = vsel %vm2477, %v2469, %v1821
        %v2503 = vsel %vm2477, %v2470, %v1823
        %v2504 = vsel %vm2477, %v2471, %v1825
        %v2505 = vsel %vm2477, %v2472, %v1827
        %v2506 = vsel %vm2477, %v2473, %v1829
        %v2507 = vsel %vm2477, %v2474, %v1831
        %v2508 = vsel %vm2477, %v2475, %v1833
        %v2509 = vsel %vm2477, %v2476, %v1835
        %vm2510 = vcmask 326656
        %v2511 = vsel %vm2510, %v2478, %v1901
        %v2512 = vsel %vm2510, %v2479, %v1903
        %v2513 = vsel %vm2510, %v2480, %v1905
        %v2514 = vsel %vm2510, %v2481, %v1907
        %v2515 = vsel %vm2510, %v2482, %v1909
        %v2516 = vsel %vm2510, %v2483, %v1911
        %v2517 = vsel %vm2510, %v2484, %v1913
        %v2518 = vsel %vm2510, %v2485, %v1915
        %v2519 = vsel %vm2510, %v2486, %v1917
        %v2520 = vsel %vm2510, %v2487, %v1919
        %v2521 = vsel %vm2510, %v2488, %v1921
        %v2522 = vsel %vm2510, %v2489, %v1923
        %v2523 = vsel %vm2510, %v2490, %v1925
        %v2524 = vsel %vm2510, %v2491, %v1927
        %v2525 = vsel %vm2510, %v2492, %v1929
        %v2526 = vsel %vm2510, %v2493, %v1931
        %v2527 = vsel %vm2510, %v2494, %v1933
        %v2528 = vsel %vm2510, %v2495, %v1935
        %v2529 = vsel %vm2510, %v2496, %v1937
        %v2530 = vsel %vm2510, %v2497, %v1939
        %v2531 = vsel %vm2510, %v2498, %v1941
        %v2532 = vsel %vm2510, %v2499, %v1943
        %v2533 = vsel %vm2510, %v2500, %v1945
        %v2534 = vsel %vm2510, %v2501, %v1947
        %v2535 = vsel %vm2510, %v2502, %v1949
        %v2536 = vsel %vm2510, %v2503, %v1951
        %v2537 = vsel %vm2510, %v2504, %v1953
        %v2538 = vsel %vm2510, %v2505, %v1955
        %v2539 = vsel %vm2510, %v2506, %v1957
        %v2540 = vsel %vm2510, %v2507, %v1959
        %v2541 = vsel %vm2510, %v2508, %v1961
        %v2542 = vsel %vm2510, %v2509, %v1963
        %vm2543 = vcmask 392192
        %v2544 = vsel %vm2543, %v2511, %v2029
        %v2545 = vsel %vm2543, %v2512, %v2031
        %v2546 = vsel %vm2543, %v2513, %v2033
        %v2547 = vsel %vm2543, %v2514, %v2035
        %v2548 = vsel %vm2543, %v2515, %v2037
        %v2549 = vsel %vm2543, %v2516, %v2039
        %v2550 = vsel %vm2543, %v2517, %v2041
        %v2551 = vsel %vm2543, %v2518, %v2043
        %v2552 = vsel %vm2543, %v2519, %v2045
        %v2553 = vsel %vm2543, %v2520, %v2047
        %v2554 = vsel %vm2543, %v2521, %v2049
        %v2555 = vsel %vm2543, %v2522, %v2051
        %v2556 = vsel %vm2543, %v2523, %v2053
        %v2557 = vsel %vm2543, %v2524, %v2055
        %v2558 = vsel %vm2543, %v2525, %v2057
        %v2559 = vsel %vm2543, %v2526, %v2059
        %v2560 = vsel %vm2543, %v2527, %v2061
        %v2561 = vsel %vm2543, %v2528, %v2063
        %v2562 = vsel %vm2543, %v2529, %v2065
        %v2563 = vsel %vm2543, %v2530, %v2067
        %v2564 = vsel %vm2543, %v2531, %v2069
        %v2565 = vsel %vm2543, %v2532, %v2071
        %v2566 = vsel %vm2543, %v2533, %v2073
        %v2567 = vsel %vm2543, %v2534, %v2075
        %v2568 = vsel %vm2543, %v2535, %v2077
        %v2569 = vsel %vm2543, %v2536, %v2079
        %v2570 = vsel %vm2543, %v2537, %v2081
        %v2571 = vsel %vm2543, %v2538, %v2083
        %v2572 = vsel %vm2543, %v2539, %v2085
        %v2573 = vsel %vm2543, %v2540, %v2087
        %v2574 = vsel %vm2543, %v2541, %v2089
        %v2575 = vsel %vm2543, %v2542, %v2091
        %vm2576 = vcmask 457728
        %v2577 = vsel %vm2576, %v2544, %v2157
        %v2578 = vsel %vm2576, %v2545, %v2159
        %v2579 = vsel %vm2576, %v2546, %v2161
        %v2580 = vsel %vm2576, %v2547, %v2163
        %v2581 = vsel %vm2576, %v2548, %v2165
        %v2582 = vsel %vm2576, %v2549, %v2167
        %v2583 = vsel %vm2576, %v2550, %v2169
        %v2584 = vsel %vm2576, %v2551, %v2171
        %v2585 = vsel %vm2576, %v2552, %v2173
        %v2586 = vsel %vm2576, %v2553, %v2175
        %v2587 = vsel %vm2576, %v2554, %v2177
        %v2588 = vsel %vm2576, %v2555, %v2179
        %v2589 = vsel %vm2576, %v2556, %v2181
        %v2590 = vsel %vm2576, %v2557, %v2183
        %v2591 = vsel %vm2576, %v2558, %v2185
        %v2592 = vsel %vm2576, %v2559, %v2187
        %v2593 = vsel %vm2576, %v2560, %v2189
        %v2594 = vsel %vm2576, %v2561, %v2191
        %v2595 = vsel %vm2576, %v2562, %v2193
        %v2596 = vsel %vm2576, %v2563, %v2195
        %v2597 = vsel %vm2576, %v2564, %v2197
        %v2598 = vsel %vm2576, %v2565, %v2199
        %v2599 = vsel %vm2576, %v2566, %v2201
        %v2600 = vsel %vm2576, %v2567, %v2203
        %v2601 = vsel %vm2576, %v2568, %v2205
        %v2602 = vsel %vm2576, %v2569, %v2207
        %v2603 = vsel %vm2576, %v2570, %v2209
        %v2604 = vsel %vm2576, %v2571, %v2211
        %v2605 = vsel %vm2576, %v2572, %v2213
        %v2606 = vsel %vm2576, %v2573, %v2215
        %v2607 = vsel %vm2576, %v2574, %v2217
        %v2608 = vsel %vm2576, %v2575, %v2219
        %vm2609 = vcmask 523264
        %v2610 = vsel %vm2609, %v2577, %v2285
        %v2611 = vsel %vm2609, %v2578, %v2287
        %v2612 = vsel %vm2609, %v2579, %v2289
        %v2613 = vsel %vm2609, %v2580, %v2291
        %v2614 = vsel %vm2609, %v2581, %v2293
        %v2615 = vsel %vm2609, %v2582, %v2295
        %v2616 = vsel %vm2609, %v2583, %v2297
        %v2617 = vsel %vm2609, %v2584, %v2299
        %v2618 = vsel %vm2609, %v2585, %v2301
        %v2619 = vsel %vm2609, %v2586, %v2303
        %v2620 = vsel %vm2609, %v2587, %v2305
        %v2621 = vsel %vm2609, %v2588, %v2307
        %v2622 = vsel %vm2609, %v2589, %v2309
        %v2623 = vsel %vm2609, %v2590, %v2311
        %v2624 = vsel %vm2609, %v2591, %v2313
        %v2625 = vsel %vm2609, %v2592, %v2315
        %v2626 = vsel %vm2609, %v2593, %v2317
        %v2627 = vsel %vm2609, %v2594, %v2319
        %v2628 = vsel %vm2609, %v2595, %v2321
        %v2629 = vsel %vm2609, %v2596, %v2323
        %v2630 = vsel %vm2609, %v2597, %v2325
        %v2631 = vsel %vm2609, %v2598, %v2327
        %v2632 = vsel %vm2609, %v2599, %v2329
        %v2633 = vsel %vm2609, %v2600, %v2331
        %v2634 = vsel %vm2609, %v2601, %v2333
        %v2635 = vsel %vm2609, %v2602, %v2335
        %v2636 = vsel %vm2609, %v2603, %v2337
        %v2637 = vsel %vm2609, %v2604, %v2339
        %v2638 = vsel %vm2609, %v2605, %v2341
        %v2639 = vsel %vm2609, %v2606, %v2343
        %v2640 = vsel %vm2609, %v2607, %v2345
        %v2641 = vsel %vm2609, %v2608, %v2347
        %v2642 = vld [vmem:[#allocation11] sm:$0xff]
        %v2643 = vld [vmem:[#allocation11 + $0x8] sm:$0xff]
        %v2644 = vld [vmem:[#allocation11 + $0x10] sm:$0xff]
        %v2645 = vld [vmem:[#allocation11 + $0x18] sm:$0xff]
        %v2646 = vld [vmem:[#allocation11 + $0x20] sm:$0xff]
        %v2647 = vld [vmem:[#allocation11 + $0x28] sm:$0xff]
        %v2648 = vld [vmem:[#allocation11 + $0x30] sm:$0xff]
        %v2649 = vld [vmem:[#allocation11 + $0x38] sm:$0xff]
        %v2650 = vld [vmem:[#allocation11 + $0x40] sm:$0xff]
        %vm2651 = vcmask 588800
        %v2653 = vsel %vm2651, %v2610, 0
        %v2656 = vsel %vm2651, %v2611, 0
        %v2659 = vsel %vm2651, %v2612, 0
        %v2662 = vsel %vm2651, %v2613, 0
        %v2665 = vsel %vm2651, %v2614, 0
        %v2668 = vsel %vm2651, %v2615, 0
        %v2671 = vsel %vm2651, %v2616, 0
        %v2674 = vsel %vm2651, %v2617, 0
        %v2677 = vsel %vm2651, %v2618, 0
        %v2680 = vsel %vm2651, %v2619, 0
        %v2683 = vsel %vm2651, %v2620, 0
        %v2686 = vsel %vm2651, %v2621, 0
        %v2689 = vsel %vm2651, %v2622, 0
        %v2692 = vsel %vm2651, %v2623, 0
        %v2695 = vsel %vm2651, %v2624, 0
        %v2698 = vsel %vm2651, %v2625, 0
        %v2701 = vsel %vm2651, %v2626, 0
        %v2704 = vsel %vm2651, %v2627, 0
        %v2707 = vsel %vm2651, %v2628, 0
        %v2710 = vsel %vm2651, %v2629, 0
        %v2713 = vsel %vm2651, %v2630, 0
        %v2716 = vsel %vm2651, %v2631, 0
        %v2719 = vsel %vm2651, %v2632, 0
        %v2722 = vsel %vm2651, %v2633, 0
        %v2725 = vsel %vm2651, %v2634, 0
        %v2728 = vsel %vm2651, %v2635, 0
        %v2731 = vsel %vm2651, %v2636, 0
        %v2734 = vsel %vm2651, %v2637, 0
        %v2737 = vsel %vm2651, %v2638, 0
        %v2740 = vsel %vm2651, %v2639, 0
        %v2743 = vsel %vm2651, %v2640, 0
        %v2746 = vsel %vm2651, %v2641, 0
        %2748 = vmatprep.subr.mxu0 0.0
        %2749 = vmatpush1.msra.mxu0 %v2642
        %2750 = vmatprep.subr.mxu0 0.0
        %2751 = vmatpush1.msra.mxu0 %v2643
        %2752 = vmatprep.subr.mxu0 0.0
        %2753 = vmatpush1.msra.mxu0 %v2644
        %2754 = vmatprep.subr.mxu0 0.0
        %2755 = vmatpush1.msra.mxu0 %v2645
        %2756 = vmatprep.subr.mxu0 0.0
        %2757 = vmatpush1.msra.mxu0 %v2646
        %2758 = vmatprep.subr.mxu0 0.0
        %2759 = vmatpush1.msra.mxu0 %v2647
        %2760 = vmatprep.subr.mxu0 0.0
        %2761 = vmatpush1.msra.mxu0 %v2648
        %2762 = vmatprep.subr.mxu0 0.0
        %2763 = vmatpush1.msra.mxu0 %v2649
        %2764 = vmatprep.subr.mxu0 0.0
        %2765 = vmatpush1.msra.mxu0 %v2650
        %2766 = vmatprep.subr.mxu0 0.0
        %2767 = vmatpush1.msra.mxu0 0.0
        %2768 = vmatprep.subr.mxu0 0.0
        %2769 = vmatpush1.msra.mxu0 0.0
        %2770 = vmatprep.subr.mxu0 0.0
        %2771 = vmatpush1.msra.mxu0 0.0
        %2772 = vmatprep.subr.mxu0 0.0
        %2773 = vmatpush1.msra.mxu0 0.0
        %2774 = vmatprep.subr.mxu0 0.0
        %2775 = vmatpush1.msra.mxu0 0.0
        %2776 = vmatprep.subr.mxu0 0.0
        %2777 = vmatpush1.msra.mxu0 0.0
        %2778 = vmatprep.subr.mxu0 0.0
        %2779 = vmatpush1.msra.mxu0 0.0
        %2780 = vmatprep.subr.mxu0 0.0
        %2781 = vmatpush1.msra.mxu0 0.0
        %2782 = vmatprep.subr.mxu0 0.0
        %2783 = vmatpush1.msra.mxu0 0.0
        %2784 = vmatprep.subr.mxu0 0.0
        %2785 = vmatpush1.msra.mxu0 0.0
        %2786 = vmatprep.subr.mxu0 0.0
        %2787 = vmatpush1.msra.mxu0 0.0
        %2788 = vmatprep.subr.mxu0 0.0
        %2789 = vmatpush1.msra.mxu0 0.0
        %2790 = vmatprep.subr.mxu0 0.0
        %2791 = vmatpush1.msra.mxu0 0.0
        %2792 = vmatprep.subr.mxu0 0.0
        %2793 = vmatpush1.msra.mxu0 0.0
        %2794 = vmatprep.subr.mxu0 0.0
        %2795 = vmatpush1.msra.mxu0 0.0
        %2796 = vmatprep.subr.mxu0 0.0
        %2797 = vmatpush1.msra.mxu0 0.0
        %2798 = vmatprep.subr.mxu0 0.0
        %2799 = vmatpush1.msra.mxu0 0.0
        %2800 = vmatprep.subr.mxu0 0.0
        %2801 = vmatpush1.msra.mxu0 0.0
        %2802 = vmatprep.subr.mxu0 0.0
        %2803 = vmatpush1.msra.mxu0 0.0
        %2804 = vmatprep.subr.mxu0 0.0
        %2805 = vmatpush1.msra.mxu0 0.0
        %2806 = vmatprep.subr.mxu0 0.0
        %2807 = vmatpush1.msra.mxu0 0.0
        %2808 = vmatprep.subr.mxu0 0.0
        %2809 = vmatpush1.msra.mxu0 0.0
        %2810 = vmatprep.subr.mxu0 0.0
        %2811 = vmatpush1.msra.mxu0 0.0
        %2812 = vmatprep.mubr.f32.mxu0 0.0
        %2813 = vmatmul.mubr.f32.gmra.mrb[0].mxu0 %v2653
        %v2814 = vpop.f32.mrb[0].mxu0
        %v2815 = vadd.f32 0.0, %v2814
        %v2816 = vpop.f32.mrb[0].mxu0
        %2817 = vmatprep.mubr.f32.mxu0 0.0
        %2818 = vmatmul.mubr.f32.gmra.mrb[0].mxu0 %v2656
        %v2819 = vpop.f32.mrb[0].mxu0
        %v2820 = vadd.f32 0.0, %v2819
        %v2821 = vpop.f32.mrb[0].mxu0
        %2822 = vmatprep.mubr.f32.mxu0 0.0
        %2823 = vmatmul.mubr.f32.gmra.mrb[0].mxu0 %v2659
        %v2824 = vpop.f32.mrb[0].mxu0
        %v2825 = vadd.f32 0.0, %v2824
        %v2826 = vpop.f32.mrb[0].mxu0
        %2827 = vmatprep.mubr.f32.mxu0 0.0
        %2828 = vmatmul.mubr.f32.gmra.mrb[0].mxu0 %v2662
        %v2829 = vpop.f32.mrb[0].mxu0
        %v2830 = vadd.f32 0.0, %v2829
        %v2831 = vpop.f32.mrb[0].mxu0
        %2832 = vmatprep.mubr.f32.mxu0 0.0
        %2833 = vmatmul.mubr.f32.gmra.mrb[0].mxu0 %v2665
        %v2834 = vpop.f32.mrb[0].mxu0
        %v2835 = vadd.f32 0.0, %v2834
        %v2836 = vpop.f32.mrb[0].mxu0
        %2837 = vmatprep.mubr.f32.mxu0 0.0
        %2838 = vmatmul.mubr.f32.gmra.mrb[0].mxu0 %v2668
        %v2839 = vpop.f32.mrb[0].mxu0
        %v2840 = vadd.f32 0.0, %v2839
        %v2841 = vpop.f32.mrb[0].mxu0
        %2842 = vmatprep.mubr.f32.mxu0 0.0
        %2843 = vmatmul.mubr.f32.gmra.mrb[0].mxu0 %v2671
        %v2844 = vpop.f32.mrb[0].mxu0
        %v2845 = vadd.f32 0.0, %v2844
        %v2846 = vpop.f32.mrb[0].mxu0
        %2847 = vmatprep.mubr.f32.mxu0 0.0
        %2848 = vmatmul.mubr.f32.gmra.mrb[0].mxu0 %v2674
        %v2849 = vpop.f32.mrb[0].mxu0
        %v2850 = vadd.f32 0.0, %v2849
        %v2851 = vpop.f32.mrb[0].mxu0
        %2852 = vmatprep.mubr.f32.mxu0 0.0
        %2853 = vmatmul.mubr.f32.gmra.mrb[0].mxu0 %v2677
        %v2854 = vpop.f32.mrb[0].mxu0
        %v2855 = vadd.f32 0.0, %v2854
        %v2856 = vpop.f32.mrb[0].mxu0
        %2857 = vmatprep.mubr.f32.mxu0 0.0
        %2858 = vmatmul.mubr.f32.gmra.mrb[0].mxu0 %v2680
        %v2859 = vpop.f32.mrb[0].mxu0
        %v2860 = vadd.f32 0.0, %v2859
        %v2861 = vpop.f32.mrb[0].mxu0
        %2862 = vmatprep.mubr.f32.mxu0 0.0
        %2863 = vmatmul.mubr.f32.gmra.mrb[0].mxu0 %v2683
        %v2864 = vpop.f32.mrb[0].mxu0
        %v2865 = vadd.f32 0.0, %v2864
        %v2866 = vpop.f32.mrb[0].mxu0
        %2867 = vmatprep.mubr.f32.mxu0 0.0
        %2868 = vmatmul.mubr.f32.gmra.mrb[0].mxu0 %v2686
        %v2869 = vpop.f32.mrb[0].mxu0
        %v2870 = vadd.f32 0.0, %v2869
        %v2871 = vpop.f32.mrb[0].mxu0
        %2872 = vmatprep.mubr.f32.mxu0 0.0
        %2873 = vmatmul.mubr.f32.gmra.mrb[0].mxu0 %v2689
        %v2874 = vpop.f32.mrb[0].mxu0
        %v2875 = vadd.f32 0.0, %v2874
        %v2876 = vpop.f32.mrb[0].mxu0
        %2877 = vmatprep.mubr.f32.mxu0 0.0
        %2878 = vmatmul.mubr.f32.gmra.mrb[0].mxu0 %v2692
        %v2879 = vpop.f32.mrb[0].mxu0
        %v2880 = vadd.f32 0.0, %v2879
        %v2881 = vpop.f32.mrb[0].mxu0
        %2882 = vmatprep.mubr.f32.mxu0 0.0
        %2883 = vmatmul.mubr.f32.gmra.mrb[0].mxu0 %v2695
        %v2884 = vpop.f32.mrb[0].mxu0
        %v2885 = vadd.f32 0.0, %v2884
        %v2886 = vpop.f32.mrb[0].mxu0
        %2887 = vmatprep.mubr.f32.mxu0 0.0
        %2888 = vmatmul.mubr.f32.gmra.mrb[0].mxu0 %v2698
        %v2889 = vpop.f32.mrb[0].mxu0
        %v2890 = vadd.f32 0.0, %v2889
        %v2891 = vpop.f32.mrb[0].mxu0
        %2892 = vmatprep.mubr.f32.mxu0 0.0
        %2893 = vmatmul.mubr.f32.gmra.mrb[0].mxu0 %v2701
        %v2894 = vpop.f32.mrb[0].mxu0
        %v2895 = vadd.f32 0.0, %v2894
        %v2896 = vpop.f32.mrb[0].mxu0
        %2897 = vmatprep.mubr.f32.mxu0 0.0
        %2898 = vmatmul.mubr.f32.gmra.mrb[0].mxu0 %v2704
        %v2899 = vpop.f32.mrb[0].mxu0
        %v2900 = vadd.f32 0.0, %v2899
        %v2901 = vpop.f32.mrb[0].mxu0
        %2902 = vmatprep.mubr.f32.mxu0 0.0
        %2903 = vmatmul.mubr.f32.gmra.mrb[0].mxu0 %v2707
        %v2904 = vpop.f32.mrb[0].mxu0
        %v2905 = vadd.f32 0.0, %v2904
        %v2906 = vpop.f32.mrb[0].mxu0
        %2907 = vmatprep.mubr.f32.mxu0 0.0
        %2908 = vmatmul.mubr.f32.gmra.mrb[0].mxu0 %v2710
        %v2909 = vpop.f32.mrb[0].mxu0
        %v2910 = vadd.f32 0.0, %v2909
        %v2911 = vpop.f32.mrb[0].mxu0
        %2912 = vmatprep.mubr.f32.mxu0 0.0
        %2913 = vmatmul.mubr.f32.gmra.mrb[0].mxu0 %v2713
        %v2914 = vpop.f32.mrb[0].mxu0
        %v2915 = vadd.f32 0.0, %v2914
        %v2916 = vpop.f32.mrb[0].mxu0
        %2917 = vmatprep.mubr.f32.mxu0 0.0
        %2918 = vmatmul.mubr.f32.gmra.mrb[0].mxu0 %v2716
        %v2919 = vpop.f32.mrb[0].mxu0
        %v2920 = vadd.f32 0.0, %v2919
        %v2921 = vpop.f32.mrb[0].mxu0
        %2922 = vmatprep.mubr.f32.mxu0 0.0
        %2923 = vmatmul.mubr.f32.gmra.mrb[0].mxu0 %v2719
        %v2924 = vpop.f32.mrb[0].mxu0
        %v2925 = vadd.f32 0.0, %v2924
        %v2926 = vpop.f32.mrb[0].mxu0
        %2927 = vmatprep.mubr.f32.mxu0 0.0
        %2928 = vmatmul.mubr.f32.gmra.mrb[0].mxu0 %v2722
        %v2929 = vpop.f32.mrb[0].mxu0
        %v2930 = vadd.f32 0.0, %v2929
        %v2931 = vpop.f32.mrb[0].mxu0
        %2932 = vmatprep.mubr.f32.mxu0 0.0
        %2933 = vmatmul.mubr.f32.gmra.mrb[0].mxu0 %v2725
        %v2934 = vpop.f32.mrb[0].mxu0
        %v2935 = vadd.f32 0.0, %v2934
        %v2936 = vpop.f32.mrb[0].mxu0
        %2937 = vmatprep.mubr.f32.mxu0 0.0
        %2938 = vmatmul.mubr.f32.gmra.mrb[0].mxu0 %v2728
        %v2939 = vpop.f32.mrb[0].mxu0
        %v2940 = vadd.f32 0.0, %v2939
        %v2941 = vpop.f32.mrb[0].mxu0
        %2942 = vmatprep.mubr.f32.mxu0 0.0
        %2943 = vmatmul.mubr.f32.gmra.mrb[0].mxu0 %v2731
        %v2944 = vpop.f32.mrb[0].mxu0
        %v2945 = vadd.f32 0.0, %v2944
        %v2946 = vpop.f32.mrb[0].mxu0
        %2947 = vmatprep.mubr.f32.mxu0 0.0
        %2948 = vmatmul.mubr.f32.gmra.mrb[0].mxu0 %v2734
        %v2949 = vpop.f32.mrb[0].mxu0
        %v2950 = vadd.f32 0.0, %v2949
        %v2951 = vpop.f32.mrb[0].mxu0
        %2952 = vmatprep.mubr.f32.mxu0 0.0
        %2953 = vmatmul.mubr.f32.gmra.mrb[0].mxu0 %v2737
        %v2954 = vpop.f32.mrb[0].mxu0
        %v2955 = vadd.f32 0.0, %v2954
        %v2956 = vpop.f32.mrb[0].mxu0
        %2957 = vmatprep.mubr.f32.mxu0 0.0
        %2958 = vmatmul.mubr.f32.gmra.mrb[0].mxu0 %v2740
        %v2959 = vpop.f32.mrb[0].mxu0
        %v2960 = vadd.f32 0.0, %v2959
        %v2961 = vpop.f32.mrb[0].mxu0
        %2962 = vmatprep.mubr.f32.mxu0 0.0
        %2963 = vmatmul.mubr.f32.gmra.mrb[0].mxu0 %v2743
        %v2964 = vpop.f32.mrb[0].mxu0
        %v2965 = vadd.f32 0.0, %v2964
        %v2966 = vpop.f32.mrb[0].mxu0
        %2967 = vmatprep.mubr.f32.mxu0 0.0
        %2968 = vmatmul.mubr.f32.gmra.mrb[0].mxu0 %v2746
        %v2969 = vpop.f32.mrb[0].mxu0
        %v2970 = vadd.f32 0.0, %v2969
        %v2971 = vpop.f32.mrb[0].mxu0
        %2972 = vdwg.mxu0
        %v2973 = vld [vmem:[#allocation12] sm:$0x1]
        %v2975 = vlaneseq
        %v2976 = vshrl.u32 %v2975, 7
        %v2977 = vsub.s32 0, %v2976
        %v2978 = vrot.slane %v2973, %v2977
        %v2980 = vmul.f32 %v2815, %v2978
        %v2981 = vmul.f32 %v2820, %v2978
        %v2982 = vmul.f32 %v2825, %v2978
        %v2983 = vmul.f32 %v2830, %v2978
        %v2984 = vmul.f32 %v2835, %v2978
        %v2985 = vmul.f32 %v2840, %v2978
        %v2986 = vmul.f32 %v2845, %v2978
        %v2987 = vmul.f32 %v2850, %v2978
        %v2988 = vmul.f32 %v2855, %v2978
        %v2989 = vmul.f32 %v2860, %v2978
        %v2990 = vmul.f32 %v2865, %v2978
        %v2991 = vmul.f32 %v2870, %v2978
        %v2992 = vmul.f32 %v2875, %v2978
        %v2993 = vmul.f32 %v2880, %v2978
        %v2994 = vmul.f32 %v2885, %v2978
        %v2995 = vmul.f32 %v2890, %v2978
        %v2996 = vmul.f32 %v2895, %v2978
        %v2997 = vmul.f32 %v2900, %v2978
        %v2998 = vmul.f32 %v2905, %v2978
        %v2999 = vmul.f32 %v2910, %v2978
        %v3000 = vmul.f32 %v2915, %v2978
        %v3001 = vmul.f32 %v2920, %v2978
        %v3002 = vmul.f32 %v2925, %v2978
        %v3003 = vmul.f32 %v2930, %v2978
        %v3004 = vmul.f32 %v2935, %v2978
        %v3005 = vmul.f32 %v2940, %v2978
        %v3006 = vmul.f32 %v2945, %v2978
        %v3007 = vmul.f32 %v2950, %v2978
        %v3008 = vmul.f32 %v2955, %v2978
        %v3009 = vmul.f32 %v2960, %v2978
        %v3010 = vmul.f32 %v2965, %v2978
        %v3011 = vmul.f32 %v2970, %v2978
        %v3012 = vld [vmem:[#allocation14] sm:$0x1]
        %v3014 = vlaneseq
        %v3015 = vshrl.u32 %v3014, 7
        %v3016 = vsub.s32 0, %v3015
        %v3017 = vrot.slane %v3012, %v3016
        %v3019 = vadd.f32 %v2980, %v3017
        %v3020 = vadd.f32 %v2981, %v3017
        %v3021 = vadd.f32 %v2982, %v3017
        %v3022 = vadd.f32 %v2983, %v3017
        %v3023 = vadd.f32 %v2984, %v3017
        %v3024 = vadd.f32 %v2985, %v3017
        %v3025 = vadd.f32 %v2986, %v3017
        %v3026 = vadd.f32 %v2987, %v3017
        %v3027 = vadd.f32 %v2988, %v3017
        %v3028 = vadd.f32 %v2989, %v3017
        %v3029 = vadd.f32 %v2990, %v3017
        %v3030 = vadd.f32 %v2991, %v3017
        %v3031 = vadd.f32 %v2992, %v3017
        %v3032 = vadd.f32 %v2993, %v3017
        %v3033 = vadd.f32 %v2994, %v3017
        %v3034 = vadd.f32 %v2995, %v3017
        %v3035 = vadd.f32 %v2996, %v3017
        %v3036 = vadd.f32 %v2997, %v3017
        %v3037 = vadd.f32 %v2998, %v3017
        %v3038 = vadd.f32 %v2999, %v3017
        %v3039 = vadd.f32 %v3000, %v3017
        %v3040 = vadd.f32 %v3001, %v3017
        %v3041 = vadd.f32 %v3002, %v3017
        %v3042 = vadd.f32 %v3003, %v3017
        %v3043 = vadd.f32 %v3004, %v3017
        %v3044 = vadd.f32 %v3005, %v3017
        %v3045 = vadd.f32 %v3006, %v3017
        %v3046 = vadd.f32 %v3007, %v3017
        %v3047 = vadd.f32 %v3008, %v3017
        %v3048 = vadd.f32 %v3009, %v3017
        %v3049 = vadd.f32 %v3010, %v3017
        %v3050 = vadd.f32 %v3011, %v3017
        %v3051 = vmax.f32 %v3019, 0.0
        %v3052 = vmax.f32 %v3020, 0.0
        %v3053 = vmax.f32 %v3021, 0.0
        %v3054 = vmax.f32 %v3022, 0.0
        %v3055 = vmax.f32 %v3023, 0.0
        %v3056 = vmax.f32 %v3024, 0.0
        %v3057 = vmax.f32 %v3025, 0.0
        %v3058 = vmax.f32 %v3026, 0.0
        %v3059 = vmax.f32 %v3027, 0.0
        %v3060 = vmax.f32 %v3028, 0.0
        %v3061 = vmax.f32 %v3029, 0.0
        %v3062 = vmax.f32 %v3030, 0.0
        %v3063 = vmax.f32 %v3031, 0.0
        %v3064 = vmax.f32 %v3032, 0.0
        %v3065 = vmax.f32 %v3033, 0.0
        %v3066 = vmax.f32 %v3034, 0.0
        %v3067 = vmax.f32 %v3035, 0.0
        %v3068 = vmax.f32 %v3036, 0.0
        %v3069 = vmax.f32 %v3037, 0.0
        %v3070 = vmax.f32 %v3038, 0.0
        %v3071 = vmax.f32 %v3039, 0.0
        %v3072 = vmax.f32 %v3040, 0.0
        %v3073 = vmax.f32 %v3041, 0.0
        %v3074 = vmax.f32 %v3042, 0.0
        %v3075 = vmax.f32 %v3043, 0.0
        %v3076 = vmax.f32 %v3044, 0.0
        %v3077 = vmax.f32 %v3045, 0.0
        %v3078 = vmax.f32 %v3046, 0.0
        %v3079 = vmax.f32 %v3047, 0.0
        %v3080 = vmax.f32 %v3048, 0.0
        %v3081 = vmax.f32 %v3049, 0.0
        %v3082 = vmax.f32 %v3050, 0.0
        %3083 = vst.msk [vmem:[%s375] sm:$0xff] %vm1010, %v3051
        %3084 = vst.msk [vmem:[%s375 + $0x8] sm:$0xff] %vm1010, %v3052
        %3085 = vst.msk [vmem:[%s375 + $0x10] sm:$0xff] %vm1010, %v3053
        %3086 = vst.msk [vmem:[%s375 + $0x18] sm:$0xff] %vm1010, %v3054
        %3087 = vst.msk [vmem:[%s375 + $0x20] sm:$0xff] %vm1010, %v3055
        %3088 = vst.msk [vmem:[%s375 + $0x28] sm:$0xff] %vm1010, %v3056
        %3089 = vst.msk [vmem:[%s375 + $0x30] sm:$0xff] %vm1010, %v3057
        %3090 = vst.msk [vmem:[%s375 + $0x38] sm:$0xff] %vm1010, %v3058
        %3091 = vst.msk [vmem:[%s375 + $0x40] sm:$0xff] %vm1010, %v3059
        %3092 = vst.msk [vmem:[%s375 + $0x48] sm:$0xff] %vm1010, %v3060
        %3093 = vst.msk [vmem:[%s375 + $0x50] sm:$0xff] %vm1010, %v3061
        %3094 = vst.msk [vmem:[%s375 + $0x58] sm:$0xff] %vm1010, %v3062
        %3095 = vst.msk [vmem:[%s375 + $0x60] sm:$0xff] %vm1010, %v3063
        %3096 = vst.msk [vmem:[%s375 + $0x68] sm:$0xff] %vm1010, %v3064
        %3097 = vst.msk [vmem:[%s375 + $0x70] sm:$0xff] %vm1010, %v3065
        %3098 = vst.msk [vmem:[%s375 + $0x78] sm:$0xff] %vm1010, %v3066
        %3099 = vst.msk [vmem:[%s375 + $0x80] sm:$0xff] %vm1010, %v3067
        %3100 = vst.msk [vmem:[%s375 + $0x88] sm:$0xff] %vm1010, %v3068
        %3101 = vst.msk [vmem:[%s375 + $0x90] sm:$0xff] %vm1010, %v3069
        %3102 = vst.msk [vmem:[%s375 + $0x98] sm:$0xff] %vm1010, %v3070
        %3103 = vst.msk [vmem:[%s375 + $0xa0] sm:$0xff] %vm1010, %v3071
        %3104 = vst.msk [vmem:[%s375 + $0xa8] sm:$0xff] %vm1010, %v3072
        %3105 = vst.msk [vmem:[%s375 + $0xb0] sm:$0xff] %vm1010, %v3073
        %3106 = vst.msk [vmem:[%s375 + $0xb8] sm:$0xff] %vm1010, %v3074
        %3107 = vst.msk [vmem:[%s375 + $0xc0] sm:$0xff] %vm1010, %v3075
        %3108 = vst.msk [vmem:[%s375 + $0xc8] sm:$0xff] %vm1010, %v3076
        %3109 = vst.msk [vmem:[%s375 + $0xd0] sm:$0xff] %vm1010, %v3077
        %3110 = vst.msk [vmem:[%s375 + $0xd8] sm:$0xff] %vm1010, %v3078
        %3111 = vst.msk [vmem:[%s375 + $0xe0] sm:$0xff] %vm1010, %v3079
        %3112 = vst.msk [vmem:[%s375 + $0xe8] sm:$0xff] %vm1010, %v3080
        %3113 = vst.msk [vmem:[%s375 + $0xf0] sm:$0xff] %vm1010, %v3081
        %3114 = vst.msk [vmem:[%s375 + $0xf8] sm:$0xff] %vm1010, %v3082
        %s3115 = sand.u32 %s187, 1
        %s3116 = scalar_lea.sflag [#allocation5], %s3115
        %s3117 = sand.u32 %s187, 1
        %s3118 = smul.addr %s3117, 256
        %s3119 = scalar_lea.vmem [#allocation15], %s3118
        // Predicated region
        $region77: #{bottleneck_forward.2} parent=47 // pred_check
          %p3120 = pneg %p197
        $region78: #{bottleneck_forward.2} parent=47 // pred_check_branch
          %3122 = sbr.rel (%p3120) target = $region80
        $region79: #{bottleneck_forward.2} parent=47 // pred_region
          %s3124 = ssub.s32 4096, 4096
          %3125 = vsyncadd %s3116, %s3124
          %s3126 = smul.addr %s27, 32
          %s3127 = smul.addr %s3126, 128
          %s3128 = scalar_lea.hbm %s7, %s3127
          %s3129 = sshll.u32 %s3119, 4
          %s3130 = int_to_ptr.vmem [resolvable:$true] %s3129
          %3135 = dma.vmem_to_hbm [thread:$0]  %s3130, 4096, %s3128, %s3116, 128, 128, 8
        $region80: #{bottleneck_forward.2} parent=47 // pred_fallthru
          _
      $region48: #{bottleneck_forward.2} parent=5 // pred_fallthru
        _
      %p3136 = scmp.le.s32.totalorder 2, %s22
      // Predicated region
      $region81: #{bottleneck_forward.2} parent=5 // pred_check
        %p3137 = pneg %p3136
      $region82: #{bottleneck_forward.2} parent=5 // pred_check_branch
        %3139 = sbr.rel (%p3137) target = $region84
      $region83: #{bottleneck_forward.2} parent=5 // pred_region
        %s3140 = ssub.s32 %s22, 2
        // Predicated region
        $region85: #{bottleneck_forward.2} parent=83 // pred_check
          %p3141 = pneg %p203
        $region86: #{bottleneck_forward.2} parent=83 // pred_check_branch
          %3143 = sbr.rel (%p3141) target = $region88
        $region87: #{bottleneck_forward.2} parent=83 // pred_region
          %s3144 = sand.u32 %s188, 1
          %s3145 = scalar_lea.sflag [#allocation5], %s3144
          %s3146 = sand.u32 %s188, 1
          %s3147 = smul.addr %s3146, 256
          %s3148 = scalar_lea.vmem [#allocation15], %s3147
          %3149 = dma.done %s3145, 4096
        $region88: #{bottleneck_forward.2} parent=83 // pred_fallthru
          _
      $region84: #{bottleneck_forward.2} parent=5 // pred_fallthru
        _
    $region6: #{bottleneck_forward.2} parent=1 // loop_footer
      %s26 = sadd.s32 1, %s22
    $region7: #{bottleneck_forward.2} parent=1 // loop_footer_branch
      %21 = sbr.rel target = $region3
    $region8: #{bottleneck_forward.2} parent=1 // loop_exit
      _
    %3150 = vsyncpa [#allocation4], 1
    %s3151 = scalar_lea.sflag [#allocation4], 1
    %3152 = vsyncpa %s3151, 1
    %3153 = vsyncpa [#allocation7], 1
    %3154 = vsyncpa [#allocation10], 1
    %3155 = vsyncpa [#allocation13], 1
    %3156 = vsyncpa [#allocation5], 1
    %s3157 = scalar_lea.sflag [#allocation5], 1
    %3158 = vsyncpa %s3157, 1

</llo_original>
